<compile_context>
chip_gen: v6e
topology: v6e:2x2x1
jax: 0.10.0
libtpu: 0.0.40
codegen_flags: <defaults>
</compile_context>

<pallas_src>
import functools
import math

import jax
import jax.numpy as jnp
import numpy as np
from jax import lax
from jax.experimental import pallas as pl
from jax.experimental.pallas import tpu as pltpu


# ----------------------------------------------------------------------------
# Pallas kernel: BB batch elements per grid step.
# ----------------------------------------------------------------------------
def _self_attention_kernel(att_ref, cmc_ref, cmr_ref,
                           w1_ref, b1_ref,
                           wih_ref, bih_ref, whh_ref, bhh_ref,
                           xw_ref, yw_ref, dotw_ref,
                           w2a_ref, w2b_ref, w2c_ref, b2_ref,
                           out_ref,
                           encf_scr, encb_scr,
                           *, bb, seq, hid, hg):
    f32 = jnp.float32
    bf16 = jnp.bfloat16
    bbt = bb * seq
    g3 = 3 * hg                                    # per-direction gate width r|z|n

    def mm(a, b):                                  # bf16 MXU matmul, f32 accumulate
        return jnp.dot(a, b, preferred_element_type=f32)

    # ---- att_wrapper: Linear(4H -> H) + ReLU over all BB*T rows --------------
    att_bf = att_ref[...].astype(bf16)             # don't keep the f32 copy live
    x = jnp.maximum(mm(att_bf, w1_ref[...]) + b1_ref[...], 0.0)    # (BB*T, H)
    # F.dropout in eval mode -> identity.
    # TODO(synk): training-mode dropout RNG not implemented (inference only).
    x_bf = x.astype(bf16)

    # ---- bidirectional GRU ---------------------------------------------------
    # Input-side gates for both directions / all gates in ONE fused matmul.
    # Column layout: [fwd r|z|n | bwd r|z|n], each block of width hg.
    gi_all = (mm(x_bf, wih_ref[...]) + bih_ref[...]).reshape(bb, seq, 2 * g3)
    gi_f = gi_all[..., :g3]                        # (BB, T, 3hg)  forward gates
    gi_b = gi_all[..., g3:]                        # (BB, T, 3hg)  backward gates

    whh = whh_ref[...]                             # (2, hg, 3hg) bf16
    bhh = bhh_ref[...]                             # (2, 1,  3hg) f32

    def cell(gi_t, h_prev, d):
        # single fused hidden matmul for all three gates of one direction
        gh = mm(h_prev.astype(bf16), whh[d]) + bhh[d]              # (BB, 3hg)
        rz = jax.nn.sigmoid(gi_t[:, :2 * hg] + gh[:, :2 * hg])
        r = rz[:, :hg]
        z = rz[:, hg:]
        n = jnp.tanh(gi_t[:, 2 * hg:] + r * gh[:, 2 * hg:])
        return (1.0 - z) * n + z * h_prev

    hf = jnp.zeros((bb, hg), f32)
    hb = jnp.zeros((bb, hg), f32)
    # Forward step i and backward step T-1-i per iteration (two independent
    # chains); per-step outputs go straight to VMEM scratch -> O(1) vreg use.
    # TODO(synk): for large T convert to lax.fori_loop(..., unroll=4..8) with a
    # VMEM-resident gi to bound code size / compile time.
    for i in range(seq):
        tf, tb = i, seq - 1 - i
        hf = cell(gi_f[:, tf, :], hf, 0)
        hb = cell(gi_b[:, tb, :], hb, 1)
        for b in range(bb):                        # static leading-index stores
            encf_scr[b, pl.ds(tf, 1), :] = hf[b:b + 1, :]
            encb_scr[b, pl.ds(tb, 1), :] = hb[b:b + 1, :]

    enc3 = jnp.concatenate([encf_scr[...], encb_scr[...]], axis=-1)  # (BB,T,H)
    enc_flat = enc3.reshape(bbt, hid)
    enc3_bf = enc3.astype(bf16)

    # ---- trilinear attention + masked softmax + attention vector (batched) ---
    # logits[b,t,s] = sum_i (enc*dotw + yw)[b,t,i] * enc[b,s,i]  + xf[b,t]
    # (the y-factor is folded into the LHS of the single batched matmul).
    lhs_bf = (enc3 * dotw_ref[...] + yw_ref[...]).astype(bf16)
    logits = jnp.einsum("bti,bsi->bts", lhs_bf, enc3_bf,
                        preferred_element_type=f32)                 # (BB, T, T)
    xf = jnp.sum(enc3 * xw_ref[...], axis=-1, keepdims=True)        # (BB, T, 1)
    logits = logits + xf

    rowi = lax.broadcasted_iota(jnp.int32, (seq, seq), 0)
    coli = lax.broadcasted_iota(jnp.int32, (seq, seq), 1)
    offdiag = (rowi != coli)[None]                                  # (1, T, T)
    valid = (cmc_ref[...] > 0.5) & (cmr_ref[...] > 0.5) & offdiag   # (BB, T, T)
    masked = jnp.where(valid, logits, -1e30)
    m = jnp.max(masked, axis=-1, keepdims=True)
    e = jnp.exp(masked - m)
    p = e * pl.reciprocal(jnp.sum(e, axis=-1, keepdims=True), approx=True)
    v3 = jnp.einsum("bts,bsi->bti", p.astype(bf16), enc3_bf,
                    preferred_element_type=f32)                     # (BB, T, H)
    v_flat = v3.reshape(bbt, hid)

    # ---- upsampler Linear(3H -> 4H) without the (.,3H) concat, ReLU, residual
    ev = enc_flat * v_flat
    ups = jnp.maximum(mm(v_flat.astype(bf16), w2a_ref[...])
                      + mm(enc_flat.astype(bf16), w2b_ref[...])
                      + mm(ev.astype(bf16), w2c_ref[...])
                      + b2_ref[...], 0.0)                           # (BB*T, 4H)
    # Residual: re-read the VMEM-resident input block (final dropout = identity)
    out_ref[...] = att_ref[...] + ups


# ----------------------------------------------------------------------------
# Batch-block heuristic
# ----------------------------------------------------------------------------
def _pick_block_b(batch, seq, hid):
    """Per-generation sizing: >=2 grid steps when batch>=2 (v7x has 2 TCs),
    BB*T rows capped at 512 (256-wide MXU M target on v6e/v7x; v5e saturates
    at 128), row block sublane-aligned, live set within ~48 MiB (v7x VMEM)."""
    budget = 48 << 20

    def ok(d, need_multi):
        if batch % d:
            return False
        rows = d * seq
        if rows % 8 and d != batch:
            return False
        if rows > 512:
            return False
        if need_multi and batch >= 2 and batch // d < 2:
            return False
        est = (4 * rows * 4 * hid * 4          # double-buffered in/out f32 blocks
               + rows * 10 * hid * 4           # x / gi / enc / v / ups temporaries
               + 32 * hid * hid * 4)           # weights (upper bound)
        return est <= budget

    for need_multi in (True, False):
        cands = [d for d in range(1, batch + 1) if ok(d, need_multi)]
        if cands:
            return max(cands)
    return batch


# ----------------------------------------------------------------------------
# Wrapper
# ----------------------------------------------------------------------------
def self_attention_forward(att, c_mask, params, block_b=None):
    B, T, H4 = att.shape
    H = H4 // 4
    hg = H // 2
    f32 = jnp.float32
    bf16 = jnp.bfloat16

    BB = _pick_block_b(B, T, H) if block_b is None else block_b
    assert B % BB == 0

    att_flat = att.astype(f32).reshape(B * T, H4)
    cm = c_mask.astype(f32)
    cm_col = cm[:, :, None]                        # (B, T, 1) query-position mask
    cm_row = cm[:, None, :]                        # (B, 1, T) key-position mask

    # Fused GRU weight slabs: input side (H, 6*hg) = [fwd r|z|n | bwd r|z|n],
    # hidden side (2, hg, 3*hg).
    wih_cat = jnp.concatenate([params["wih_f"], params["wih_b"]], 1).astype(bf16)
    bih_cat = jnp.concatenate([params["bih_f"], params["bih_b"]], 1).astype(f32)
    whh = jnp.stack([params["whh_f"], params["whh_b"]], 0).astype(bf16)
    bhh = jnp.stack([params["bhh_f"], params["bhh_b"]], 0).astype(f32)

    # TODO(synk): on v7x the bulk w1 / w2 slabs could be quantized to fp8
    # (bf16 activations, f32 accumulation); no fp8 MXU path on v5e/v6e.
    w1 = params["w1"].astype(bf16)                 # (4H, H)
    b1 = params["b1"].astype(f32)                  # (1, H)
    xw = params["xw"].reshape(1, H).astype(f32)
    yw = params["yw"].reshape(1, H).astype(f32)
    dotw = params["dotw"].reshape(1, H).astype(f32)
    w2 = params["w2"]                              # (3H, 4H)
    w2a = w2[0:H].astype(bf16)                     # multiplies v
    w2b = w2[H:2 * H].astype(bf16)                 # multiplies enc
    w2c = w2[2 * H:3 * H].astype(bf16)             # multiplies enc * v
    b2 = params["b2"].astype(f32)                  # (1, 4H)

    weights = [w1, b1, wih_cat, bih_cat, whh, bhh,
               xw, yw, dotw, w2a, w2b, w2c, b2]

    def wspec(p):
        nd = p.ndim
        return pl.BlockSpec(p.shape, lambda i, _nd=nd: (0,) * _nd)

    kernel = functools.partial(_self_attention_kernel,
                               bb=BB, seq=T, hid=H, hg=hg)

    block_bytes = BB * T * H4 * 4
    vmem_limit = int(min(56 << 20, max(32 << 20, 8 * block_bytes)))

    out_flat = pl.pallas_call(
        kernel,
        out_shape=jax.ShapeDtypeStruct((B * T, H4), f32),
        grid_spec=pltpu.PrefetchScalarGridSpec(
            num_scalar_prefetch=0,
            grid=(B // BB,),
            in_specs=[
                pl.BlockSpec((BB * T, H4), lambda i: (i, 0)),
                pl.BlockSpec((BB, T, 1), lambda i: (i, 0, 0)),
                pl.BlockSpec((BB, 1, T), lambda i: (i, 0, 0)),
            ] + [wspec(p) for p in weights],
            out_specs=pl.BlockSpec((BB * T, H4), lambda i: (i, 0)),
            scratch_shapes=[pltpu.VMEM((BB, T, hg), f32),
                            pltpu.VMEM((BB, T, hg), f32)],
        ),
        compiler_params=pltpu.CompilerParams(
            dimension_semantics=("parallel",),
            vmem_limit_bytes=vmem_limit,
        ),
    )(att_flat, cm_col, cm_row, *weights)

    return out_flat.reshape(B, T, H4)


# ----------------------------------------------------------------------------
# Pure-JAX reference (validation only)
# ----------------------------------------------------------------------------
def reference_forward(att, c_mask, p):
    B, T, H4 = att.shape
    H = H4 // 4
    h = H // 2

    x = jax.nn.relu(att @ p["w1"] + p["b1"])             # (B, T, H)

    def gru_one(xb, wih, whh, bih, bhh, reverse):
        gi = xb @ wih + bih[0]                           # (T, 3h)
        if reverse:
            gi = gi[::-1]

        def step(hprev, gi_t):
            gh = hprev @ whh + bhh[0]
            r = jax.nn.sigmoid(gi_t[:h] + gh[:h])
            z = jax.nn.sigmoid(gi_t[h:2 * h] + gh[h:2 * h])
            n = jnp.tanh(gi_t[2 * h:] + r * gh[2 * h:])
            hnew = (1.0 - z) * n + z * hprev
            return hnew, hnew

        _, outs = lax.scan(step, jnp.zeros((h,), jnp.float32), gi)
        if reverse:
            outs = outs[::-1]
        return outs                                      # (T, h)

    encs = []
    for b in range(B):
        f = gru_one(x[b], p["wih_f"], p["whh_f"], p["bih_f"], p["bhh_f"], False)
        r = gru_one(x[b], p["wih_b"], p["whh_b"], p["bih_b"], p["bhh_b"], True)
        encs.append(jnp.concatenate([f, r], axis=-1))
    enc = jnp.stack(encs, axis=0)                        # (B, T, H)

    xf = enc @ p["xw"]                                   # (B, T, 1)
    yf = jnp.swapaxes(enc @ p["yw"], 1, 2)               # (B, 1, T)
    dot = jnp.einsum("bti,bsi->bts", enc * p["dotw"], enc)
    logits = dot + xf + yf

    cm = c_mask.astype(jnp.float32)
    mask = cm[:, :, None] * cm[:, None, :]
    mask = mask * (1.0 - jnp.eye(T)[None])
    masked = mask * logits + (1.0 - mask) * (-1e30)
    probs = jax.nn.softmax(masked, axis=-1)

    v = probs @ enc
    conc = jnp.concatenate([v, enc, enc * v], axis=-1)
    ups = jax.nn.relu(conc @ p["w2"] + p["b2"])
    return att + ups


# ----------------------------------------------------------------------------
if __name__ == "__main__":
    B, T, H = 2, 8, 32
    H4, h = 4 * H, H // 2

    key = jax.random.PRNGKey(0)
    ks = jax.random.split(key, 16)

    def unif(k, shape, bound):
        return jax.random.uniform(k, shape, jnp.float32, -bound, bound)

    lin1_b = 1.0 / math.sqrt(H4)
    gru_b = 1.0 / math.sqrt(h)
    tri_std = math.sqrt(6.0 / (H * 3 + 1))
    lin2_b = 1.0 / math.sqrt(3 * H)

    params = {
        # att_wrapper: Linear(4H -> H)   (stored as (in, out) = W^T)
        "w1": unif(ks[0], (H4, H), lin1_b),
        "b1": unif(ks[1], (1, H), lin1_b),
        # GRU forward direction (gates ordered r|z|n along columns)
        "wih_f": unif(ks[2], (H, 3 * h), gru_b),
        "whh_f": unif(ks[3], (h, 3 * h), gru_b),
        "bih_f": unif(ks[4], (1, 3 * h), gru_b),
        "bhh_f": unif(ks[5], (1, 3 * h), gru_b),
        # GRU backward direction
        "wih_b": unif(ks[6], (H, 3 * h), gru_b),
        "whh_b": unif(ks[7], (h, 3 * h), gru_b),
        "bih_b": unif(ks[8], (1, 3 * h), gru_b),
        "bhh_b": unif(ks[9], (1, 3 * h), gru_b),
        # TriLinearAttention
        "xw": unif(ks[10], (H, 1), tri_std),
        "yw": unif(ks[11], (H, 1), tri_std),
        "dotw": unif(ks[12], (1, H), tri_std),
        # self_att_upsampler: Linear(3H -> 4H)
        "w2": unif(ks[13], (3 * H, H4), lin2_b),
        "b2": unif(ks[14], (1, H4), lin2_b),
    }

    att = jax.random.normal(ks[15], (B, T, H4), jnp.float32)
    lengths = jnp.array([T, 5])
    c_mask = (jnp.arange(T)[None, :] < lengths[:, None]).astype(jnp.float32)  # (B, T)

    out = self_attention_forward(att, c_mask, params)
    out = jax.block_until_ready(out)

    ref = jax.block_until_ready(reference_forward(att, c_mask, params))

    assert out.shape == (B, T, H4), out.shape
    assert bool(jnp.all(jnp.isfinite(out)))
    # bf16 MXU operands with f32 accumulation -> slightly looser tolerance.
    np.testing.assert_allclose(np.asarray(out), np.asarray(ref),
                               rtol=3e-2, atol=3e-2)
    print("KERNEL_OK")
</pallas_src>

<mosaic_0001>
module attributes {stable_mosaic.version = 11 : i64} {
  func.func @_self_attention_kernel(%arg0: i32, %arg1: memref<8x128xf32, #tpu.memory_space<vmem>>, %arg2: memref<1x8x1xf32, #tpu.memory_space<vmem>>, %arg3: memref<1x1x8xf32, #tpu.memory_space<vmem>>, %arg4: memref<128x32xbf16, #tpu.memory_space<vmem>>, %arg5: memref<1x32xf32, #tpu.memory_space<vmem>>, %arg6: memref<32x96xbf16, #tpu.memory_space<vmem>>, %arg7: memref<1x96xf32, #tpu.memory_space<vmem>>, %arg8: memref<2x16x48xbf16, #tpu.memory_space<vmem>>, %arg9: memref<2x1x48xf32, #tpu.memory_space<vmem>>, %arg10: memref<1x32xf32, #tpu.memory_space<vmem>>, %arg11: memref<1x32xf32, #tpu.memory_space<vmem>>, %arg12: memref<1x32xf32, #tpu.memory_space<vmem>>, %arg13: memref<32x128xbf16, #tpu.memory_space<vmem>>, %arg14: memref<32x128xbf16, #tpu.memory_space<vmem>>, %arg15: memref<32x128xbf16, #tpu.memory_space<vmem>>, %arg16: memref<1x128xf32, #tpu.memory_space<vmem>>, %arg17: memref<8x128xf32, #tpu.memory_space<vmem>>, %arg18: memref<1x8x16xf32, #tpu.memory_space<vmem>>, %arg19: memref<1x8x16xf32, #tpu.memory_space<vmem>>) attributes {dimension_semantics = [#tpu.dimension_semantics<parallel>], iteration_bounds = array<i64: 2>, scalar_prefetch = 0 : i64, scratch_operands = 2 : i64, tpu.core_type = #tpu.core_type<tc>, window_params = [{transform_indices = @transform_0, window_bounds = array<i64: 8, 128>}, {transform_indices = @transform_1, window_bounds = array<i64: 1, 8, 1>}, {transform_indices = @transform_2, window_bounds = array<i64: 1, 1, 8>}, {pipeline_mode = #tpu.pipeline_mode<synchronous>, transform_indices = @transform_3, window_bounds = array<i64: 128, 32>}, {pipeline_mode = #tpu.pipeline_mode<synchronous>, transform_indices = @transform_4, window_bounds = array<i64: 1, 32>}, {pipeline_mode = #tpu.pipeline_mode<synchronous>, transform_indices = @transform_5, window_bounds = array<i64: 32, 96>}, {pipeline_mode = #tpu.pipeline_mode<synchronous>, transform_indices = @transform_6, window_bounds = array<i64: 1, 96>}, {pipeline_mode = #tpu.pipeline_mode<synchronous>, transform_indices = @transform_7, window_bounds = array<i64: 2, 16, 48>}, {pipeline_mode = #tpu.pipeline_mode<synchronous>, transform_indices = @transform_8, window_bounds = array<i64: 2, 1, 48>}, {pipeline_mode = #tpu.pipeline_mode<synchronous>, transform_indices = @transform_9, window_bounds = array<i64: 1, 32>}, {pipeline_mode = #tpu.pipeline_mode<synchronous>, transform_indices = @transform_10, window_bounds = array<i64: 1, 32>}, {pipeline_mode = #tpu.pipeline_mode<synchronous>, transform_indices = @transform_11, window_bounds = array<i64: 1, 32>}, {pipeline_mode = #tpu.pipeline_mode<synchronous>, transform_indices = @transform_12, window_bounds = array<i64: 32, 128>}, {pipeline_mode = #tpu.pipeline_mode<synchronous>, transform_indices = @transform_13, window_bounds = array<i64: 32, 128>}, {pipeline_mode = #tpu.pipeline_mode<synchronous>, transform_indices = @transform_14, window_bounds = array<i64: 32, 128>}, {pipeline_mode = #tpu.pipeline_mode<synchronous>, transform_indices = @transform_15, window_bounds = array<i64: 1, 128>}, {transform_indices = @transform_16, window_bounds = array<i64: 8, 128>}]} {
    %c0 = arith.constant 0 : index
    %c0_0 = arith.constant 0 : index
    %0 = vector.load %arg1[%c0, %c0_0] : memref<8x128xf32, #tpu.memory_space<vmem>>, vector<8x128xf32>
    %1 = arith.truncf %0 : vector<8x128xf32> to vector<8x128xbf16>
    %c0_1 = arith.constant 0 : index
    %c0_2 = arith.constant 0 : index
    %2 = vector.load %arg4[%c0_1, %c0_2] : memref<128x32xbf16, #tpu.memory_space<vmem>>, vector<128x32xbf16>
    %cst = arith.constant dense<0.000000e+00> : vector<8x32xf32>
    %3 = tpu.matmul %1, %2, %cst {dimension_numbers = #tpu.dot_dimension_numbers<[1], [0], [0], [1], [0, 0, 1, 1], [], []>} : vector<8x128xbf16>, vector<128x32xbf16>, vector<8x32xf32> -> vector<8x32xf32>
    %c0_3 = arith.constant 0 : index
    %c0_4 = arith.constant 0 : index
    %4 = vector.load %arg5[%c0_3, %c0_4] : memref<1x32xf32, #tpu.memory_space<vmem>>, vector<1x32xf32>
    %5 = vector.broadcast %4 : vector<1x32xf32> to vector<8x32xf32>
    %6 = arith.addf %3, %5 : vector<8x32xf32>
    %cst_5 = arith.constant 0.000000e+00 : f32
    %7 = vector.broadcast %cst_5 : f32 to vector<8x32xf32>
    %8 = arith.maximumf %6, %7 : vector<8x32xf32>
    %9 = arith.truncf %8 : vector<8x32xf32> to vector<8x32xbf16>
    %c0_6 = arith.constant 0 : index
    %c0_7 = arith.constant 0 : index
    %10 = vector.load %arg6[%c0_6, %c0_7] : memref<32x96xbf16, #tpu.memory_space<vmem>>, vector<32x96xbf16>
    %cst_8 = arith.constant dense<0.000000e+00> : vector<8x96xf32>
    %11 = tpu.matmul %9, %10, %cst_8 {dimension_numbers = #tpu.dot_dimension_numbers<[1], [0], [0], [1], [0, 0, 1, 1], [], []>} : vector<8x32xbf16>, vector<32x96xbf16>, vector<8x96xf32> -> vector<8x96xf32>
    %c0_9 = arith.constant 0 : index
    %c0_10 = arith.constant 0 : index
    %12 = vector.load %arg7[%c0_9, %c0_10] : memref<1x96xf32, #tpu.memory_space<vmem>>, vector<1x96xf32>
    %13 = vector.broadcast %12 : vector<1x96xf32> to vector<8x96xf32>
    %14 = arith.addf %11, %13 : vector<8x96xf32>
    %15 = vector.shape_cast %14 : vector<8x96xf32> to vector<1x8x96xf32>
    %16 = vector.extract_strided_slice %15 {offsets = [0, 0, 0], sizes = [1, 8, 48], strides = [1, 1, 1]} : vector<1x8x96xf32> to vector<1x8x48xf32>
    %17 = vector.extract_strided_slice %15 {offsets = [0, 0, 48], sizes = [1, 8, 48], strides = [1, 1, 1]} : vector<1x8x96xf32> to vector<1x8x48xf32>
    %c0_11 = arith.constant 0 : index
    %c0_12 = arith.constant 0 : index
    %c0_13 = arith.constant 0 : index
    %18 = vector.load %arg8[%c0_11, %c0_12, %c0_13] : memref<2x16x48xbf16, #tpu.memory_space<vmem>>, vector<2x16x48xbf16>
    %c0_14 = arith.constant 0 : index
    %c0_15 = arith.constant 0 : index
    %c0_16 = arith.constant 0 : index
    %19 = vector.load %arg9[%c0_14, %c0_15, %c0_16] : memref<2x1x48xf32, #tpu.memory_space<vmem>>, vector<2x1x48xf32>
    %cst_17 = arith.constant 0.000000e+00 : f32
    %20 = vector.broadcast %cst_17 : f32 to vector<1x16xf32>
    %cst_18 = arith.constant 0.000000e+00 : f32
    %21 = vector.broadcast %cst_18 : f32 to vector<1x16xf32>
    %22 = vector.extract_strided_slice %16 {offsets = [0, 0, 0], sizes = [1, 1, 48], strides = [1, 1, 1]} : vector<1x8x48xf32> to vector<1x1x48xf32>
    %23 = vector.shape_cast %22 : vector<1x1x48xf32> to vector<1x48xf32>
    %24 = arith.truncf %20 : vector<1x16xf32> to vector<1x16xbf16>
    %25 = vector.extract_strided_slice %18 {offsets = [0, 0, 0], sizes = [1, 16, 48], strides = [1, 1, 1]} : vector<2x16x48xbf16> to vector<1x16x48xbf16>
    %26 = vector.shape_cast %25 : vector<1x16x48xbf16> to vector<16x48xbf16>
    %cst_19 = arith.constant dense<0.000000e+00> : vector<1x48xf32>
    %27 = tpu.matmul %24, %26, %cst_19 {dimension_numbers = #tpu.dot_dimension_numbers<[1], [0], [0], [1], [0, 0, 1, 1], [], []>} : vector<1x16xbf16>, vector<16x48xbf16>, vector<1x48xf32> -> vector<1x48xf32>
    %28 = vector.extract_strided_slice %19 {offsets = [0, 0, 0], sizes = [1, 1, 48], strides = [1, 1, 1]} : vector<2x1x48xf32> to vector<1x1x48xf32>
    %29 = vector.shape_cast %28 : vector<1x1x48xf32> to vector<1x48xf32>
    %30 = arith.addf %27, %29 : vector<1x48xf32>
    %31 = vector.extract_strided_slice %23 {offsets = [0, 0], sizes = [1, 32], strides = [1, 1]} : vector<1x48xf32> to vector<1x32xf32>
    %32 = vector.extract_strided_slice %30 {offsets = [0, 0], sizes = [1, 32], strides = [1, 1]} : vector<1x48xf32> to vector<1x32xf32>
    %33 = arith.addf %31, %32 : vector<1x32xf32>
    %34 = arith.negf %33 : vector<1x32xf32>
    %35 = math.exp %34 : vector<1x32xf32>
    %cst_20 = arith.constant 1.000000e+00 : f32
    %36 = vector.broadcast %cst_20 : f32 to vector<1x32xf32>
    %37 = arith.addf %36, %35 : vector<1x32xf32>
    %38 = arith.divf %36, %37 : vector<1x32xf32>
    %39 = vector.extract_strided_slice %38 {offsets = [0, 0], sizes = [1, 16], strides = [1, 1]} : vector<1x32xf32> to vector<1x16xf32>
    %40 = vector.extract_strided_slice %38 {offsets = [0, 16], sizes = [1, 16], strides = [1, 1]} : vector<1x32xf32> to vector<1x16xf32>
    %41 = vector.extract_strided_slice %23 {offsets = [0, 32], sizes = [1, 16], strides = [1, 1]} : vector<1x48xf32> to vector<1x16xf32>
    %42 = vector.extract_strided_slice %30 {offsets = [0, 32], sizes = [1, 16], strides = [1, 1]} : vector<1x48xf32> to vector<1x16xf32>
    %43 = arith.mulf %39, %42 : vector<1x16xf32>
    %44 = arith.addf %41, %43 : vector<1x16xf32>
    %45 = math.tanh %44 : vector<1x16xf32>
    %cst_21 = arith.constant 1.000000e+00 : f32
    %46 = vector.broadcast %cst_21 : f32 to vector<1x16xf32>
    %47 = arith.subf %46, %40 : vector<1x16xf32>
    %48 = arith.mulf %47, %45 : vector<1x16xf32>
    %49 = arith.mulf %40, %20 : vector<1x16xf32>
    %50 = arith.addf %48, %49 : vector<1x16xf32>
    %51 = vector.extract_strided_slice %17 {offsets = [0, 7, 0], sizes = [1, 1, 48], strides = [1, 1, 1]} : vector<1x8x48xf32> to vector<1x1x48xf32>
    %52 = vector.shape_cast %51 : vector<1x1x48xf32> to vector<1x48xf32>
    %53 = arith.truncf %21 : vector<1x16xf32> to vector<1x16xbf16>
    %54 = vector.extract_strided_slice %18 {offsets = [1, 0, 0], sizes = [1, 16, 48], strides = [1, 1, 1]} : vector<2x16x48xbf16> to vector<1x16x48xbf16>
    %55 = vector.shape_cast %54 : vector<1x16x48xbf16> to vector<16x48xbf16>
    %cst_22 = arith.constant dense<0.000000e+00> : vector<1x48xf32>
    %56 = tpu.matmul %53, %55, %cst_22 {dimension_numbers = #tpu.dot_dimension_numbers<[1], [0], [0], [1], [0, 0, 1, 1], [], []>} : vector<1x16xbf16>, vector<16x48xbf16>, vector<1x48xf32> -> vector<1x48xf32>
    %57 = vector.extract_strided_slice %19 {offsets = [1, 0, 0], sizes = [1, 1, 48], strides = [1, 1, 1]} : vector<2x1x48xf32> to vector<1x1x48xf32>
    %58 = vector.shape_cast %57 : vector<1x1x48xf32> to vector<1x48xf32>
    %59 = arith.addf %56, %58 : vector<1x48xf32>
    %60 = vector.extract_strided_slice %52 {offsets = [0, 0], sizes = [1, 32], strides = [1, 1]} : vector<1x48xf32> to vector<1x32xf32>
    %61 = vector.extract_strided_slice %59 {offsets = [0, 0], sizes = [1, 32], strides = [1, 1]} : vector<1x48xf32> to vector<1x32xf32>
    %62 = arith.addf %60, %61 : vector<1x32xf32>
    %63 = arith.negf %62 : vector<1x32xf32>
    %64 = math.exp %63 : vector<1x32xf32>
    %cst_23 = arith.constant 1.000000e+00 : f32
    %65 = vector.broadcast %cst_23 : f32 to vector<1x32xf32>
    %66 = arith.addf %65, %64 : vector<1x32xf32>
    %67 = arith.divf %65, %66 : vector<1x32xf32>
    %68 = vector.extract_strided_slice %67 {offsets = [0, 0], sizes = [1, 16], strides = [1, 1]} : vector<1x32xf32> to vector<1x16xf32>
    %69 = vector.extract_strided_slice %67 {offsets = [0, 16], sizes = [1, 16], strides = [1, 1]} : vector<1x32xf32> to vector<1x16xf32>
    %70 = vector.extract_strided_slice %52 {offsets = [0, 32], sizes = [1, 16], strides = [1, 1]} : vector<1x48xf32> to vector<1x16xf32>
    %71 = vector.extract_strided_slice %59 {offsets = [0, 32], sizes = [1, 16], strides = [1, 1]} : vector<1x48xf32> to vector<1x16xf32>
    %72 = arith.mulf %68, %71 : vector<1x16xf32>
    %73 = arith.addf %70, %72 : vector<1x16xf32>
    %74 = math.tanh %73 : vector<1x16xf32>
    %cst_24 = arith.constant 1.000000e+00 : f32
    %75 = vector.broadcast %cst_24 : f32 to vector<1x16xf32>
    %76 = arith.subf %75, %69 : vector<1x16xf32>
    %77 = arith.mulf %76, %74 : vector<1x16xf32>
    %78 = arith.mulf %69, %21 : vector<1x16xf32>
    %79 = arith.addf %77, %78 : vector<1x16xf32>
    %c0_25 = arith.constant 0 : index
    %c0_26 = arith.constant 0 : index
    %c0_27 = arith.constant 0 : index
    %80 = vector.load %arg18[%c0_25, %c0_26, %c0_27] : memref<1x8x16xf32, #tpu.memory_space<vmem>>, vector<1x1x16xf32>
    %81 = vector.shape_cast %80 : vector<1x1x16xf32> to vector<1x16xf32>
    %82 = vector.shape_cast %50 : vector<1x16xf32> to vector<1x1x16xf32>
    tpu.vector_store %arg18[%c0_25, %c0_26, %c0_27], %82 {strides = array<i32>} : memref<1x8x16xf32, #tpu.memory_space<vmem>>, vector<1x1x16xf32>,
    %c0_28 = arith.constant 0 : index
    %c7 = arith.constant 7 : index
    %c0_29 = arith.constant 0 : index
    %83 = vector.load %arg19[%c0_28, %c7, %c0_29] : memref<1x8x16xf32, #tpu.memory_space<vmem>>, vector<1x1x16xf32>
    %84 = vector.shape_cast %83 : vector<1x1x16xf32> to vector<1x16xf32>
    %85 = vector.shape_cast %79 : vector<1x16xf32> to vector<1x1x16xf32>
    tpu.vector_store %arg19[%c0_28, %c7, %c0_29], %85 {strides = array<i32>} : memref<1x8x16xf32, #tpu.memory_space<vmem>>, vector<1x1x16xf32>,
    %86 = vector.extract_strided_slice %16 {offsets = [0, 1, 0], sizes = [1, 1, 48], strides = [1, 1, 1]} : vector<1x8x48xf32> to vector<1x1x48xf32>
    %87 = vector.shape_cast %86 : vector<1x1x48xf32> to vector<1x48xf32>
    %88 = arith.truncf %50 : vector<1x16xf32> to vector<1x16xbf16>
    %89 = vector.extract_strided_slice %18 {offsets = [0, 0, 0], sizes = [1, 16, 48], strides = [1, 1, 1]} : vector<2x16x48xbf16> to vector<1x16x48xbf16>
    %90 = vector.shape_cast %89 : vector<1x16x48xbf16> to vector<16x48xbf16>
    %cst_30 = arith.constant dense<0.000000e+00> : vector<1x48xf32>
    %91 = tpu.matmul %88, %90, %cst_30 {dimension_numbers = #tpu.dot_dimension_numbers<[1], [0], [0], [1], [0, 0, 1, 1], [], []>} : vector<1x16xbf16>, vector<16x48xbf16>, vector<1x48xf32> -> vector<1x48xf32>
    %92 = vector.extract_strided_slice %19 {offsets = [0, 0, 0], sizes = [1, 1, 48], strides = [1, 1, 1]} : vector<2x1x48xf32> to vector<1x1x48xf32>
    %93 = vector.shape_cast %92 : vector<1x1x48xf32> to vector<1x48xf32>
    %94 = arith.addf %91, %93 : vector<1x48xf32>
    %95 = vector.extract_strided_slice %87 {offsets = [0, 0], sizes = [1, 32], strides = [1, 1]} : vector<1x48xf32> to vector<1x32xf32>
    %96 = vector.extract_strided_slice %94 {offsets = [0, 0], sizes = [1, 32], strides = [1, 1]} : vector<1x48xf32> to vector<1x32xf32>
    %97 = arith.addf %95, %96 : vector<1x32xf32>
    %98 = arith.negf %97 : vector<1x32xf32>
    %99 = math.exp %98 : vector<1x32xf32>
    %cst_31 = arith.constant 1.000000e+00 : f32
    %100 = vector.broadcast %cst_31 : f32 to vector<1x32xf32>
    %101 = arith.addf %100, %99 : vector<1x32xf32>
    %102 = arith.divf %100, %101 : vector<1x32xf32>
    %103 = vector.extract_strided_slice %102 {offsets = [0, 0], sizes = [1, 16], strides = [1, 1]} : vector<1x32xf32> to vector<1x16xf32>
    %104 = vector.extract_strided_slice %102 {offsets = [0, 16], sizes = [1, 16], strides = [1, 1]} : vector<1x32xf32> to vector<1x16xf32>
    %105 = vector.extract_strided_slice %87 {offsets = [0, 32], sizes = [1, 16], strides = [1, 1]} : vector<1x48xf32> to vector<1x16xf32>
    %106 = vector.extract_strided_slice %94 {offsets = [0, 32], sizes = [1, 16], strides = [1, 1]} : vector<1x48xf32> to vector<1x16xf32>
    %107 = arith.mulf %103, %106 : vector<1x16xf32>
    %108 = arith.addf %105, %107 : vector<1x16xf32>
    %109 = math.tanh %108 : vector<1x16xf32>
    %cst_32 = arith.constant 1.000000e+00 : f32
    %110 = vector.broadcast %cst_32 : f32 to vector<1x16xf32>
    %111 = arith.subf %110, %104 : vector<1x16xf32>
    %112 = arith.mulf %111, %109 : vector<1x16xf32>
    %113 = arith.mulf %104, %50 : vector<1x16xf32>
    %114 = arith.addf %112, %113 : vector<1x16xf32>
    %115 = vector.extract_strided_slice %17 {offsets = [0, 6, 0], sizes = [1, 1, 48], strides = [1, 1, 1]} : vector<1x8x48xf32> to vector<1x1x48xf32>
    %116 = vector.shape_cast %115 : vector<1x1x48xf32> to vector<1x48xf32>
    %117 = arith.truncf %79 : vector<1x16xf32> to vector<1x16xbf16>
    %118 = vector.extract_strided_slice %18 {offsets = [1, 0, 0], sizes = [1, 16, 48], strides = [1, 1, 1]} : vector<2x16x48xbf16> to vector<1x16x48xbf16>
    %119 = vector.shape_cast %118 : vector<1x16x48xbf16> to vector<16x48xbf16>
    %cst_33 = arith.constant dense<0.000000e+00> : vector<1x48xf32>
    %120 = tpu.matmul %117, %119, %cst_33 {dimension_numbers = #tpu.dot_dimension_numbers<[1], [0], [0], [1], [0, 0, 1, 1], [], []>} : vector<1x16xbf16>, vector<16x48xbf16>, vector<1x48xf32> -> vector<1x48xf32>
    %121 = vector.extract_strided_slice %19 {offsets = [1, 0, 0], sizes = [1, 1, 48], strides = [1, 1, 1]} : vector<2x1x48xf32> to vector<1x1x48xf32>
    %122 = vector.shape_cast %121 : vector<1x1x48xf32> to vector<1x48xf32>
    %123 = arith.addf %120, %122 : vector<1x48xf32>
    %124 = vector.extract_strided_slice %116 {offsets = [0, 0], sizes = [1, 32], strides = [1, 1]} : vector<1x48xf32> to vector<1x32xf32>
    %125 = vector.extract_strided_slice %123 {offsets = [0, 0], sizes = [1, 32], strides = [1, 1]} : vector<1x48xf32> to vector<1x32xf32>
    %126 = arith.addf %124, %125 : vector<1x32xf32>
    %127 = arith.negf %126 : vector<1x32xf32>
    %128 = math.exp %127 : vector<1x32xf32>
    %cst_34 = arith.constant 1.000000e+00 : f32
    %129 = vector.broadcast %cst_34 : f32 to vector<1x32xf32>
    %130 = arith.addf %129, %128 : vector<1x32xf32>
    %131 = arith.divf %129, %130 : vector<1x32xf32>
    %132 = vector.extract_strided_slice %131 {offsets = [0, 0], sizes = [1, 16], strides = [1, 1]} : vector<1x32xf32> to vector<1x16xf32>
    %133 = vector.extract_strided_slice %131 {offsets = [0, 16], sizes = [1, 16], strides = [1, 1]} : vector<1x32xf32> to vector<1x16xf32>
    %134 = vector.extract_strided_slice %116 {offsets = [0, 32], sizes = [1, 16], strides = [1, 1]} : vector<1x48xf32> to vector<1x16xf32>
    %135 = vector.extract_strided_slice %123 {offsets = [0, 32], sizes = [1, 16], strides = [1, 1]} : vector<1x48xf32> to vector<1x16xf32>
    %136 = arith.mulf %132, %135 : vector<1x16xf32>
    %137 = arith.addf %134, %136 : vector<1x16xf32>
    %138 = math.tanh %137 : vector<1x16xf32>
    %cst_35 = arith.constant 1.000000e+00 : f32
    %139 = vector.broadcast %cst_35 : f32 to vector<1x16xf32>
    %140 = arith.subf %139, %133 : vector<1x16xf32>
    %141 = arith.mulf %140, %138 : vector<1x16xf32>
    %142 = arith.mulf %133, %79 : vector<1x16xf32>
    %143 = arith.addf %141, %142 : vector<1x16xf32>
    %c0_36 = arith.constant 0 : index
    %c1 = arith.constant 1 : index
    %c0_37 = arith.constant 0 : index
    %144 = vector.load %arg18[%c0_36, %c1, %c0_37] : memref<1x8x16xf32, #tpu.memory_space<vmem>>, vector<1x1x16xf32>
    %145 = vector.shape_cast %144 : vector<1x1x16xf32> to vector<1x16xf32>
    %146 = vector.shape_cast %114 : vector<1x16xf32> to vector<1x1x16xf32>
    tpu.vector_store %arg18[%c0_36, %c1, %c0_37], %146 {strides = array<i32>} : memref<1x8x16xf32, #tpu.memory_space<vmem>>, vector<1x1x16xf32>,
    %c0_38 = arith.constant 0 : index
    %c6 = arith.constant 6 : index
    %c0_39 = arith.constant 0 : index
    %147 = vector.load %arg19[%c0_38, %c6, %c0_39] : memref<1x8x16xf32, #tpu.memory_space<vmem>>, vector<1x1x16xf32>
    %148 = vector.shape_cast %147 : vector<1x1x16xf32> to vector<1x16xf32>
    %149 = vector.shape_cast %143 : vector<1x16xf32> to vector<1x1x16xf32>
    tpu.vector_store %arg19[%c0_38, %c6, %c0_39], %149 {strides = array<i32>} : memref<1x8x16xf32, #tpu.memory_space<vmem>>, vector<1x1x16xf32>,
    %150 = vector.extract_strided_slice %16 {offsets = [0, 2, 0], sizes = [1, 1, 48], strides = [1, 1, 1]} : vector<1x8x48xf32> to vector<1x1x48xf32>
    %151 = vector.shape_cast %150 : vector<1x1x48xf32> to vector<1x48xf32>
    %152 = arith.truncf %114 : vector<1x16xf32> to vector<1x16xbf16>
    %153 = vector.extract_strided_slice %18 {offsets = [0, 0, 0], sizes = [1, 16, 48], strides = [1, 1, 1]} : vector<2x16x48xbf16> to vector<1x16x48xbf16>
    %154 = vector.shape_cast %153 : vector<1x16x48xbf16> to vector<16x48xbf16>
    %cst_40 = arith.constant dense<0.000000e+00> : vector<1x48xf32>
    %155 = tpu.matmul %152, %154, %cst_40 {dimension_numbers = #tpu.dot_dimension_numbers<[1], [0], [0], [1], [0, 0, 1, 1], [], []>} : vector<1x16xbf16>, vector<16x48xbf16>, vector<1x48xf32> -> vector<1x48xf32>
    %156 = vector.extract_strided_slice %19 {offsets = [0, 0, 0], sizes = [1, 1, 48], strides = [1, 1, 1]} : vector<2x1x48xf32> to vector<1x1x48xf32>
    %157 = vector.shape_cast %156 : vector<1x1x48xf32> to vector<1x48xf32>
    %158 = arith.addf %155, %157 : vector<1x48xf32>
    %159 = vector.extract_strided_slice %151 {offsets = [0, 0], sizes = [1, 32], strides = [1, 1]} : vector<1x48xf32> to vector<1x32xf32>
    %160 = vector.extract_strided_slice %158 {offsets = [0, 0], sizes = [1, 32], strides = [1, 1]} : vector<1x48xf32> to vector<1x32xf32>
    %161 = arith.addf %159, %160 : vector<1x32xf32>
    %162 = arith.negf %161 : vector<1x32xf32>
    %163 = math.exp %162 : vector<1x32xf32>
    %cst_41 = arith.constant 1.000000e+00 : f32
    %164 = vector.broadcast %cst_41 : f32 to vector<1x32xf32>
    %165 = arith.addf %164, %163 : vector<1x32xf32>
    %166 = arith.divf %164, %165 : vector<1x32xf32>
    %167 = vector.extract_strided_slice %166 {offsets = [0, 0], sizes = [1, 16], strides = [1, 1]} : vector<1x32xf32> to vector<1x16xf32>
    %168 = vector.extract_strided_slice %166 {offsets = [0, 16], sizes = [1, 16], strides = [1, 1]} : vector<1x32xf32> to vector<1x16xf32>
    %169 = vector.extract_strided_slice %151 {offsets = [0, 32], sizes = [1, 16], strides = [1, 1]} : vector<1x48xf32> to vector<1x16xf32>
    %170 = vector.extract_strided_slice %158 {offsets = [0, 32], sizes = [1, 16], strides = [1, 1]} : vector<1x48xf32> to vector<1x16xf32>
    %171 = arith.mulf %167, %170 : vector<1x16xf32>
    %172 = arith.addf %169, %171 : vector<1x16xf32>
    %173 = math.tanh %172 : vector<1x16xf32>
    %cst_42 = arith.constant 1.000000e+00 : f32
    %174 = vector.broadcast %cst_42 : f32 to vector<1x16xf32>
    %175 = arith.subf %174, %168 : vector<1x16xf32>
    %176 = arith.mulf %175, %173 : vector<1x16xf32>
    %177 = arith.mulf %168, %114 : vector<1x16xf32>
    %178 = arith.addf %176, %177 : vector<1x16xf32>
    %179 = vector.extract_strided_slice %17 {offsets = [0, 5, 0], sizes = [1, 1, 48], strides = [1, 1, 1]} : vector<1x8x48xf32> to vector<1x1x48xf32>
    %180 = vector.shape_cast %179 : vector<1x1x48xf32> to vector<1x48xf32>
    %181 = arith.truncf %143 : vector<1x16xf32> to vector<1x16xbf16>
    %182 = vector.extract_strided_slice %18 {offsets = [1, 0, 0], sizes = [1, 16, 48], strides = [1, 1, 1]} : vector<2x16x48xbf16> to vector<1x16x48xbf16>
    %183 = vector.shape_cast %182 : vector<1x16x48xbf16> to vector<16x48xbf16>
    %cst_43 = arith.constant dense<0.000000e+00> : vector<1x48xf32>
    %184 = tpu.matmul %181, %183, %cst_43 {dimension_numbers = #tpu.dot_dimension_numbers<[1], [0], [0], [1], [0, 0, 1, 1], [], []>} : vector<1x16xbf16>, vector<16x48xbf16>, vector<1x48xf32> -> vector<1x48xf32>
    %185 = vector.extract_strided_slice %19 {offsets = [1, 0, 0], sizes = [1, 1, 48], strides = [1, 1, 1]} : vector<2x1x48xf32> to vector<1x1x48xf32>
    %186 = vector.shape_cast %185 : vector<1x1x48xf32> to vector<1x48xf32>
    %187 = arith.addf %184, %186 : vector<1x48xf32>
    %188 = vector.extract_strided_slice %180 {offsets = [0, 0], sizes = [1, 32], strides = [1, 1]} : vector<1x48xf32> to vector<1x32xf32>
    %189 = vector.extract_strided_slice %187 {offsets = [0, 0], sizes = [1, 32], strides = [1, 1]} : vector<1x48xf32> to vector<1x32xf32>
    %190 = arith.addf %188, %189 : vector<1x32xf32>
    %191 = arith.negf %190 : vector<1x32xf32>
    %192 = math.exp %191 : vector<1x32xf32>
    %cst_44 = arith.constant 1.000000e+00 : f32
    %193 = vector.broadcast %cst_44 : f32 to vector<1x32xf32>
    %194 = arith.addf %193, %192 : vector<1x32xf32>
    %195 = arith.divf %193, %194 : vector<1x32xf32>
    %196 = vector.extract_strided_slice %195 {offsets = [0, 0], sizes = [1, 16], strides = [1, 1]} : vector<1x32xf32> to vector<1x16xf32>
    %197 = vector.extract_strided_slice %195 {offsets = [0, 16], sizes = [1, 16], strides = [1, 1]} : vector<1x32xf32> to vector<1x16xf32>
    %198 = vector.extract_strided_slice %180 {offsets = [0, 32], sizes = [1, 16], strides = [1, 1]} : vector<1x48xf32> to vector<1x16xf32>
    %199 = vector.extract_strided_slice %187 {offsets = [0, 32], sizes = [1, 16], strides = [1, 1]} : vector<1x48xf32> to vector<1x16xf32>
    %200 = arith.mulf %196, %199 : vector<1x16xf32>
    %201 = arith.addf %198, %200 : vector<1x16xf32>
    %202 = math.tanh %201 : vector<1x16xf32>
    %cst_45 = arith.constant 1.000000e+00 : f32
    %203 = vector.broadcast %cst_45 : f32 to vector<1x16xf32>
    %204 = arith.subf %203, %197 : vector<1x16xf32>
    %205 = arith.mulf %204, %202 : vector<1x16xf32>
    %206 = arith.mulf %197, %143 : vector<1x16xf32>
    %207 = arith.addf %205, %206 : vector<1x16xf32>
    %c0_46 = arith.constant 0 : index
    %c2 = arith.constant 2 : index
    %c0_47 = arith.constant 0 : index
    %208 = vector.load %arg18[%c0_46, %c2, %c0_47] : memref<1x8x16xf32, #tpu.memory_space<vmem>>, vector<1x1x16xf32>
    %209 = vector.shape_cast %208 : vector<1x1x16xf32> to vector<1x16xf32>
    %210 = vector.shape_cast %178 : vector<1x16xf32> to vector<1x1x16xf32>
    tpu.vector_store %arg18[%c0_46, %c2, %c0_47], %210 {strides = array<i32>} : memref<1x8x16xf32, #tpu.memory_space<vmem>>, vector<1x1x16xf32>,
    %c0_48 = arith.constant 0 : index
    %c5 = arith.constant 5 : index
    %c0_49 = arith.constant 0 : index
    %211 = vector.load %arg19[%c0_48, %c5, %c0_49] : memref<1x8x16xf32, #tpu.memory_space<vmem>>, vector<1x1x16xf32>
    %212 = vector.shape_cast %211 : vector<1x1x16xf32> to vector<1x16xf32>
    %213 = vector.shape_cast %207 : vector<1x16xf32> to vector<1x1x16xf32>
    tpu.vector_store %arg19[%c0_48, %c5, %c0_49], %213 {strides = array<i32>} : memref<1x8x16xf32, #tpu.memory_space<vmem>>, vector<1x1x16xf32>,
    %214 = vector.extract_strided_slice %16 {offsets = [0, 3, 0], sizes = [1, 1, 48], strides = [1, 1, 1]} : vector<1x8x48xf32> to vector<1x1x48xf32>
    %215 = vector.shape_cast %214 : vector<1x1x48xf32> to vector<1x48xf32>
    %216 = arith.truncf %178 : vector<1x16xf32> to vector<1x16xbf16>
    %217 = vector.extract_strided_slice %18 {offsets = [0, 0, 0], sizes = [1, 16, 48], strides = [1, 1, 1]} : vector<2x16x48xbf16> to vector<1x16x48xbf16>
    %218 = vector.shape_cast %217 : vector<1x16x48xbf16> to vector<16x48xbf16>
    %cst_50 = arith.constant dense<0.000000e+00> : vector<1x48xf32>
    %219 = tpu.matmul %216, %218, %cst_50 {dimension_numbers = #tpu.dot_dimension_numbers<[1], [0], [0], [1], [0, 0, 1, 1], [], []>} : vector<1x16xbf16>, vector<16x48xbf16>, vector<1x48xf32> -> vector<1x48xf32>
    %220 = vector.extract_strided_slice %19 {offsets = [0, 0, 0], sizes = [1, 1, 48], strides = [1, 1, 1]} : vector<2x1x48xf32> to vector<1x1x48xf32>
    %221 = vector.shape_cast %220 : vector<1x1x48xf32> to vector<1x48xf32>
    %222 = arith.addf %219, %221 : vector<1x48xf32>
    %223 = vector.extract_strided_slice %215 {offsets = [0, 0], sizes = [1, 32], strides = [1, 1]} : vector<1x48xf32> to vector<1x32xf32>
    %224 = vector.extract_strided_slice %222 {offsets = [0, 0], sizes = [1, 32], strides = [1, 1]} : vector<1x48xf32> to vector<1x32xf32>
    %225 = arith.addf %223, %224 : vector<1x32xf32>
    %226 = arith.negf %225 : vector<1x32xf32>
    %227 = math.exp %226 : vector<1x32xf32>
    %cst_51 = arith.constant 1.000000e+00 : f32
    %228 = vector.broadcast %cst_51 : f32 to vector<1x32xf32>
    %229 = arith.addf %228, %227 : vector<1x32xf32>
    %230 = arith.divf %228, %229 : vector<1x32xf32>
    %231 = vector.extract_strided_slice %230 {offsets = [0, 0], sizes = [1, 16], strides = [1, 1]} : vector<1x32xf32> to vector<1x16xf32>
    %232 = vector.extract_strided_slice %230 {offsets = [0, 16], sizes = [1, 16], strides = [1, 1]} : vector<1x32xf32> to vector<1x16xf32>
    %233 = vector.extract_strided_slice %215 {offsets = [0, 32], sizes = [1, 16], strides = [1, 1]} : vector<1x48xf32> to vector<1x16xf32>
    %234 = vector.extract_strided_slice %222 {offsets = [0, 32], sizes = [1, 16], strides = [1, 1]} : vector<1x48xf32> to vector<1x16xf32>
    %235 = arith.mulf %231, %234 : vector<1x16xf32>
    %236 = arith.addf %233, %235 : vector<1x16xf32>
    %237 = math.tanh %236 : vector<1x16xf32>
    %cst_52 = arith.constant 1.000000e+00 : f32
    %238 = vector.broadcast %cst_52 : f32 to vector<1x16xf32>
    %239 = arith.subf %238, %232 : vector<1x16xf32>
    %240 = arith.mulf %239, %237 : vector<1x16xf32>
    %241 = arith.mulf %232, %178 : vector<1x16xf32>
    %242 = arith.addf %240, %241 : vector<1x16xf32>
    %243 = vector.extract_strided_slice %17 {offsets = [0, 4, 0], sizes = [1, 1, 48], strides = [1, 1, 1]} : vector<1x8x48xf32> to vector<1x1x48xf32>
    %244 = vector.shape_cast %243 : vector<1x1x48xf32> to vector<1x48xf32>
    %245 = arith.truncf %207 : vector<1x16xf32> to vector<1x16xbf16>
    %246 = vector.extract_strided_slice %18 {offsets = [1, 0, 0], sizes = [1, 16, 48], strides = [1, 1, 1]} : vector<2x16x48xbf16> to vector<1x16x48xbf16>
    %247 = vector.shape_cast %246 : vector<1x16x48xbf16> to vector<16x48xbf16>
    %cst_53 = arith.constant dense<0.000000e+00> : vector<1x48xf32>
    %248 = tpu.matmul %245, %247, %cst_53 {dimension_numbers = #tpu.dot_dimension_numbers<[1], [0], [0], [1], [0, 0, 1, 1], [], []>} : vector<1x16xbf16>, vector<16x48xbf16>, vector<1x48xf32> -> vector<1x48xf32>
    %249 = vector.extract_strided_slice %19 {offsets = [1, 0, 0], sizes = [1, 1, 48], strides = [1, 1, 1]} : vector<2x1x48xf32> to vector<1x1x48xf32>
    %250 = vector.shape_cast %249 : vector<1x1x48xf32> to vector<1x48xf32>
    %251 = arith.addf %248, %250 : vector<1x48xf32>
    %252 = vector.extract_strided_slice %244 {offsets = [0, 0], sizes = [1, 32], strides = [1, 1]} : vector<1x48xf32> to vector<1x32xf32>
    %253 = vector.extract_strided_slice %251 {offsets = [0, 0], sizes = [1, 32], strides = [1, 1]} : vector<1x48xf32> to vector<1x32xf32>
    %254 = arith.addf %252, %253 : vector<1x32xf32>
    %255 = arith.negf %254 : vector<1x32xf32>
    %256 = math.exp %255 : vector<1x32xf32>
    %cst_54 = arith.constant 1.000000e+00 : f32
    %257 = vector.broadcast %cst_54 : f32 to vector<1x32xf32>
    %258 = arith.addf %257, %256 : vector<1x32xf32>
    %259 = arith.divf %257, %258 : vector<1x32xf32>
    %260 = vector.extract_strided_slice %259 {offsets = [0, 0], sizes = [1, 16], strides = [1, 1]} : vector<1x32xf32> to vector<1x16xf32>
    %261 = vector.extract_strided_slice %259 {offsets = [0, 16], sizes = [1, 16], strides = [1, 1]} : vector<1x32xf32> to vector<1x16xf32>
    %262 = vector.extract_strided_slice %244 {offsets = [0, 32], sizes = [1, 16], strides = [1, 1]} : vector<1x48xf32> to vector<1x16xf32>
    %263 = vector.extract_strided_slice %251 {offsets = [0, 32], sizes = [1, 16], strides = [1, 1]} : vector<1x48xf32> to vector<1x16xf32>
    %264 = arith.mulf %260, %263 : vector<1x16xf32>
    %265 = arith.addf %262, %264 : vector<1x16xf32>
    %266 = math.tanh %265 : vector<1x16xf32>
    %cst_55 = arith.constant 1.000000e+00 : f32
    %267 = vector.broadcast %cst_55 : f32 to vector<1x16xf32>
    %268 = arith.subf %267, %261 : vector<1x16xf32>
    %269 = arith.mulf %268, %266 : vector<1x16xf32>
    %270 = arith.mulf %261, %207 : vector<1x16xf32>
    %271 = arith.addf %269, %270 : vector<1x16xf32>
    %c0_56 = arith.constant 0 : index
    %c3 = arith.constant 3 : index
    %c0_57 = arith.constant 0 : index
    %272 = vector.load %arg18[%c0_56, %c3, %c0_57] : memref<1x8x16xf32, #tpu.memory_space<vmem>>, vector<1x1x16xf32>
    %273 = vector.shape_cast %272 : vector<1x1x16xf32> to vector<1x16xf32>
    %274 = vector.shape_cast %242 : vector<1x16xf32> to vector<1x1x16xf32>
    tpu.vector_store %arg18[%c0_56, %c3, %c0_57], %274 {strides = array<i32>} : memref<1x8x16xf32, #tpu.memory_space<vmem>>, vector<1x1x16xf32>,
    %c0_58 = arith.constant 0 : index
    %c4 = arith.constant 4 : index
    %c0_59 = arith.constant 0 : index
    %275 = vector.load %arg19[%c0_58, %c4, %c0_59] : memref<1x8x16xf32, #tpu.memory_space<vmem>>, vector<1x1x16xf32>
    %276 = vector.shape_cast %275 : vector<1x1x16xf32> to vector<1x16xf32>
    %277 = vector.shape_cast %271 : vector<1x16xf32> to vector<1x1x16xf32>
    tpu.vector_store %arg19[%c0_58, %c4, %c0_59], %277 {strides = array<i32>} : memref<1x8x16xf32, #tpu.memory_space<vmem>>, vector<1x1x16xf32>,
    %278 = vector.extract_strided_slice %16 {offsets = [0, 4, 0], sizes = [1, 1, 48], strides = [1, 1, 1]} : vector<1x8x48xf32> to vector<1x1x48xf32>
    %279 = vector.shape_cast %278 : vector<1x1x48xf32> to vector<1x48xf32>
    %280 = arith.truncf %242 : vector<1x16xf32> to vector<1x16xbf16>
    %281 = vector.extract_strided_slice %18 {offsets = [0, 0, 0], sizes = [1, 16, 48], strides = [1, 1, 1]} : vector<2x16x48xbf16> to vector<1x16x48xbf16>
    %282 = vector.shape_cast %281 : vector<1x16x48xbf16> to vector<16x48xbf16>
    %cst_60 = arith.constant dense<0.000000e+00> : vector<1x48xf32>
    %283 = tpu.matmul %280, %282, %cst_60 {dimension_numbers = #tpu.dot_dimension_numbers<[1], [0], [0], [1], [0, 0, 1, 1], [], []>} : vector<1x16xbf16>, vector<16x48xbf16>, vector<1x48xf32> -> vector<1x48xf32>
    %284 = vector.extract_strided_slice %19 {offsets = [0, 0, 0], sizes = [1, 1, 48], strides = [1, 1, 1]} : vector<2x1x48xf32> to vector<1x1x48xf32>
    %285 = vector.shape_cast %284 : vector<1x1x48xf32> to vector<1x48xf32>
    %286 = arith.addf %283, %285 : vector<1x48xf32>
    %287 = vector.extract_strided_slice %279 {offsets = [0, 0], sizes = [1, 32], strides = [1, 1]} : vector<1x48xf32> to vector<1x32xf32>
    %288 = vector.extract_strided_slice %286 {offsets = [0, 0], sizes = [1, 32], strides = [1, 1]} : vector<1x48xf32> to vector<1x32xf32>
    %289 = arith.addf %287, %288 : vector<1x32xf32>
    %290 = arith.negf %289 : vector<1x32xf32>
    %291 = math.exp %290 : vector<1x32xf32>
    %cst_61 = arith.constant 1.000000e+00 : f32
    %292 = vector.broadcast %cst_61 : f32 to vector<1x32xf32>
    %293 = arith.addf %292, %291 : vector<1x32xf32>
    %294 = arith.divf %292, %293 : vector<1x32xf32>
    %295 = vector.extract_strided_slice %294 {offsets = [0, 0], sizes = [1, 16], strides = [1, 1]} : vector<1x32xf32> to vector<1x16xf32>
    %296 = vector.extract_strided_slice %294 {offsets = [0, 16], sizes = [1, 16], strides = [1, 1]} : vector<1x32xf32> to vector<1x16xf32>
    %297 = vector.extract_strided_slice %279 {offsets = [0, 32], sizes = [1, 16], strides = [1, 1]} : vector<1x48xf32> to vector<1x16xf32>
    %298 = vector.extract_strided_slice %286 {offsets = [0, 32], sizes = [1, 16], strides = [1, 1]} : vector<1x48xf32> to vector<1x16xf32>
    %299 = arith.mulf %295, %298 : vector<1x16xf32>
    %300 = arith.addf %297, %299 : vector<1x16xf32>
    %301 = math.tanh %300 : vector<1x16xf32>
    %cst_62 = arith.constant 1.000000e+00 : f32
    %302 = vector.broadcast %cst_62 : f32 to vector<1x16xf32>
    %303 = arith.subf %302, %296 : vector<1x16xf32>
    %304 = arith.mulf %303, %301 : vector<1x16xf32>
    %305 = arith.mulf %296, %242 : vector<1x16xf32>
    %306 = arith.addf %304, %305 : vector<1x16xf32>
    %307 = vector.extract_strided_slice %17 {offsets = [0, 3, 0], sizes = [1, 1, 48], strides = [1, 1, 1]} : vector<1x8x48xf32> to vector<1x1x48xf32>
    %308 = vector.shape_cast %307 : vector<1x1x48xf32> to vector<1x48xf32>
    %309 = arith.truncf %271 : vector<1x16xf32> to vector<1x16xbf16>
    %310 = vector.extract_strided_slice %18 {offsets = [1, 0, 0], sizes = [1, 16, 48], strides = [1, 1, 1]} : vector<2x16x48xbf16> to vector<1x16x48xbf16>
    %311 = vector.shape_cast %310 : vector<1x16x48xbf16> to vector<16x48xbf16>
    %cst_63 = arith.constant dense<0.000000e+00> : vector<1x48xf32>
    %312 = tpu.matmul %309, %311, %cst_63 {dimension_numbers = #tpu.dot_dimension_numbers<[1], [0], [0], [1], [0, 0, 1, 1], [], []>} : vector<1x16xbf16>, vector<16x48xbf16>, vector<1x48xf32> -> vector<1x48xf32>
    %313 = vector.extract_strided_slice %19 {offsets = [1, 0, 0], sizes = [1, 1, 48], strides = [1, 1, 1]} : vector<2x1x48xf32> to vector<1x1x48xf32>
    %314 = vector.shape_cast %313 : vector<1x1x48xf32> to vector<1x48xf32>
    %315 = arith.addf %312, %314 : vector<1x48xf32>
    %316 = vector.extract_strided_slice %308 {offsets = [0, 0], sizes = [1, 32], strides = [1, 1]} : vector<1x48xf32> to vector<1x32xf32>
    %317 = vector.extract_strided_slice %315 {offsets = [0, 0], sizes = [1, 32], strides = [1, 1]} : vector<1x48xf32> to vector<1x32xf32>
    %318 = arith.addf %316, %317 : vector<1x32xf32>
    %319 = arith.negf %318 : vector<1x32xf32>
    %320 = math.exp %319 : vector<1x32xf32>
    %cst_64 = arith.constant 1.000000e+00 : f32
    %321 = vector.broadcast %cst_64 : f32 to vector<1x32xf32>
    %322 = arith.addf %321, %320 : vector<1x32xf32>
    %323 = arith.divf %321, %322 : vector<1x32xf32>
    %324 = vector.extract_strided_slice %323 {offsets = [0, 0], sizes = [1, 16], strides = [1, 1]} : vector<1x32xf32> to vector<1x16xf32>
    %325 = vector.extract_strided_slice %323 {offsets = [0, 16], sizes = [1, 16], strides = [1, 1]} : vector<1x32xf32> to vector<1x16xf32>
    %326 = vector.extract_strided_slice %308 {offsets = [0, 32], sizes = [1, 16], strides = [1, 1]} : vector<1x48xf32> to vector<1x16xf32>
    %327 = vector.extract_strided_slice %315 {offsets = [0, 32], sizes = [1, 16], strides = [1, 1]} : vector<1x48xf32> to vector<1x16xf32>
    %328 = arith.mulf %324, %327 : vector<1x16xf32>
    %329 = arith.addf %326, %328 : vector<1x16xf32>
    %330 = math.tanh %329 : vector<1x16xf32>
    %cst_65 = arith.constant 1.000000e+00 : f32
    %331 = vector.broadcast %cst_65 : f32 to vector<1x16xf32>
    %332 = arith.subf %331, %325 : vector<1x16xf32>
    %333 = arith.mulf %332, %330 : vector<1x16xf32>
    %334 = arith.mulf %325, %271 : vector<1x16xf32>
    %335 = arith.addf %333, %334 : vector<1x16xf32>
    %c0_66 = arith.constant 0 : index
    %c4_67 = arith.constant 4 : index
    %c0_68 = arith.constant 0 : index
    %336 = vector.load %arg18[%c0_66, %c4_67, %c0_68] : memref<1x8x16xf32, #tpu.memory_space<vmem>>, vector<1x1x16xf32>
    %337 = vector.shape_cast %336 : vector<1x1x16xf32> to vector<1x16xf32>
    %338 = vector.shape_cast %306 : vector<1x16xf32> to vector<1x1x16xf32>
    tpu.vector_store %arg18[%c0_66, %c4_67, %c0_68], %338 {strides = array<i32>} : memref<1x8x16xf32, #tpu.memory_space<vmem>>, vector<1x1x16xf32>,
    %c0_69 = arith.constant 0 : index
    %c3_70 = arith.constant 3 : index
    %c0_71 = arith.constant 0 : index
    %339 = vector.load %arg19[%c0_69, %c3_70, %c0_71] : memref<1x8x16xf32, #tpu.memory_space<vmem>>, vector<1x1x16xf32>
    %340 = vector.shape_cast %339 : vector<1x1x16xf32> to vector<1x16xf32>
    %341 = vector.shape_cast %335 : vector<1x16xf32> to vector<1x1x16xf32>
    tpu.vector_store %arg19[%c0_69, %c3_70, %c0_71], %341 {strides = array<i32>} : memref<1x8x16xf32, #tpu.memory_space<vmem>>, vector<1x1x16xf32>,
    %342 = vector.extract_strided_slice %16 {offsets = [0, 5, 0], sizes = [1, 1, 48], strides = [1, 1, 1]} : vector<1x8x48xf32> to vector<1x1x48xf32>
    %343 = vector.shape_cast %342 : vector<1x1x48xf32> to vector<1x48xf32>
    %344 = arith.truncf %306 : vector<1x16xf32> to vector<1x16xbf16>
    %345 = vector.extract_strided_slice %18 {offsets = [0, 0, 0], sizes = [1, 16, 48], strides = [1, 1, 1]} : vector<2x16x48xbf16> to vector<1x16x48xbf16>
    %346 = vector.shape_cast %345 : vector<1x16x48xbf16> to vector<16x48xbf16>
    %cst_72 = arith.constant dense<0.000000e+00> : vector<1x48xf32>
    %347 = tpu.matmul %344, %346, %cst_72 {dimension_numbers = #tpu.dot_dimension_numbers<[1], [0], [0], [1], [0, 0, 1, 1], [], []>} : vector<1x16xbf16>, vector<16x48xbf16>, vector<1x48xf32> -> vector<1x48xf32>
    %348 = vector.extract_strided_slice %19 {offsets = [0, 0, 0], sizes = [1, 1, 48], strides = [1, 1, 1]} : vector<2x1x48xf32> to vector<1x1x48xf32>
    %349 = vector.shape_cast %348 : vector<1x1x48xf32> to vector<1x48xf32>
    %350 = arith.addf %347, %349 : vector<1x48xf32>
    %351 = vector.extract_strided_slice %343 {offsets = [0, 0], sizes = [1, 32], strides = [1, 1]} : vector<1x48xf32> to vector<1x32xf32>
    %352 = vector.extract_strided_slice %350 {offsets = [0, 0], sizes = [1, 32], strides = [1, 1]} : vector<1x48xf32> to vector<1x32xf32>
    %353 = arith.addf %351, %352 : vector<1x32xf32>
    %354 = arith.negf %353 : vector<1x32xf32>
    %355 = math.exp %354 : vector<1x32xf32>
    %cst_73 = arith.constant 1.000000e+00 : f32
    %356 = vector.broadcast %cst_73 : f32 to vector<1x32xf32>
    %357 = arith.addf %356, %355 : vector<1x32xf32>
    %358 = arith.divf %356, %357 : vector<1x32xf32>
    %359 = vector.extract_strided_slice %358 {offsets = [0, 0], sizes = [1, 16], strides = [1, 1]} : vector<1x32xf32> to vector<1x16xf32>
    %360 = vector.extract_strided_slice %358 {offsets = [0, 16], sizes = [1, 16], strides = [1, 1]} : vector<1x32xf32> to vector<1x16xf32>
    %361 = vector.extract_strided_slice %343 {offsets = [0, 32], sizes = [1, 16], strides = [1, 1]} : vector<1x48xf32> to vector<1x16xf32>
    %362 = vector.extract_strided_slice %350 {offsets = [0, 32], sizes = [1, 16], strides = [1, 1]} : vector<1x48xf32> to vector<1x16xf32>
    %363 = arith.mulf %359, %362 : vector<1x16xf32>
    %364 = arith.addf %361, %363 : vector<1x16xf32>
    %365 = math.tanh %364 : vector<1x16xf32>
    %cst_74 = arith.constant 1.000000e+00 : f32
    %366 = vector.broadcast %cst_74 : f32 to vector<1x16xf32>
    %367 = arith.subf %366, %360 : vector<1x16xf32>
    %368 = arith.mulf %367, %365 : vector<1x16xf32>
    %369 = arith.mulf %360, %306 : vector<1x16xf32>
    %370 = arith.addf %368, %369 : vector<1x16xf32>
    %371 = vector.extract_strided_slice %17 {offsets = [0, 2, 0], sizes = [1, 1, 48], strides = [1, 1, 1]} : vector<1x8x48xf32> to vector<1x1x48xf32>
    %372 = vector.shape_cast %371 : vector<1x1x48xf32> to vector<1x48xf32>
    %373 = arith.truncf %335 : vector<1x16xf32> to vector<1x16xbf16>
    %374 = vector.extract_strided_slice %18 {offsets = [1, 0, 0], sizes = [1, 16, 48], strides = [1, 1, 1]} : vector<2x16x48xbf16> to vector<1x16x48xbf16>
    %375 = vector.shape_cast %374 : vector<1x16x48xbf16> to vector<16x48xbf16>
    %cst_75 = arith.constant dense<0.000000e+00> : vector<1x48xf32>
    %376 = tpu.matmul %373, %375, %cst_75 {dimension_numbers = #tpu.dot_dimension_numbers<[1], [0], [0], [1], [0, 0, 1, 1], [], []>} : vector<1x16xbf16>, vector<16x48xbf16>, vector<1x48xf32> -> vector<1x48xf32>
    %377 = vector.extract_strided_slice %19 {offsets = [1, 0, 0], sizes = [1, 1, 48], strides = [1, 1, 1]} : vector<2x1x48xf32> to vector<1x1x48xf32>
    %378 = vector.shape_cast %377 : vector<1x1x48xf32> to vector<1x48xf32>
    %379 = arith.addf %376, %378 : vector<1x48xf32>
    %380 = vector.extract_strided_slice %372 {offsets = [0, 0], sizes = [1, 32], strides = [1, 1]} : vector<1x48xf32> to vector<1x32xf32>
    %381 = vector.extract_strided_slice %379 {offsets = [0, 0], sizes = [1, 32], strides = [1, 1]} : vector<1x48xf32> to vector<1x32xf32>
    %382 = arith.addf %380, %381 : vector<1x32xf32>
    %383 = arith.negf %382 : vector<1x32xf32>
    %384 = math.exp %383 : vector<1x32xf32>
    %cst_76 = arith.constant 1.000000e+00 : f32
    %385 = vector.broadcast %cst_76 : f32 to vector<1x32xf32>
    %386 = arith.addf %385, %384 : vector<1x32xf32>
    %387 = arith.divf %385, %386 : vector<1x32xf32>
    %388 = vector.extract_strided_slice %387 {offsets = [0, 0], sizes = [1, 16], strides = [1, 1]} : vector<1x32xf32> to vector<1x16xf32>
    %389 = vector.extract_strided_slice %387 {offsets = [0, 16], sizes = [1, 16], strides = [1, 1]} : vector<1x32xf32> to vector<1x16xf32>
    %390 = vector.extract_strided_slice %372 {offsets = [0, 32], sizes = [1, 16], strides = [1, 1]} : vector<1x48xf32> to vector<1x16xf32>
    %391 = vector.extract_strided_slice %379 {offsets = [0, 32], sizes = [1, 16], strides = [1, 1]} : vector<1x48xf32> to vector<1x16xf32>
    %392 = arith.mulf %388, %391 : vector<1x16xf32>
    %393 = arith.addf %390, %392 : vector<1x16xf32>
    %394 = math.tanh %393 : vector<1x16xf32>
    %cst_77 = arith.constant 1.000000e+00 : f32
    %395 = vector.broadcast %cst_77 : f32 to vector<1x16xf32>
    %396 = arith.subf %395, %389 : vector<1x16xf32>
    %397 = arith.mulf %396, %394 : vector<1x16xf32>
    %398 = arith.mulf %389, %335 : vector<1x16xf32>
    %399 = arith.addf %397, %398 : vector<1x16xf32>
    %c0_78 = arith.constant 0 : index
    %c5_79 = arith.constant 5 : index
    %c0_80 = arith.constant 0 : index
    %400 = vector.load %arg18[%c0_78, %c5_79, %c0_80] : memref<1x8x16xf32, #tpu.memory_space<vmem>>, vector<1x1x16xf32>
    %401 = vector.shape_cast %400 : vector<1x1x16xf32> to vector<1x16xf32>
    %402 = vector.shape_cast %370 : vector<1x16xf32> to vector<1x1x16xf32>
    tpu.vector_store %arg18[%c0_78, %c5_79, %c0_80], %402 {strides = array<i32>} : memref<1x8x16xf32, #tpu.memory_space<vmem>>, vector<1x1x16xf32>,
    %c0_81 = arith.constant 0 : index
    %c2_82 = arith.constant 2 : index
    %c0_83 = arith.constant 0 : index
    %403 = vector.load %arg19[%c0_81, %c2_82, %c0_83] : memref<1x8x16xf32, #tpu.memory_space<vmem>>, vector<1x1x16xf32>
    %404 = vector.shape_cast %403 : vector<1x1x16xf32> to vector<1x16xf32>
    %405 = vector.shape_cast %399 : vector<1x16xf32> to vector<1x1x16xf32>
    tpu.vector_store %arg19[%c0_81, %c2_82, %c0_83], %405 {strides = array<i32>} : memref<1x8x16xf32, #tpu.memory_space<vmem>>, vector<1x1x16xf32>,
    %406 = vector.extract_strided_slice %16 {offsets = [0, 6, 0], sizes = [1, 1, 48], strides = [1, 1, 1]} : vector<1x8x48xf32> to vector<1x1x48xf32>
    %407 = vector.shape_cast %406 : vector<1x1x48xf32> to vector<1x48xf32>
    %408 = arith.truncf %370 : vector<1x16xf32> to vector<1x16xbf16>
    %409 = vector.extract_strided_slice %18 {offsets = [0, 0, 0], sizes = [1, 16, 48], strides = [1, 1, 1]} : vector<2x16x48xbf16> to vector<1x16x48xbf16>
    %410 = vector.shape_cast %409 : vector<1x16x48xbf16> to vector<16x48xbf16>
    %cst_84 = arith.constant dense<0.000000e+00> : vector<1x48xf32>
    %411 = tpu.matmul %408, %410, %cst_84 {dimension_numbers = #tpu.dot_dimension_numbers<[1], [0], [0], [1], [0, 0, 1, 1], [], []>} : vector<1x16xbf16>, vector<16x48xbf16>, vector<1x48xf32> -> vector<1x48xf32>
    %412 = vector.extract_strided_slice %19 {offsets = [0, 0, 0], sizes = [1, 1, 48], strides = [1, 1, 1]} : vector<2x1x48xf32> to vector<1x1x48xf32>
    %413 = vector.shape_cast %412 : vector<1x1x48xf32> to vector<1x48xf32>
    %414 = arith.addf %411, %413 : vector<1x48xf32>
    %415 = vector.extract_strided_slice %407 {offsets = [0, 0], sizes = [1, 32], strides = [1, 1]} : vector<1x48xf32> to vector<1x32xf32>
    %416 = vector.extract_strided_slice %414 {offsets = [0, 0], sizes = [1, 32], strides = [1, 1]} : vector<1x48xf32> to vector<1x32xf32>
    %417 = arith.addf %415, %416 : vector<1x32xf32>
    %418 = arith.negf %417 : vector<1x32xf32>
    %419 = math.exp %418 : vector<1x32xf32>
    %cst_85 = arith.constant 1.000000e+00 : f32
    %420 = vector.broadcast %cst_85 : f32 to vector<1x32xf32>
    %421 = arith.addf %420, %419 : vector<1x32xf32>
    %422 = arith.divf %420, %421 : vector<1x32xf32>
    %423 = vector.extract_strided_slice %422 {offsets = [0, 0], sizes = [1, 16], strides = [1, 1]} : vector<1x32xf32> to vector<1x16xf32>
    %424 = vector.extract_strided_slice %422 {offsets = [0, 16], sizes = [1, 16], strides = [1, 1]} : vector<1x32xf32> to vector<1x16xf32>
    %425 = vector.extract_strided_slice %407 {offsets = [0, 32], sizes = [1, 16], strides = [1, 1]} : vector<1x48xf32> to vector<1x16xf32>
    %426 = vector.extract_strided_slice %414 {offsets = [0, 32], sizes = [1, 16], strides = [1, 1]} : vector<1x48xf32> to vector<1x16xf32>
    %427 = arith.mulf %423, %426 : vector<1x16xf32>
    %428 = arith.addf %425, %427 : vector<1x16xf32>
    %429 = math.tanh %428 : vector<1x16xf32>
    %cst_86 = arith.constant 1.000000e+00 : f32
    %430 = vector.broadcast %cst_86 : f32 to vector<1x16xf32>
    %431 = arith.subf %430, %424 : vector<1x16xf32>
    %432 = arith.mulf %431, %429 : vector<1x16xf32>
    %433 = arith.mulf %424, %370 : vector<1x16xf32>
    %434 = arith.addf %432, %433 : vector<1x16xf32>
    %435 = vector.extract_strided_slice %17 {offsets = [0, 1, 0], sizes = [1, 1, 48], strides = [1, 1, 1]} : vector<1x8x48xf32> to vector<1x1x48xf32>
    %436 = vector.shape_cast %435 : vector<1x1x48xf32> to vector<1x48xf32>
    %437 = arith.truncf %399 : vector<1x16xf32> to vector<1x16xbf16>
    %438 = vector.extract_strided_slice %18 {offsets = [1, 0, 0], sizes = [1, 16, 48], strides = [1, 1, 1]} : vector<2x16x48xbf16> to vector<1x16x48xbf16>
    %439 = vector.shape_cast %438 : vector<1x16x48xbf16> to vector<16x48xbf16>
    %cst_87 = arith.constant dense<0.000000e+00> : vector<1x48xf32>
    %440 = tpu.matmul %437, %439, %cst_87 {dimension_numbers = #tpu.dot_dimension_numbers<[1], [0], [0], [1], [0, 0, 1, 1], [], []>} : vector<1x16xbf16>, vector<16x48xbf16>, vector<1x48xf32> -> vector<1x48xf32>
    %441 = vector.extract_strided_slice %19 {offsets = [1, 0, 0], sizes = [1, 1, 48], strides = [1, 1, 1]} : vector<2x1x48xf32> to vector<1x1x48xf32>
    %442 = vector.shape_cast %441 : vector<1x1x48xf32> to vector<1x48xf32>
    %443 = arith.addf %440, %442 : vector<1x48xf32>
    %444 = vector.extract_strided_slice %436 {offsets = [0, 0], sizes = [1, 32], strides = [1, 1]} : vector<1x48xf32> to vector<1x32xf32>
    %445 = vector.extract_strided_slice %443 {offsets = [0, 0], sizes = [1, 32], strides = [1, 1]} : vector<1x48xf32> to vector<1x32xf32>
    %446 = arith.addf %444, %445 : vector<1x32xf32>
    %447 = arith.negf %446 : vector<1x32xf32>
    %448 = math.exp %447 : vector<1x32xf32>
    %cst_88 = arith.constant 1.000000e+00 : f32
    %449 = vector.broadcast %cst_88 : f32 to vector<1x32xf32>
    %450 = arith.addf %449, %448 : vector<1x32xf32>
    %451 = arith.divf %449, %450 : vector<1x32xf32>
    %452 = vector.extract_strided_slice %451 {offsets = [0, 0], sizes = [1, 16], strides = [1, 1]} : vector<1x32xf32> to vector<1x16xf32>
    %453 = vector.extract_strided_slice %451 {offsets = [0, 16], sizes = [1, 16], strides = [1, 1]} : vector<1x32xf32> to vector<1x16xf32>
    %454 = vector.extract_strided_slice %436 {offsets = [0, 32], sizes = [1, 16], strides = [1, 1]} : vector<1x48xf32> to vector<1x16xf32>
    %455 = vector.extract_strided_slice %443 {offsets = [0, 32], sizes = [1, 16], strides = [1, 1]} : vector<1x48xf32> to vector<1x16xf32>
    %456 = arith.mulf %452, %455 : vector<1x16xf32>
    %457 = arith.addf %454, %456 : vector<1x16xf32>
    %458 = math.tanh %457 : vector<1x16xf32>
    %cst_89 = arith.constant 1.000000e+00 : f32
    %459 = vector.broadcast %cst_89 : f32 to vector<1x16xf32>
    %460 = arith.subf %459, %453 : vector<1x16xf32>
    %461 = arith.mulf %460, %458 : vector<1x16xf32>
    %462 = arith.mulf %453, %399 : vector<1x16xf32>
    %463 = arith.addf %461, %462 : vector<1x16xf32>
    %c0_90 = arith.constant 0 : index
    %c6_91 = arith.constant 6 : index
    %c0_92 = arith.constant 0 : index
    %464 = vector.load %arg18[%c0_90, %c6_91, %c0_92] : memref<1x8x16xf32, #tpu.memory_space<vmem>>, vector<1x1x16xf32>
    %465 = vector.shape_cast %464 : vector<1x1x16xf32> to vector<1x16xf32>
    %466 = vector.shape_cast %434 : vector<1x16xf32> to vector<1x1x16xf32>
    tpu.vector_store %arg18[%c0_90, %c6_91, %c0_92], %466 {strides = array<i32>} : memref<1x8x16xf32, #tpu.memory_space<vmem>>, vector<1x1x16xf32>,
    %c0_93 = arith.constant 0 : index
    %c1_94 = arith.constant 1 : index
    %c0_95 = arith.constant 0 : index
    %467 = vector.load %arg19[%c0_93, %c1_94, %c0_95] : memref<1x8x16xf32, #tpu.memory_space<vmem>>, vector<1x1x16xf32>
    %468 = vector.shape_cast %467 : vector<1x1x16xf32> to vector<1x16xf32>
    %469 = vector.shape_cast %463 : vector<1x16xf32> to vector<1x1x16xf32>
    tpu.vector_store %arg19[%c0_93, %c1_94, %c0_95], %469 {strides = array<i32>} : memref<1x8x16xf32, #tpu.memory_space<vmem>>, vector<1x1x16xf32>,
    %470 = vector.extract_strided_slice %16 {offsets = [0, 7, 0], sizes = [1, 1, 48], strides = [1, 1, 1]} : vector<1x8x48xf32> to vector<1x1x48xf32>
    %471 = vector.shape_cast %470 : vector<1x1x48xf32> to vector<1x48xf32>
    %472 = arith.truncf %434 : vector<1x16xf32> to vector<1x16xbf16>
    %473 = vector.extract_strided_slice %18 {offsets = [0, 0, 0], sizes = [1, 16, 48], strides = [1, 1, 1]} : vector<2x16x48xbf16> to vector<1x16x48xbf16>
    %474 = vector.shape_cast %473 : vector<1x16x48xbf16> to vector<16x48xbf16>
    %cst_96 = arith.constant dense<0.000000e+00> : vector<1x48xf32>
    %475 = tpu.matmul %472, %474, %cst_96 {dimension_numbers = #tpu.dot_dimension_numbers<[1], [0], [0], [1], [0, 0, 1, 1], [], []>} : vector<1x16xbf16>, vector<16x48xbf16>, vector<1x48xf32> -> vector<1x48xf32>
    %476 = vector.extract_strided_slice %19 {offsets = [0, 0, 0], sizes = [1, 1, 48], strides = [1, 1, 1]} : vector<2x1x48xf32> to vector<1x1x48xf32>
    %477 = vector.shape_cast %476 : vector<1x1x48xf32> to vector<1x48xf32>
    %478 = arith.addf %475, %477 : vector<1x48xf32>
    %479 = vector.extract_strided_slice %471 {offsets = [0, 0], sizes = [1, 32], strides = [1, 1]} : vector<1x48xf32> to vector<1x32xf32>
    %480 = vector.extract_strided_slice %478 {offsets = [0, 0], sizes = [1, 32], strides = [1, 1]} : vector<1x48xf32> to vector<1x32xf32>
    %481 = arith.addf %479, %480 : vector<1x32xf32>
    %482 = arith.negf %481 : vector<1x32xf32>
    %483 = math.exp %482 : vector<1x32xf32>
    %cst_97 = arith.constant 1.000000e+00 : f32
    %484 = vector.broadcast %cst_97 : f32 to vector<1x32xf32>
    %485 = arith.addf %484, %483 : vector<1x32xf32>
    %486 = arith.divf %484, %485 : vector<1x32xf32>
    %487 = vector.extract_strided_slice %486 {offsets = [0, 0], sizes = [1, 16], strides = [1, 1]} : vector<1x32xf32> to vector<1x16xf32>
    %488 = vector.extract_strided_slice %486 {offsets = [0, 16], sizes = [1, 16], strides = [1, 1]} : vector<1x32xf32> to vector<1x16xf32>
    %489 = vector.extract_strided_slice %471 {offsets = [0, 32], sizes = [1, 16], strides = [1, 1]} : vector<1x48xf32> to vector<1x16xf32>
    %490 = vector.extract_strided_slice %478 {offsets = [0, 32], sizes = [1, 16], strides = [1, 1]} : vector<1x48xf32> to vector<1x16xf32>
    %491 = arith.mulf %487, %490 : vector<1x16xf32>
    %492 = arith.addf %489, %491 : vector<1x16xf32>
    %493 = math.tanh %492 : vector<1x16xf32>
    %cst_98 = arith.constant 1.000000e+00 : f32
    %494 = vector.broadcast %cst_98 : f32 to vector<1x16xf32>
    %495 = arith.subf %494, %488 : vector<1x16xf32>
    %496 = arith.mulf %495, %493 : vector<1x16xf32>
    %497 = arith.mulf %488, %434 : vector<1x16xf32>
    %498 = arith.addf %496, %497 : vector<1x16xf32>
    %499 = vector.extract_strided_slice %17 {offsets = [0, 0, 0], sizes = [1, 1, 48], strides = [1, 1, 1]} : vector<1x8x48xf32> to vector<1x1x48xf32>
    %500 = vector.shape_cast %499 : vector<1x1x48xf32> to vector<1x48xf32>
    %501 = arith.truncf %463 : vector<1x16xf32> to vector<1x16xbf16>
    %502 = vector.extract_strided_slice %18 {offsets = [1, 0, 0], sizes = [1, 16, 48], strides = [1, 1, 1]} : vector<2x16x48xbf16> to vector<1x16x48xbf16>
    %503 = vector.shape_cast %502 : vector<1x16x48xbf16> to vector<16x48xbf16>
    %cst_99 = arith.constant dense<0.000000e+00> : vector<1x48xf32>
    %504 = tpu.matmul %501, %503, %cst_99 {dimension_numbers = #tpu.dot_dimension_numbers<[1], [0], [0], [1], [0, 0, 1, 1], [], []>} : vector<1x16xbf16>, vector<16x48xbf16>, vector<1x48xf32> -> vector<1x48xf32>
    %505 = vector.extract_strided_slice %19 {offsets = [1, 0, 0], sizes = [1, 1, 48], strides = [1, 1, 1]} : vector<2x1x48xf32> to vector<1x1x48xf32>
    %506 = vector.shape_cast %505 : vector<1x1x48xf32> to vector<1x48xf32>
    %507 = arith.addf %504, %506 : vector<1x48xf32>
    %508 = vector.extract_strided_slice %500 {offsets = [0, 0], sizes = [1, 32], strides = [1, 1]} : vector<1x48xf32> to vector<1x32xf32>
    %509 = vector.extract_strided_slice %507 {offsets = [0, 0], sizes = [1, 32], strides = [1, 1]} : vector<1x48xf32> to vector<1x32xf32>
    %510 = arith.addf %508, %509 : vector<1x32xf32>
    %511 = arith.negf %510 : vector<1x32xf32>
    %512 = math.exp %511 : vector<1x32xf32>
    %cst_100 = arith.constant 1.000000e+00 : f32
    %513 = vector.broadcast %cst_100 : f32 to vector<1x32xf32>
    %514 = arith.addf %513, %512 : vector<1x32xf32>
    %515 = arith.divf %513, %514 : vector<1x32xf32>
    %516 = vector.extract_strided_slice %515 {offsets = [0, 0], sizes = [1, 16], strides = [1, 1]} : vector<1x32xf32> to vector<1x16xf32>
    %517 = vector.extract_strided_slice %515 {offsets = [0, 16], sizes = [1, 16], strides = [1, 1]} : vector<1x32xf32> to vector<1x16xf32>
    %518 = vector.extract_strided_slice %500 {offsets = [0, 32], sizes = [1, 16], strides = [1, 1]} : vector<1x48xf32> to vector<1x16xf32>
    %519 = vector.extract_strided_slice %507 {offsets = [0, 32], sizes = [1, 16], strides = [1, 1]} : vector<1x48xf32> to vector<1x16xf32>
    %520 = arith.mulf %516, %519 : vector<1x16xf32>
    %521 = arith.addf %518, %520 : vector<1x16xf32>
    %522 = math.tanh %521 : vector<1x16xf32>
    %cst_101 = arith.constant 1.000000e+00 : f32
    %523 = vector.broadcast %cst_101 : f32 to vector<1x16xf32>
    %524 = arith.subf %523, %517 : vector<1x16xf32>
    %525 = arith.mulf %524, %522 : vector<1x16xf32>
    %526 = arith.mulf %517, %463 : vector<1x16xf32>
    %527 = arith.addf %525, %526 : vector<1x16xf32>
    %c0_102 = arith.constant 0 : index
    %c7_103 = arith.constant 7 : index
    %c0_104 = arith.constant 0 : index
    %528 = vector.load %arg18[%c0_102, %c7_103, %c0_104] : memref<1x8x16xf32, #tpu.memory_space<vmem>>, vector<1x1x16xf32>
    %529 = vector.shape_cast %528 : vector<1x1x16xf32> to vector<1x16xf32>
    %530 = vector.shape_cast %498 : vector<1x16xf32> to vector<1x1x16xf32>
    tpu.vector_store %arg18[%c0_102, %c7_103, %c0_104], %530 {strides = array<i32>} : memref<1x8x16xf32, #tpu.memory_space<vmem>>, vector<1x1x16xf32>,
    %c0_105 = arith.constant 0 : index
    %c0_106 = arith.constant 0 : index
    %c0_107 = arith.constant 0 : index
    %531 = vector.load %arg19[%c0_105, %c0_106, %c0_107] : memref<1x8x16xf32, #tpu.memory_space<vmem>>, vector<1x1x16xf32>
    %532 = vector.shape_cast %531 : vector<1x1x16xf32> to vector<1x16xf32>
    %533 = vector.shape_cast %527 : vector<1x16xf32> to vector<1x1x16xf32>
    tpu.vector_store %arg19[%c0_105, %c0_106, %c0_107], %533 {strides = array<i32>} : memref<1x8x16xf32, #tpu.memory_space<vmem>>, vector<1x1x16xf32>,
    %c0_108 = arith.constant 0 : index
    %c0_109 = arith.constant 0 : index
    %c0_110 = arith.constant 0 : index
    %534 = vector.load %arg18[%c0_108, %c0_109, %c0_110] : memref<1x8x16xf32, #tpu.memory_space<vmem>>, vector<1x8x16xf32>
    %c0_111 = arith.constant 0 : index
    %c0_112 = arith.constant 0 : index
    %c0_113 = arith.constant 0 : index
    %535 = vector.load %arg19[%c0_111, %c0_112, %c0_113] : memref<1x8x16xf32, #tpu.memory_space<vmem>>, vector<1x8x16xf32>
    %536 = tpu.concatenate %534, %535 in 2 : vector<1x8x16xf32>, vector<1x8x16xf32> -> vector<1x8x32xf32>
    %537 = vector.shape_cast %536 : vector<1x8x32xf32> to vector<8x32xf32>
    %538 = arith.truncf %536 : vector<1x8x32xf32> to vector<1x8x32xbf16>
    %c0_114 = arith.constant 0 : index
    %c0_115 = arith.constant 0 : index
    %539 = vector.load %arg12[%c0_114, %c0_115] : memref<1x32xf32, #tpu.memory_space<vmem>>, vector<1x32xf32>
    %540 = vector.shape_cast %539 : vector<1x32xf32> to vector<1x1x32xf32>
    %541 = vector.broadcast %540 : vector<1x1x32xf32> to vector<1x8x32xf32>
    %542 = arith.mulf %536, %541 : vector<1x8x32xf32>
    %c0_116 = arith.constant 0 : index
    %c0_117 = arith.constant 0 : index
    %543 = vector.load %arg11[%c0_116, %c0_117] : memref<1x32xf32, #tpu.memory_space<vmem>>, vector<1x32xf32>
    %544 = vector.shape_cast %543 : vector<1x32xf32> to vector<1x1x32xf32>
    %545 = vector.broadcast %544 : vector<1x1x32xf32> to vector<1x8x32xf32>
    %546 = arith.addf %542, %545 : vector<1x8x32xf32>
    %547 = arith.truncf %546 : vector<1x8x32xf32> to vector<1x8x32xbf16>
    "tpu.trace_start"() <{level = 10 : i32, message = "bti,bsi->bts"}> : () -> ()
    %cst_118 = arith.constant dense<0.000000e+00> : vector<1x8x8xf32>
    %548 = tpu.matmul %547, %538, %cst_118 {dimension_numbers = #tpu.dot_dimension_numbers<[2], [2], [1], [1], [0, 0, 0, 1, 1, 1], [0], [0]>} : vector<1x8x32xbf16>, vector<1x8x32xbf16>, vector<1x8x8xf32> -> vector<1x8x8xf32>
    "tpu.trace_stop"() : () -> ()
    %c0_119 = arith.constant 0 : index
    %c0_120 = arith.constant 0 : index
    %549 = vector.load %arg10[%c0_119, %c0_120] : memref<1x32xf32, #tpu.memory_space<vmem>>, vector<1x32xf32>
    %550 = vector.shape_cast %549 : vector<1x32xf32> to vector<1x1x32xf32>
    %551 = vector.broadcast %550 : vector<1x1x32xf32> to vector<1x8x32xf32>
    %552 = arith.mulf %536, %551 : vector<1x8x32xf32>
    %cst_121 = arith.constant dense<0.000000e+00> : vector<1x8xf32>
    %553 = vector.multi_reduction <add>, %552, %cst_121 [2] : vector<1x8x32xf32> to vector<1x8xf32>
    %554 = vector.shape_cast %553 : vector<1x8xf32> to vector<1x8x1xf32>
    %555 = vector.broadcast %554 : vector<1x8x1xf32> to vector<1x8x8xf32>
    %556 = arith.addf %548, %555 : vector<1x8x8xf32>
    %557 = tpu.iota {dimensions = array<i32: 0>} : vector<8x8xi32>
    %558 = tpu.iota {dimensions = array<i32: 1>} : vector<8x8xi32>
    %559 = arith.cmpi ne, %557, %558 : vector<8x8xi32>
    %560 = vector.shape_cast %559 : vector<8x8xi1> to vector<1x8x8xi1>
    %c0_122 = arith.constant 0 : index
    %c0_123 = arith.constant 0 : index
    %c0_124 = arith.constant 0 : index
    %561 = vector.load %arg2[%c0_122, %c0_123, %c0_124] : memref<1x8x1xf32, #tpu.memory_space<vmem>>, vector<1x8x1xf32>
    %cst_125 = arith.constant 5.000000e-01 : f32
    %562 = vector.broadcast %cst_125 : f32 to vector<1x8x1xf32>
    %563 = arith.cmpf ogt, %561, %562 : vector<1x8x1xf32>
    %c0_126 = arith.constant 0 : index
    %c0_127 = arith.constant 0 : index
    %c0_128 = arith.constant 0 : index
    %564 = vector.load %arg3[%c0_126, %c0_127, %c0_128] : memref<1x1x8xf32, #tpu.memory_space<vmem>>, vector<1x1x8xf32>
    %cst_129 = arith.constant 5.000000e-01 : f32
    %565 = vector.broadcast %cst_129 : f32 to vector<1x1x8xf32>
    %566 = arith.cmpf ogt, %564, %565 : vector<1x1x8xf32>
    %567 = vector.broadcast %563 : vector<1x8x1xi1> to vector<1x8x8xi1>
    %568 = vector.broadcast %566 : vector<1x1x8xi1> to vector<1x8x8xi1>
    %569 = arith.andi %567, %568 : vector<1x8x8xi1>
    %570 = arith.andi %569, %560 : vector<1x8x8xi1>
    %cst_130 = arith.constant -1.000000e+30 : f32
    %571 = vector.broadcast %cst_130 : f32 to vector<1x8x8xf32>
    %572 = arith.select %570, %556, %571 : vector<1x8x8xi1>, vector<1x8x8xf32>
    %cst_131 = arith.constant dense<0xFF800000> : vector<1x8xf32>
    %573 = vector.multi_reduction <maximumf>, %572, %cst_131 [2] : vector<1x8x8xf32> to vector<1x8xf32>
    %574 = vector.shape_cast %573 : vector<1x8xf32> to vector<1x8x1xf32>
    %575 = vector.broadcast %574 : vector<1x8x1xf32> to vector<1x8x8xf32>
    %576 = arith.subf %572, %575 : vector<1x8x8xf32>
    %577 = math.exp %576 : vector<1x8x8xf32>
    %cst_132 = arith.constant dense<0.000000e+00> : vector<1x8xf32>
    %578 = vector.multi_reduction <add>, %577, %cst_132 [2] : vector<1x8x8xf32> to vector<1x8xf32>
    %579 = vector.shape_cast %578 : vector<1x8xf32> to vector<1x8x1xf32>
    %580 = tpu.reciprocal %579 {approx = true} : vector<1x8x1xf32> -> vector<1x8x1xf32>
    %581 = vector.broadcast %580 : vector<1x8x1xf32> to vector<1x8x8xf32>
    %582 = arith.mulf %577, %581 : vector<1x8x8xf32>
    %583 = arith.truncf %582 : vector<1x8x8xf32> to vector<1x8x8xbf16>
    "tpu.trace_start"() <{level = 10 : i32, message = "bts,bsi->bti"}> : () -> ()
    %cst_133 = arith.constant dense<0.000000e+00> : vector<1x8x32xf32>
    %584 = tpu.matmul %583, %538, %cst_133 {dimension_numbers = #tpu.dot_dimension_numbers<[2], [1], [1], [2], [0, 0, 0, 1, 1, 2], [0], [0]>} : vector<1x8x8xbf16>, vector<1x8x32xbf16>, vector<1x8x32xf32> -> vector<1x8x32xf32>
    "tpu.trace_stop"() : () -> ()
    %585 = vector.shape_cast %584 : vector<1x8x32xf32> to vector<8x32xf32>
    %586 = arith.mulf %537, %585 : vector<8x32xf32>
    %587 = arith.truncf %585 : vector<8x32xf32> to vector<8x32xbf16>
    %c0_134 = arith.constant 0 : index
    %c0_135 = arith.constant 0 : index
    %588 = vector.load %arg13[%c0_134, %c0_135] : memref<32x128xbf16, #tpu.memory_space<vmem>>, vector<32x128xbf16>
    %cst_136 = arith.constant dense<0.000000e+00> : vector<8x128xf32>
    %589 = tpu.matmul %587, %588, %cst_136 {dimension_numbers = #tpu.dot_dimension_numbers<[1], [0], [0], [1], [0, 0, 1, 1], [], []>} : vector<8x32xbf16>, vector<32x128xbf16>, vector<8x128xf32> -> vector<8x128xf32>
    %590 = arith.truncf %537 : vector<8x32xf32> to vector<8x32xbf16>
    %c0_137 = arith.constant 0 : index
    %c0_138 = arith.constant 0 : index
    %591 = vector.load %arg14[%c0_137, %c0_138] : memref<32x128xbf16, #tpu.memory_space<vmem>>, vector<32x128xbf16>
    %cst_139 = arith.constant dense<0.000000e+00> : vector<8x128xf32>
    %592 = tpu.matmul %590, %591, %cst_139 {dimension_numbers = #tpu.dot_dimension_numbers<[1], [0], [0], [1], [0, 0, 1, 1], [], []>} : vector<8x32xbf16>, vector<32x128xbf16>, vector<8x128xf32> -> vector<8x128xf32>
    %593 = arith.addf %589, %592 : vector<8x128xf32>
    %594 = arith.truncf %586 : vector<8x32xf32> to vector<8x32xbf16>
    %c0_140 = arith.constant 0 : index
    %c0_141 = arith.constant 0 : index
    %595 = vector.load %arg15[%c0_140, %c0_141] : memref<32x128xbf16, #tpu.memory_space<vmem>>, vector<32x128xbf16>
    %cst_142 = arith.constant dense<0.000000e+00> : vector<8x128xf32>
    %596 = tpu.matmul %594, %595, %cst_142 {dimension_numbers = #tpu.dot_dimension_numbers<[1], [0], [0], [1], [0, 0, 1, 1], [], []>} : vector<8x32xbf16>, vector<32x128xbf16>, vector<8x128xf32> -> vector<8x128xf32>
    %597 = arith.addf %593, %596 : vector<8x128xf32>
    %c0_143 = arith.constant 0 : index
    %c0_144 = arith.constant 0 : index
    %598 = vector.load %arg16[%c0_143, %c0_144] : memref<1x128xf32, #tpu.memory_space<vmem>>, vector<1x128xf32>
    %599 = vector.broadcast %598 : vector<1x128xf32> to vector<8x128xf32>
    %600 = arith.addf %597, %599 : vector<8x128xf32>
    %cst_145 = arith.constant 0.000000e+00 : f32
    %601 = vector.broadcast %cst_145 : f32 to vector<8x128xf32>
    %602 = arith.maximumf %600, %601 : vector<8x128xf32>
    %c0_146 = arith.constant 0 : index
    %c0_147 = arith.constant 0 : index
    %603 = vector.load %arg1[%c0_146, %c0_147] : memref<8x128xf32, #tpu.memory_space<vmem>>, vector<8x128xf32>
    %604 = arith.addf %603, %602 : vector<8x128xf32>
    %c0_148 = arith.constant 0 : index
    %c0_149 = arith.constant 0 : index
    %605 = vector.load %arg17[%c0_148, %c0_149] : memref<8x128xf32, #tpu.memory_space<vmem>>, vector<8x128xf32>
    tpu.vector_store %arg17[%c0_148, %c0_149], %604 {strides = array<i32>} : memref<8x128xf32, #tpu.memory_space<vmem>>, vector<8x128xf32>,
    return
  }
  func.func @transform_0(%arg0: i32) -> (i32, i32) {
    %c0_i32 = arith.constant 0 : i32
    %c0_i32_0 = arith.constant 0 : i32
    return %arg0, %c0_i32 : i32, i32
  }
  func.func @transform_1(%arg0: i32) -> (i32, i32, i32) {
    %c0_i32 = arith.constant 0 : i32
    %c0_i32_0 = arith.constant 0 : i32
    %c0_i32_1 = arith.constant 0 : i32
    return %arg0, %c0_i32, %c0_i32_0 : i32, i32, i32
  }
  func.func @transform_2(%arg0: i32) -> (i32, i32, i32) {
    %c0_i32 = arith.constant 0 : i32
    %c0_i32_0 = arith.constant 0 : i32
    %c0_i32_1 = arith.constant 0 : i32
    return %arg0, %c0_i32, %c0_i32_0 : i32, i32, i32
  }
  func.func @transform_3(%arg0: i32) -> (i32, i32) {
    %c0_i32 = arith.constant 0 : i32
    %c0_i32_0 = arith.constant 0 : i32
    %c0_i32_1 = arith.constant 0 : i32
    return %c0_i32, %c0_i32_0 : i32, i32
  }
  func.func @transform_4(%arg0: i32) -> (i32, i32) {
    %c0_i32 = arith.constant 0 : i32
    %c0_i32_0 = arith.constant 0 : i32
    %c0_i32_1 = arith.constant 0 : i32
    return %c0_i32, %c0_i32_0 : i32, i32
  }
  func.func @transform_5(%arg0: i32) -> (i32, i32) {
    %c0_i32 = arith.constant 0 : i32
    %c0_i32_0 = arith.constant 0 : i32
    %c0_i32_1 = arith.constant 0 : i32
    return %c0_i32, %c0_i32_0 : i32, i32
  }
  func.func @transform_6(%arg0: i32) -> (i32, i32) {
    %c0_i32 = arith.constant 0 : i32
    %c0_i32_0 = arith.constant 0 : i32
    %c0_i32_1 = arith.constant 0 : i32
    return %c0_i32, %c0_i32_0 : i32, i32
  }
  func.func @transform_7(%arg0: i32) -> (i32, i32, i32) {
    %c0_i32 = arith.constant 0 : i32
    %c0_i32_0 = arith.constant 0 : i32
    %c0_i32_1 = arith.constant 0 : i32
    %c0_i32_2 = arith.constant 0 : i32
    return %c0_i32, %c0_i32_0, %c0_i32_1 : i32, i32, i32
  }
  func.func @transform_8(%arg0: i32) -> (i32, i32, i32) {
    %c0_i32 = arith.constant 0 : i32
    %c0_i32_0 = arith.constant 0 : i32
    %c0_i32_1 = arith.constant 0 : i32
    %c0_i32_2 = arith.constant 0 : i32
    return %c0_i32, %c0_i32_0, %c0_i32_1 : i32, i32, i32
  }
  func.func @transform_9(%arg0: i32) -> (i32, i32) {
    %c0_i32 = arith.constant 0 : i32
    %c0_i32_0 = arith.constant 0 : i32
    %c0_i32_1 = arith.constant 0 : i32
    return %c0_i32, %c0_i32_0 : i32, i32
  }
  func.func @transform_10(%arg0: i32) -> (i32, i32) {
    %c0_i32 = arith.constant 0 : i32
    %c0_i32_0 = arith.constant 0 : i32
    %c0_i32_1 = arith.constant 0 : i32
    return %c0_i32, %c0_i32_0 : i32, i32
  }
  func.func @transform_11(%arg0: i32) -> (i32, i32) {
    %c0_i32 = arith.constant 0 : i32
    %c0_i32_0 = arith.constant 0 : i32
    %c0_i32_1 = arith.constant 0 : i32
    return %c0_i32, %c0_i32_0 : i32, i32
  }
  func.func @transform_12(%arg0: i32) -> (i32, i32) {
    %c0_i32 = arith.constant 0 : i32
    %c0_i32_0 = arith.constant 0 : i32
    %c0_i32_1 = arith.constant 0 : i32
    return %c0_i32, %c0_i32_0 : i32, i32
  }
  func.func @transform_13(%arg0: i32) -> (i32, i32) {
    %c0_i32 = arith.constant 0 : i32
    %c0_i32_0 = arith.constant 0 : i32
    %c0_i32_1 = arith.constant 0 : i32
    return %c0_i32, %c0_i32_0 : i32, i32
  }
  func.func @transform_14(%arg0: i32) -> (i32, i32) {
    %c0_i32 = arith.constant 0 : i32
    %c0_i32_0 = arith.constant 0 : i32
    %c0_i32_1 = arith.constant 0 : i32
    return %c0_i32, %c0_i32_0 : i32, i32
  }
  func.func @transform_15(%arg0: i32) -> (i32, i32) {
    %c0_i32 = arith.constant 0 : i32
    %c0_i32_0 = arith.constant 0 : i32
    %c0_i32_1 = arith.constant 0 : i32
    return %c0_i32, %c0_i32_0 : i32, i32
  }
  func.func @transform_16(%arg0: i32) -> (i32, i32) {
    %c0_i32 = arith.constant 0 : i32
    %c0_i32_0 = arith.constant 0 : i32
    return %arg0, %c0_i32 : i32, i32
  }
}

</mosaic_0001>

<llo_original>
// kernel: tpu_custom_call.1
$region0: #{tpu_custom_call.1}
  #allocation0 [shape = 'u32[]', space=smem, size = 0x4, offset = 0x4, fixed_abs, tag = 'smem constant byte address 0x4 - core index']
  #allocation1 [shape = 'u32[144,128]{1,0:T(1,128)}', space=vmem, size = 0x12000, scoped, tag = 'internal scratch']
  #allocation2 [shape = 'f32[1,8,16]{2,1,0:T(8,128)}', space=vmem, size = 0x1000, scoped, tag = 'scratch operand']
  #allocation3 [shape = 'f32[1,8,16]{2,1,0:T(8,128)}', space=vmem, size = 0x1000, scoped, tag = 'scratch operand']
  %s0 = inlined_call_operand.vmem [shape: f32[16,128], index: 0, kind: input, shape index: {}]
  %s1 = inlined_call_operand.vmem [shape: f32[2,8,1], index: 1, kind: input, shape index: {}]
  %s2 = inlined_call_operand.hbm [shape: f32[2,1,8], index: 2, kind: input, shape index: {}]
  %s3 = inlined_call_operand.vmem [shape: bf16[128,32], index: 3, kind: input, shape index: {}]
  %s4 = inlined_call_operand.hbm [shape: f32[1,32], index: 4, kind: input, shape index: {}]
  %s5 = inlined_call_operand.vmem [shape: bf16[32,96], index: 5, kind: input, shape index: {}]
  %s6 = inlined_call_operand.hbm [shape: f32[1,96], index: 6, kind: input, shape index: {}]
  %s7 = inlined_call_operand.vmem [shape: bf16[2,16,48], index: 7, kind: input, shape index: {}]
  %s8 = inlined_call_operand.hbm [shape: f32[2,1,48], index: 8, kind: input, shape index: {}]
  %s9 = inlined_call_operand.vmem [shape: f32[1,32], index: 9, kind: input, shape index: {}]
  %s10 = inlined_call_operand.vmem [shape: f32[1,32], index: 10, kind: input, shape index: {}]
  %s11 = inlined_call_operand.vmem [shape: f32[1,32], index: 11, kind: input, shape index: {}]
  %s12 = inlined_call_operand.vmem [shape: bf16[32,128], index: 12, kind: input, shape index: {}]
  %s13 = inlined_call_operand.vmem [shape: bf16[32,128], index: 13, kind: input, shape index: {}]
  %s14 = inlined_call_operand.vmem [shape: bf16[32,128], index: 14, kind: input, shape index: {}]
  %s15 = inlined_call_operand.vmem [shape: f32[1,128], index: 15, kind: input, shape index: {}]
  %s16 = inlined_call_operand.hbm [shape: f32[16,128], index: 16, kind: output, shape index: {}]
  %s17 = sld [smem:[#allocation0]]
  $region113: #{tpu_custom_call.1} parent=0
    _
  %s19 = ssub.s32 1, %s17
  %s20 = scalar_select 0, %s19, %s17
  $region1: #{tpu_custom_call.1} parent=0
    #allocation4 [shape = 'u8[1024]{0}', space=vmem, size = 0x400, scoped, tag = 'input window, operand 2']
    #allocation5 [shape = 's32[2]{0}', space=sflag, size = 0x8, scoped, tag = 'scoped memory for tpu_custom_call.1']
    #allocation6 [shape = 's32[2]{0}', space=sflag, size = 0x8, scoped, tag = 'scoped memory for tpu_custom_call.1']
    #allocation7 [shape = 'u8[512]{0}', space=vmem, size = 0x400, scoped, tag = 'input window, operand 4, single buffered']
    #allocation8 [shape = 's32[1]{0}', space=sflag, size = 0x4, scoped, tag = 'scoped memory for tpu_custom_call.1']
    #allocation9 [shape = 'u8[512]{0}', space=vmem, size = 0x400, scoped, tag = 'input window, operand 6, single buffered']
    #allocation10 [shape = 'u8[1024]{0}', space=vmem, size = 0x400, scoped, tag = 'input window, operand 8, single buffered']
    #allocation11 [shape = 's32[1]{0}', space=sflag, size = 0x4, scoped, tag = 'scoped memory for tpu_custom_call.1']
    #allocation12 [shape = 'u8[8192]{0}', space=vmem, size = 0x2000, scoped, tag = 'output window, operand 0']
    %21 = vsyncpa [#allocation5], 0
    %s22 = scalar_lea.sflag [#allocation5], 1
    %23 = vsyncpa %s22, 0
    %24 = vsyncpa [#allocation8], 0
    %25 = vsyncpa [#allocation11], 0
    %26 = vsyncpa [#allocation6], 0
    %s27 = scalar_lea.sflag [#allocation6], 1
    %28 = vsyncpa %s27, 0
    loop: start=0, step=1, limit=4
    $region2: #{tpu_custom_call.1} parent=1 // loop_pre_header
      _
    $region3: #{tpu_custom_call.1} parent=1 // loop_header
      %s30 = sphi 0, %s34
      %p31 = scmp.ge.s32.totalorder %s30, 4
      %s40 = sphi 0, %s42
      %s43 = sphi 0, %s40
      %s44 = sphi 0, %s43
      %s60 = sphi 0, %s44
      %s66 = sphi 0, %s68
      %s69 = sphi 0, %s66
      %s70 = sphi 0, %s69
      %s86 = sphi 0, %s70
      %s92 = sphi 0, %s94
      %s95 = sphi 0, %s92
      %s96 = sphi 0, %s95
      %s112 = sphi 0, %s96
      %s116 = sphi 0, %s116
      %s118 = sphi 0, %s116
      %s119 = sphi 0, %s118
      %s133 = sphi 0, %s119
      %s137 = sphi 0, %s137
      %s139 = sphi 0, %s137
      %s140 = sphi 0, %s139
      %s154 = sphi 0, %s140
      %s158 = sphi 0, %s158
      %s160 = sphi 0, %s158
      %s161 = sphi 0, %s160
      %s175 = sphi 0, %s161
      %s179 = sphi 0, %s179
      %s181 = sphi 0, %s179
      %s182 = sphi 0, %s181
      %s196 = sphi 0, %s182
      %s200 = sphi 0, %s200
      %s202 = sphi 0, %s200
      %s203 = sphi 0, %s202
      %s217 = sphi 0, %s203
      %s221 = sphi 0, %s221
      %s223 = sphi 0, %s221
      %s224 = sphi 0, %s223
      %s238 = sphi 0, %s224
      %s242 = sphi 0, %s242
      %s244 = sphi 0, %s242
      %s245 = sphi 0, %s244
      %s259 = sphi 0, %s245
      %s263 = sphi 0, %s263
      %s265 = sphi 0, %s263
      %s266 = sphi 0, %s265
      %s280 = sphi 0, %s266
      %s284 = sphi 0, %s284
      %s286 = sphi 0, %s284
      %s287 = sphi 0, %s286
      %s301 = sphi 0, %s287
      %s305 = sphi 0, %s305
      %s307 = sphi 0, %s305
      %s308 = sphi 0, %s307
      %s322 = sphi 0, %s308
      %s326 = sphi 0, %s326
      %s328 = sphi 0, %s326
      %s329 = sphi 0, %s328
      %s343 = sphi 0, %s329
      %s347 = sphi 0, %s347
      %s349 = sphi 0, %s347
      %s350 = sphi 0, %s349
      %s364 = sphi 0, %s350
      %s368 = sphi 0, %s368
      %s370 = sphi 0, %s368
      %s371 = sphi 0, %s370
      %s385 = sphi 0, %s371
      %s391 = sphi 0, %s393
      %s394 = sphi 0, %s391
      %s395 = sphi 0, %s394
      %s411 = sphi 0, %s395
    $region4: #{tpu_custom_call.1} parent=1 // loop_header_branch
      %33 = sbr.rel (%p31) target = $region8
    $region5: #{tpu_custom_call.1} parent=1 // loop_body
      %s35 = ssub.s32 %s30, 1
      %s36 = ssub.s32 %s30, 2
      %s37 = sadd.s32 %s30, 1
      %s38 = ssub.s32 %s30, %s37
      %p39 = scmp.eq.s32.totalorder %s38, 0
      %s41 = sadd.s32 %s40, 1
      %s42 = scalar_select %p39, %s40, %s41
      %p45 = pneg %p39
      %p46 = scmp.eq.s32.totalorder %s30, 1
      %p47 = por %p45, %p46
      %p48 = scmp.ne.s32.totalorder %s40, %s43
      %p49 = scmp.eq.s32.totalorder %s30, 0
      %p50 = por %p48, %p49
      %p51 = scmp.ne.s32.totalorder %s40, %s43
      %p52 = scmp.eq.s32.totalorder %s35, 1
      %p53 = por %p51, %p52
      %p54 = scmp.ne.s32.totalorder %s43, %s44
      %p55 = scmp.eq.s32.totalorder %s35, 0
      %p56 = por %p54, %p55
      %p57 = scmp.ne.s32.totalorder %s43, %s44
      %p58 = scmp.eq.s32.totalorder %s36, 1
      %p59 = por %p57, %p58
      %p61 = scmp.ne.s32.totalorder %s44, %s60
      %p62 = scmp.eq.s32.totalorder %s36, 0
      %p63 = por %p61, %p62
      %s64 = ssub.s32 %s30, %s37
      %p65 = scmp.eq.s32.totalorder %s64, 0
      %s67 = sadd.s32 %s66, 1
      %s68 = scalar_select %p65, %s66, %s67
      %p71 = pneg %p65
      %p72 = scmp.eq.s32.totalorder %s30, 1
      %p73 = por %p71, %p72
      %p74 = scmp.ne.s32.totalorder %s66, %s69
      %p75 = scmp.eq.s32.totalorder %s30, 0
      %p76 = por %p74, %p75
      %p77 = scmp.ne.s32.totalorder %s66, %s69
      %p78 = scmp.eq.s32.totalorder %s35, 1
      %p79 = por %p77, %p78
      %p80 = scmp.ne.s32.totalorder %s69, %s70
      %p81 = scmp.eq.s32.totalorder %s35, 0
      %p82 = por %p80, %p81
      %p83 = scmp.ne.s32.totalorder %s69, %s70
      %p84 = scmp.eq.s32.totalorder %s36, 1
      %p85 = por %p83, %p84
      %p87 = scmp.ne.s32.totalorder %s70, %s86
      %p88 = scmp.eq.s32.totalorder %s36, 0
      %p89 = por %p87, %p88
      %s90 = ssub.s32 %s30, %s37
      %p91 = scmp.eq.s32.totalorder %s90, 0
      %s93 = sadd.s32 %s92, 1
      %s94 = scalar_select %p91, %s92, %s93
      %p97 = pneg %p91
      %p98 = scmp.eq.s32.totalorder %s30, 1
      %p99 = por %p97, %p98
      %p100 = scmp.ne.s32.totalorder %s92, %s95
      %p101 = scmp.eq.s32.totalorder %s30, 0
      %p102 = por %p100, %p101
      %p103 = scmp.ne.s32.totalorder %s92, %s95
      %p104 = scmp.eq.s32.totalorder %s35, 1
      %p105 = por %p103, %p104
      %p106 = scmp.ne.s32.totalorder %s95, %s96
      %p107 = scmp.eq.s32.totalorder %s35, 0
      %p108 = por %p106, %p107
      %p109 = scmp.ne.s32.totalorder %s95, %s96
      %p110 = scmp.eq.s32.totalorder %s36, 1
      %p111 = por %p109, %p110
      %p113 = scmp.ne.s32.totalorder %s96, %s112
      %p114 = scmp.eq.s32.totalorder %s36, 0
      %p115 = por %p113, %p114
      %s117 = sadd.s32 %s116, 1
      %p120 = scmp.eq.s32.totalorder %s30, 1
      %p121 = scmp.ne.s32.totalorder %s116, %s118
      %p122 = scmp.eq.s32.totalorder %s30, 0
      %p123 = por %p121, %p122
      %p124 = scmp.ne.s32.totalorder %s116, %s118
      %p125 = scmp.eq.s32.totalorder %s35, 1
      %p126 = por %p124, %p125
      %p127 = scmp.ne.s32.totalorder %s118, %s119
      %p128 = scmp.eq.s32.totalorder %s35, 0
      %p129 = por %p127, %p128
      %p130 = scmp.ne.s32.totalorder %s118, %s119
      %p131 = scmp.eq.s32.totalorder %s36, 1
      %p132 = por %p130, %p131
      %p134 = scmp.ne.s32.totalorder %s119, %s133
      %p135 = scmp.eq.s32.totalorder %s36, 0
      %p136 = por %p134, %p135
      %s138 = sadd.s32 %s137, 1
      %p141 = scmp.eq.s32.totalorder %s30, 1
      %p142 = scmp.ne.s32.totalorder %s137, %s139
      %p143 = scmp.eq.s32.totalorder %s30, 0
      %p144 = por %p142, %p143
      %p145 = scmp.ne.s32.totalorder %s137, %s139
      %p146 = scmp.eq.s32.totalorder %s35, 1
      %p147 = por %p145, %p146
      %p148 = scmp.ne.s32.totalorder %s139, %s140
      %p149 = scmp.eq.s32.totalorder %s35, 0
      %p150 = por %p148, %p149
      %p151 = scmp.ne.s32.totalorder %s139, %s140
      %p152 = scmp.eq.s32.totalorder %s36, 1
      %p153 = por %p151, %p152
      %p155 = scmp.ne.s32.totalorder %s140, %s154
      %p156 = scmp.eq.s32.totalorder %s36, 0
      %p157 = por %p155, %p156
      %s159 = sadd.s32 %s158, 1
      %p162 = scmp.eq.s32.totalorder %s30, 1
      %p163 = scmp.ne.s32.totalorder %s158, %s160
      %p164 = scmp.eq.s32.totalorder %s30, 0
      %p165 = por %p163, %p164
      %p166 = scmp.ne.s32.totalorder %s158, %s160
      %p167 = scmp.eq.s32.totalorder %s35, 1
      %p168 = por %p166, %p167
      %p169 = scmp.ne.s32.totalorder %s160, %s161
      %p170 = scmp.eq.s32.totalorder %s35, 0
      %p171 = por %p169, %p170
      %p172 = scmp.ne.s32.totalorder %s160, %s161
      %p173 = scmp.eq.s32.totalorder %s36, 1
      %p174 = por %p172, %p173
      %p176 = scmp.ne.s32.totalorder %s161, %s175
      %p177 = scmp.eq.s32.totalorder %s36, 0
      %p178 = por %p176, %p177
      %s180 = sadd.s32 %s179, 1
      %p183 = scmp.eq.s32.totalorder %s30, 1
      %p184 = scmp.ne.s32.totalorder %s179, %s181
      %p185 = scmp.eq.s32.totalorder %s30, 0
      %p186 = por %p184, %p185
      %p187 = scmp.ne.s32.totalorder %s179, %s181
      %p188 = scmp.eq.s32.totalorder %s35, 1
      %p189 = por %p187, %p188
      %p190 = scmp.ne.s32.totalorder %s181, %s182
      %p191 = scmp.eq.s32.totalorder %s35, 0
      %p192 = por %p190, %p191
      %p193 = scmp.ne.s32.totalorder %s181, %s182
      %p194 = scmp.eq.s32.totalorder %s36, 1
      %p195 = por %p193, %p194
      %p197 = scmp.ne.s32.totalorder %s182, %s196
      %p198 = scmp.eq.s32.totalorder %s36, 0
      %p199 = por %p197, %p198
      %s201 = sadd.s32 %s200, 1
      %p204 = scmp.eq.s32.totalorder %s30, 1
      %p205 = scmp.ne.s32.totalorder %s200, %s202
      %p206 = scmp.eq.s32.totalorder %s30, 0
      %p207 = por %p205, %p206
      %p208 = scmp.ne.s32.totalorder %s200, %s202
      %p209 = scmp.eq.s32.totalorder %s35, 1
      %p210 = por %p208, %p209
      %p211 = scmp.ne.s32.totalorder %s202, %s203
      %p212 = scmp.eq.s32.totalorder %s35, 0
      %p213 = por %p211, %p212
      %p214 = scmp.ne.s32.totalorder %s202, %s203
      %p215 = scmp.eq.s32.totalorder %s36, 1
      %p216 = por %p214, %p215
      %p218 = scmp.ne.s32.totalorder %s203, %s217
      %p219 = scmp.eq.s32.totalorder %s36, 0
      %p220 = por %p218, %p219
      %s222 = sadd.s32 %s221, 1
      %p225 = scmp.eq.s32.totalorder %s30, 1
      %p226 = scmp.ne.s32.totalorder %s221, %s223
      %p227 = scmp.eq.s32.totalorder %s30, 0
      %p228 = por %p226, %p227
      %p229 = scmp.ne.s32.totalorder %s221, %s223
      %p230 = scmp.eq.s32.totalorder %s35, 1
      %p231 = por %p229, %p230
      %p232 = scmp.ne.s32.totalorder %s223, %s224
      %p233 = scmp.eq.s32.totalorder %s35, 0
      %p234 = por %p232, %p233
      %p235 = scmp.ne.s32.totalorder %s223, %s224
      %p236 = scmp.eq.s32.totalorder %s36, 1
      %p237 = por %p235, %p236
      %p239 = scmp.ne.s32.totalorder %s224, %s238
      %p240 = scmp.eq.s32.totalorder %s36, 0
      %p241 = por %p239, %p240
      %s243 = sadd.s32 %s242, 1
      %p246 = scmp.eq.s32.totalorder %s30, 1
      %p247 = scmp.ne.s32.totalorder %s242, %s244
      %p248 = scmp.eq.s32.totalorder %s30, 0
      %p249 = por %p247, %p248
      %p250 = scmp.ne.s32.totalorder %s242, %s244
      %p251 = scmp.eq.s32.totalorder %s35, 1
      %p252 = por %p250, %p251
      %p253 = scmp.ne.s32.totalorder %s244, %s245
      %p254 = scmp.eq.s32.totalorder %s35, 0
      %p255 = por %p253, %p254
      %p256 = scmp.ne.s32.totalorder %s244, %s245
      %p257 = scmp.eq.s32.totalorder %s36, 1
      %p258 = por %p256, %p257
      %p260 = scmp.ne.s32.totalorder %s245, %s259
      %p261 = scmp.eq.s32.totalorder %s36, 0
      %p262 = por %p260, %p261
      %s264 = sadd.s32 %s263, 1
      %p267 = scmp.eq.s32.totalorder %s30, 1
      %p268 = scmp.ne.s32.totalorder %s263, %s265
      %p269 = scmp.eq.s32.totalorder %s30, 0
      %p270 = por %p268, %p269
      %p271 = scmp.ne.s32.totalorder %s263, %s265
      %p272 = scmp.eq.s32.totalorder %s35, 1
      %p273 = por %p271, %p272
      %p274 = scmp.ne.s32.totalorder %s265, %s266
      %p275 = scmp.eq.s32.totalorder %s35, 0
      %p276 = por %p274, %p275
      %p277 = scmp.ne.s32.totalorder %s265, %s266
      %p278 = scmp.eq.s32.totalorder %s36, 1
      %p279 = por %p277, %p278
      %p281 = scmp.ne.s32.totalorder %s266, %s280
      %p282 = scmp.eq.s32.totalorder %s36, 0
      %p283 = por %p281, %p282
      %s285 = sadd.s32 %s284, 1
      %p288 = scmp.eq.s32.totalorder %s30, 1
      %p289 = scmp.ne.s32.totalorder %s284, %s286
      %p290 = scmp.eq.s32.totalorder %s30, 0
      %p291 = por %p289, %p290
      %p292 = scmp.ne.s32.totalorder %s284, %s286
      %p293 = scmp.eq.s32.totalorder %s35, 1
      %p294 = por %p292, %p293
      %p295 = scmp.ne.s32.totalorder %s286, %s287
      %p296 = scmp.eq.s32.totalorder %s35, 0
      %p297 = por %p295, %p296
      %p298 = scmp.ne.s32.totalorder %s286, %s287
      %p299 = scmp.eq.s32.totalorder %s36, 1
      %p300 = por %p298, %p299
      %p302 = scmp.ne.s32.totalorder %s287, %s301
      %p303 = scmp.eq.s32.totalorder %s36, 0
      %p304 = por %p302, %p303
      %s306 = sadd.s32 %s305, 1
      %p309 = scmp.eq.s32.totalorder %s30, 1
      %p310 = scmp.ne.s32.totalorder %s305, %s307
      %p311 = scmp.eq.s32.totalorder %s30, 0
      %p312 = por %p310, %p311
      %p313 = scmp.ne.s32.totalorder %s305, %s307
      %p314 = scmp.eq.s32.totalorder %s35, 1
      %p315 = por %p313, %p314
      %p316 = scmp.ne.s32.totalorder %s307, %s308
      %p317 = scmp.eq.s32.totalorder %s35, 0
      %p318 = por %p316, %p317
      %p319 = scmp.ne.s32.totalorder %s307, %s308
      %p320 = scmp.eq.s32.totalorder %s36, 1
      %p321 = por %p319, %p320
      %p323 = scmp.ne.s32.totalorder %s308, %s322
      %p324 = scmp.eq.s32.totalorder %s36, 0
      %p325 = por %p323, %p324
      %s327 = sadd.s32 %s326, 1
      %p330 = scmp.eq.s32.totalorder %s30, 1
      %p331 = scmp.ne.s32.totalorder %s326, %s328
      %p332 = scmp.eq.s32.totalorder %s30, 0
      %p333 = por %p331, %p332
      %p334 = scmp.ne.s32.totalorder %s326, %s328
      %p335 = scmp.eq.s32.totalorder %s35, 1
      %p336 = por %p334, %p335
      %p337 = scmp.ne.s32.totalorder %s328, %s329
      %p338 = scmp.eq.s32.totalorder %s35, 0
      %p339 = por %p337, %p338
      %p340 = scmp.ne.s32.totalorder %s328, %s329
      %p341 = scmp.eq.s32.totalorder %s36, 1
      %p342 = por %p340, %p341
      %p344 = scmp.ne.s32.totalorder %s329, %s343
      %p345 = scmp.eq.s32.totalorder %s36, 0
      %p346 = por %p344, %p345
      %s348 = sadd.s32 %s347, 1
      %p351 = scmp.eq.s32.totalorder %s30, 1
      %p352 = scmp.ne.s32.totalorder %s347, %s349
      %p353 = scmp.eq.s32.totalorder %s30, 0
      %p354 = por %p352, %p353
      %p355 = scmp.ne.s32.totalorder %s347, %s349
      %p356 = scmp.eq.s32.totalorder %s35, 1
      %p357 = por %p355, %p356
      %p358 = scmp.ne.s32.totalorder %s349, %s350
      %p359 = scmp.eq.s32.totalorder %s35, 0
      %p360 = por %p358, %p359
      %p361 = scmp.ne.s32.totalorder %s349, %s350
      %p362 = scmp.eq.s32.totalorder %s36, 1
      %p363 = por %p361, %p362
      %p365 = scmp.ne.s32.totalorder %s350, %s364
      %p366 = scmp.eq.s32.totalorder %s36, 0
      %p367 = por %p365, %p366
      %s369 = sadd.s32 %s368, 1
      %p372 = scmp.eq.s32.totalorder %s30, 1
      %p373 = scmp.ne.s32.totalorder %s368, %s370
      %p374 = scmp.eq.s32.totalorder %s30, 0
      %p375 = por %p373, %p374
      %p376 = scmp.ne.s32.totalorder %s368, %s370
      %p377 = scmp.eq.s32.totalorder %s35, 1
      %p378 = por %p376, %p377
      %p379 = scmp.ne.s32.totalorder %s370, %s371
      %p380 = scmp.eq.s32.totalorder %s35, 0
      %p381 = por %p379, %p380
      %p382 = scmp.ne.s32.totalorder %s370, %s371
      %p383 = scmp.eq.s32.totalorder %s36, 1
      %p384 = por %p382, %p383
      %p386 = scmp.ne.s32.totalorder %s371, %s385
      %p387 = scmp.eq.s32.totalorder %s36, 0
      %p388 = por %p386, %p387
      %s389 = ssub.s32 %s30, %s37
      %p390 = scmp.eq.s32.totalorder %s389, 0
      %s392 = sadd.s32 %s391, 1
      %s393 = scalar_select %p390, %s391, %s392
      %p396 = pneg %p390
      %p397 = scmp.eq.s32.totalorder %s30, 1
      %p398 = por %p396, %p397
      %p399 = scmp.ne.s32.totalorder %s391, %s394
      %p400 = scmp.eq.s32.totalorder %s30, 0
      %p401 = por %p399, %p400
      %p402 = scmp.ne.s32.totalorder %s391, %s394
      %p403 = scmp.eq.s32.totalorder %s35, 1
      %p404 = por %p402, %p403
      %p405 = scmp.ne.s32.totalorder %s394, %s395
      %p406 = scmp.eq.s32.totalorder %s35, 0
      %p407 = por %p405, %p406
      %p408 = scmp.ne.s32.totalorder %s394, %s395
      %p409 = scmp.eq.s32.totalorder %s36, 1
      %p410 = por %p408, %p409
      %p412 = scmp.ne.s32.totalorder %s395, %s411
      %p413 = scmp.eq.s32.totalorder %s36, 0
      %p414 = por %p412, %p413
      %p415 = scmp.le.s32.totalorder 1, %s30
      %p416 = scmp.lt.s32.totalorder %s30, 3
      %p417 = pnand %p415, %p416
      %p418 = pneg %p417
      // Predicated region
      $region9: #{tpu_custom_call.1} parent=5 // pred_check
        _
      $region10: #{tpu_custom_call.1} parent=5 // pred_check_branch
        %420 = sbr.rel (%p417) target = $region12
      $region11: #{tpu_custom_call.1} parent=5 // pred_region
        %s421 = ssub.s32 %s30, 1
        // Predicated region
        $region13: #{tpu_custom_call.1} parent=11 // pred_check
          %p422 = pneg %p129
        $region14: #{tpu_custom_call.1} parent=11 // pred_check_branch
          %424 = sbr.rel (%p422) target = $region16
        $region15: #{tpu_custom_call.1} parent=11 // pred_region
          _
        $region16: #{tpu_custom_call.1} parent=11 // pred_fallthru
          _
        // Predicated region
        $region17: #{tpu_custom_call.1} parent=11 // pred_check
          %p425 = pneg %p150
        $region18: #{tpu_custom_call.1} parent=11 // pred_check_branch
          %427 = sbr.rel (%p425) target = $region20
        $region19: #{tpu_custom_call.1} parent=11 // pred_region
          %s429 = ssub.s32 16, 16
          %430 = vsyncadd [#allocation8], %s429
          %s432 = sshll.u32 [#allocation7], 4
          %s433 = int_to_ptr.vmem [resolvable:$true] %s432
          %435 = dma.hbm_to_vmem [thread:$0]  %s4, 16, %s433, [#allocation8]
        $region20: #{tpu_custom_call.1} parent=11 // pred_fallthru
          _
        // Predicated region
        $region21: #{tpu_custom_call.1} parent=11 // pred_check
          %p436 = pneg %p171
        $region22: #{tpu_custom_call.1} parent=11 // pred_check_branch
          %438 = sbr.rel (%p436) target = $region24
        $region23: #{tpu_custom_call.1} parent=11 // pred_region
          _
        $region24: #{tpu_custom_call.1} parent=11 // pred_fallthru
          _
        // Predicated region
        $region25: #{tpu_custom_call.1} parent=11 // pred_check
          %p439 = pneg %p192
        $region26: #{tpu_custom_call.1} parent=11 // pred_check_branch
          %441 = sbr.rel (%p439) target = $region28
        $region27: #{tpu_custom_call.1} parent=11 // pred_region
          %s443 = ssub.s32 16, 16
          %444 = vsyncadd [#allocation8], %s443
          %s446 = sshll.u32 [#allocation9], 4
          %s447 = int_to_ptr.vmem [resolvable:$true] %s446
          %449 = dma.hbm_to_vmem [thread:$0]  %s6, 16, %s447, [#allocation8]
        $region28: #{tpu_custom_call.1} parent=11 // pred_fallthru
          _
        // Predicated region
        $region29: #{tpu_custom_call.1} parent=11 // pred_check
          %p450 = pneg %p213
        $region30: #{tpu_custom_call.1} parent=11 // pred_check_branch
          %452 = sbr.rel (%p450) target = $region32
        $region31: #{tpu_custom_call.1} parent=11 // pred_region
          _
        $region32: #{tpu_custom_call.1} parent=11 // pred_fallthru
          _
        // Predicated region
        $region33: #{tpu_custom_call.1} parent=11 // pred_check
          %p453 = pneg %p234
        $region34: #{tpu_custom_call.1} parent=11 // pred_check_branch
          %455 = sbr.rel (%p453) target = $region36
        $region35: #{tpu_custom_call.1} parent=11 // pred_region
          %s457 = ssub.s32 32, 32
          %458 = vsyncadd [#allocation11], %s457
          %s459 = sshll.u32 [#allocation10], 4
          %s460 = int_to_ptr.vmem [resolvable:$true] %s459
          %465 = dma.hbm_to_vmem [thread:$0]  %s8, 32, %s460, [#allocation11], 16, 16, 1
        $region36: #{tpu_custom_call.1} parent=11 // pred_fallthru
          _
        // Predicated region
        $region37: #{tpu_custom_call.1} parent=11 // pred_check
          %p466 = pneg %p255
        $region38: #{tpu_custom_call.1} parent=11 // pred_check_branch
          %468 = sbr.rel (%p466) target = $region40
        $region39: #{tpu_custom_call.1} parent=11 // pred_region
          _
        $region40: #{tpu_custom_call.1} parent=11 // pred_fallthru
          _
        // Predicated region
        $region41: #{tpu_custom_call.1} parent=11 // pred_check
          %p469 = pneg %p276
        $region42: #{tpu_custom_call.1} parent=11 // pred_check_branch
          %471 = sbr.rel (%p469) target = $region44
        $region43: #{tpu_custom_call.1} parent=11 // pred_region
          _
        $region44: #{tpu_custom_call.1} parent=11 // pred_fallthru
          _
        // Predicated region
        $region45: #{tpu_custom_call.1} parent=11 // pred_check
          %p472 = pneg %p297
        $region46: #{tpu_custom_call.1} parent=11 // pred_check_branch
          %474 = sbr.rel (%p472) target = $region48
        $region47: #{tpu_custom_call.1} parent=11 // pred_region
          _
        $region48: #{tpu_custom_call.1} parent=11 // pred_fallthru
          _
        // Predicated region
        $region49: #{tpu_custom_call.1} parent=11 // pred_check
          %p475 = pneg %p318
        $region50: #{tpu_custom_call.1} parent=11 // pred_check_branch
          %477 = sbr.rel (%p475) target = $region52
        $region51: #{tpu_custom_call.1} parent=11 // pred_region
          _
        $region52: #{tpu_custom_call.1} parent=11 // pred_fallthru
          _
        // Predicated region
        $region53: #{tpu_custom_call.1} parent=11 // pred_check
          %p478 = pneg %p339
        $region54: #{tpu_custom_call.1} parent=11 // pred_check_branch
          %480 = sbr.rel (%p478) target = $region56
        $region55: #{tpu_custom_call.1} parent=11 // pred_region
          _
        $region56: #{tpu_custom_call.1} parent=11 // pred_fallthru
          _
        // Predicated region
        $region57: #{tpu_custom_call.1} parent=11 // pred_check
          %p481 = pneg %p360
        $region58: #{tpu_custom_call.1} parent=11 // pred_check_branch
          %483 = sbr.rel (%p481) target = $region60
        $region59: #{tpu_custom_call.1} parent=11 // pred_region
          _
        $region60: #{tpu_custom_call.1} parent=11 // pred_fallthru
          _
        // Predicated region
        $region61: #{tpu_custom_call.1} parent=11 // pred_check
          %p484 = pneg %p381
        $region62: #{tpu_custom_call.1} parent=11 // pred_check_branch
          %486 = sbr.rel (%p484) target = $region64
        $region63: #{tpu_custom_call.1} parent=11 // pred_region
          _
        $region64: #{tpu_custom_call.1} parent=11 // pred_fallthru
          _
      $region12: #{tpu_custom_call.1} parent=5 // pred_fallthru
        _
      %p487 = scmp.lt.s32.totalorder %s30, 2
      // Predicated region
      $region65: #{tpu_custom_call.1} parent=5 // pred_check
        %p488 = pneg %p487
      $region66: #{tpu_custom_call.1} parent=5 // pred_check_branch
        %490 = sbr.rel (%p488) target = $region68
      $region67: #{tpu_custom_call.1} parent=5 // pred_region
        // Predicated region
        $region69: #{tpu_custom_call.1} parent=67 // pred_check
          %p491 = pneg %p50
        $region70: #{tpu_custom_call.1} parent=67 // pred_check_branch
          %493 = sbr.rel (%p491) target = $region72
        $region71: #{tpu_custom_call.1} parent=67 // pred_region
          %p494 = scmp.lt.s32.totalorder %s30, 1
          %s495 = scalar_select %p494, %s30, 1
          %s496 = smul.addr %s495, 8
          %s497 = scalar_lea.vmem %s0, %s496
        $region72: #{tpu_custom_call.1} parent=67 // pred_fallthru
          _
        // Predicated region
        $region73: #{tpu_custom_call.1} parent=67 // pred_check
          %p498 = pneg %p76
        $region74: #{tpu_custom_call.1} parent=67 // pred_check_branch
          %500 = sbr.rel (%p498) target = $region76
        $region75: #{tpu_custom_call.1} parent=67 // pred_region
          %p501 = scmp.lt.s32.totalorder %s30, 1
          %s502 = scalar_select %p501, %s30, 1
          %s503 = smul.addr %s502, 8
          %s504 = scalar_lea.vmem %s1, %s503
        $region76: #{tpu_custom_call.1} parent=67 // pred_fallthru
          _
        // Predicated region
        $region77: #{tpu_custom_call.1} parent=67 // pred_check
          %p505 = pneg %p102
        $region78: #{tpu_custom_call.1} parent=67 // pred_check_branch
          %507 = sbr.rel (%p505) target = $region80
        $region79: #{tpu_custom_call.1} parent=67 // pred_region
          %s508 = sand.u32 %s92, 1
          %s509 = scalar_lea.sflag [#allocation5], %s508
          %s510 = sand.u32 %s92, 1
          %s511 = scalar_lea.vmem [#allocation4], %s510
          %s513 = ssub.s32 16, 16
          %514 = vsyncadd %s509, %s513
          %s515 = smul.addr %s30, 16
          %s516 = scalar_lea.hbm %s2, %s515
          %s518 = sshll.u32 %s511, 4
          %s519 = int_to_ptr.vmem [resolvable:$true] %s518
          %521 = dma.hbm_to_vmem [thread:$0]  %s516, 16, %s519, %s509
        $region80: #{tpu_custom_call.1} parent=67 // pred_fallthru
          _
      $region68: #{tpu_custom_call.1} parent=5 // pred_fallthru
        _
      %p522 = scmp.le.s32.totalorder 1, %s30
      %p523 = scmp.lt.s32.totalorder %s30, 3
      %p524 = pnand %p522, %p523
      %p525 = pneg %p524
      // Predicated region
      $region81: #{tpu_custom_call.1} parent=5 // pred_check
        _
      $region82: #{tpu_custom_call.1} parent=5 // pred_check_branch
        %527 = sbr.rel (%p524) target = $region84
      $region83: #{tpu_custom_call.1} parent=5 // pred_region
        %s528 = ssub.s32 %s30, 1
        %s529 = sand.u32 %s95, 1
        %s530 = scalar_lea.sflag [#allocation5], %s529
        %s531 = sand.u32 %s95, 1
        %s532 = scalar_lea.vmem [#allocation4], %s531
        // Predicated region
        $region85: #{tpu_custom_call.1} parent=83 // pred_check
          %p533 = pneg %p108
        $region86: #{tpu_custom_call.1} parent=83 // pred_check_branch
          %535 = sbr.rel (%p533) target = $region88
        $region87: #{tpu_custom_call.1} parent=83 // pred_region
          %536 = dma.done %s530, 16
        $region88: #{tpu_custom_call.1} parent=83 // pred_fallthru
          _
        // Predicated region
        $region89: #{tpu_custom_call.1} parent=83 // pred_check
          %p537 = pneg %p150
        $region90: #{tpu_custom_call.1} parent=83 // pred_check_branch
          %539 = sbr.rel (%p537) target = $region92
        $region91: #{tpu_custom_call.1} parent=83 // pred_region
          %540 = dma.done [#allocation8], 16
        $region92: #{tpu_custom_call.1} parent=83 // pred_fallthru
          _
        // Predicated region
        $region93: #{tpu_custom_call.1} parent=83 // pred_check
          %p541 = pneg %p192
        $region94: #{tpu_custom_call.1} parent=83 // pred_check_branch
          %543 = sbr.rel (%p541) target = $region96
        $region95: #{tpu_custom_call.1} parent=83 // pred_region
          %544 = dma.done [#allocation8], 16
        $region96: #{tpu_custom_call.1} parent=83 // pred_fallthru
          _
        // Predicated region
        $region97: #{tpu_custom_call.1} parent=83 // pred_check
          %p545 = pneg %p234
        $region98: #{tpu_custom_call.1} parent=83 // pred_check_branch
          %547 = sbr.rel (%p545) target = $region100
        $region99: #{tpu_custom_call.1} parent=83 // pred_region
          %548 = dma.done [#allocation11], 32
        $region100: #{tpu_custom_call.1} parent=83 // pred_fallthru
          _
        %p549 = scmp.lt.s32.totalorder %s35, 1
        %s550 = scalar_select %p549, %s35, 1
        %s551 = smul.addr %s550, 8
        %s552 = scalar_lea.vmem %s0, %s551
        %p553 = pneg %p56
        %p554 = pneg %p53
        %p555 = scmp.lt.s32.totalorder %s35, 1
        %s556 = scalar_select %p555, %s35, 1
        %s557 = smul.addr %s556, 8
        %s558 = scalar_lea.vmem %s1, %s557
        %p559 = pneg %p82
        %p560 = pneg %p79
        %s561 = sand.u32 %s95, 1
        %s562 = scalar_lea.sflag [#allocation5], %s561
        %s563 = sand.u32 %s95, 1
        %s564 = scalar_lea.vmem [#allocation4], %s563
        %p565 = pneg %p108
        %p566 = pneg %p105
        %p567 = pneg %p129
        %p568 = pneg %p126
        %p569 = pneg %p150
        %p570 = pneg %p147
        %p571 = pneg %p171
        %p572 = pneg %p168
        %p573 = pneg %p192
        %p574 = pneg %p189
        %p575 = pneg %p213
        %p576 = pneg %p210
        %p577 = pneg %p234
        %p578 = pneg %p231
        %p579 = pneg %p255
        %p580 = pneg %p252
        %p581 = pneg %p276
        %p582 = pneg %p273
        %p583 = pneg %p297
        %p584 = pneg %p294
        %p585 = pneg %p318
        %p586 = pneg %p315
        %p587 = pneg %p339
        %p588 = pneg %p336
        %p589 = pneg %p360
        %p590 = pneg %p357
        %p591 = pneg %p381
        %p592 = pneg %p378
        %p593 = pneg %p407
        %p594 = pneg %p404
        %s595 = sand.u32 %s394, 1
        %s596 = scalar_lea.sflag [#allocation6], %s595
        %s597 = sand.u32 %s394, 1
        %s598 = smul.addr %s597, 8
        %s599 = scalar_lea.vmem [#allocation12], %s598
        %p600 = scmp.lt.s32.totalorder %s35, 1
        %s601 = scalar_select %p600, %s35, 1
        %s602 = smul.addr %s601, 8
        %s603 = scalar_lea.vmem %s0, %s602
        %p604 = scmp.lt.s32.totalorder %s35, 1
        %s605 = scalar_select %p604, %s35, 1
        %s606 = smul.addr %s605, 8
        %s607 = scalar_lea.vmem %s1, %s606
        %v609 = vld [vmem:[%s603] sm:$0xff]
        %v610 = vpack.c.bf16 %v609, %v609
        %v611 = vld [vmem:[%s3] sm:$0xf]
        %v612 = vld [vmem:[%s3 + $0x4] sm:$0xf]
        %v613 = vld [vmem:[%s3 + $0x8] sm:$0xf]
        %v614 = vld [vmem:[%s3 + $0xc] sm:$0xf]
        %v615 = vld [vmem:[%s3 + $0x10] sm:$0xf]
        %v616 = vld [vmem:[%s3 + $0x14] sm:$0xf]
        %v617 = vld [vmem:[%s3 + $0x18] sm:$0xf]
        %v618 = vld [vmem:[%s3 + $0x1c] sm:$0xf]
        %v619 = vld [vmem:[%s3 + $0x20] sm:$0xf]
        %v620 = vld [vmem:[%s3 + $0x24] sm:$0xf]
        %v621 = vld [vmem:[%s3 + $0x28] sm:$0xf]
        %v622 = vld [vmem:[%s3 + $0x2c] sm:$0xf]
        %v623 = vld [vmem:[%s3 + $0x30] sm:$0xf]
        %v624 = vld [vmem:[%s3 + $0x34] sm:$0xf]
        %v625 = vld [vmem:[%s3 + $0x38] sm:$0xf]
        %v626 = vld [vmem:[%s3 + $0x3c] sm:$0xf]
        %v627 = vld [vmem:[#allocation7] sm:$0x1]
        %v629 = vlaneseq
        %v630 = vshrl.u32 %v629, 7
        %v631 = vsub.s32 0, %v630
        %v632 = vrot.slane %v627, %v631
        %v650 = vunpack.c.l.b16 %v611
        %v651 = vunpack.c.l.b16 %v612
        %v652 = vunpack.c.l.b16 %v613
        %v653 = vunpack.c.l.b16 %v614
        %v654 = vunpack.c.l.b16 %v615
        %v655 = vunpack.c.l.b16 %v616
        %v656 = vunpack.c.l.b16 %v617
        %v657 = vunpack.c.l.b16 %v618
        %v658 = vunpack.c.l.b16 %v619
        %v659 = vunpack.c.l.b16 %v620
        %v660 = vunpack.c.l.b16 %v621
        %v661 = vunpack.c.l.b16 %v622
        %v662 = vunpack.c.l.b16 %v623
        %v663 = vunpack.c.l.b16 %v624
        %v664 = vunpack.c.l.b16 %v625
        %v665 = vunpack.c.l.b16 %v626
        %v666 = vpack.c.b16 %v651, %v650
        %v667 = vpack.c.b16 %v653, %v652
        %v668 = vpack.c.b16 %v655, %v654
        %v669 = vpack.c.b16 %v657, %v656
        %v670 = vpack.c.b16 %v659, %v658
        %v671 = vpack.c.b16 %v661, %v660
        %v672 = vpack.c.b16 %v663, %v662
        %v673 = vpack.c.b16 %v665, %v664
        %682 = vmatprep.subr.bf16.mxu0 0
        %683 = vmatpush1.bf16.msra.mxu0 %v673
        %684 = vmatprep.subr.bf16.mxu0 0
        %685 = vmatpush1.bf16.msra.mxu0 %v672
        %686 = vmatprep.subr.bf16.mxu0 0
        %687 = vmatpush1.bf16.msra.mxu0 %v671
        %688 = vmatprep.subr.bf16.mxu0 0
        %689 = vmatpush1.bf16.msra.mxu0 %v670
        %690 = vmatprep.subr.bf16.mxu0 0
        %691 = vmatpush1.bf16.msra.mxu0 %v669
        %692 = vmatprep.subr.bf16.mxu0 0
        %693 = vmatpush1.bf16.msra.mxu0 %v668
        %694 = vmatprep.subr.bf16.mxu0 0
        %695 = vmatpush1.bf16.msra.mxu0 %v667
        %696 = vmatprep.subr.bf16.mxu0 0
        %697 = vmatpush1.bf16.msra.mxu0 %v666
        %698 = vmatprep.subr.bf16.mxu0 0
        %699 = vmatpush2.bf16.msra.mxu0 0
        %700 = vmatprep.subr.bf16.mxu0 0
        %701 = vmatpush2.bf16.msra.mxu0 0
        %702 = vmatprep.subr.bf16.mxu0 0
        %703 = vmatpush2.bf16.msra.mxu0 0
        %704 = vmatprep.subr.bf16.mxu0 0
        %705 = vmatpush2.bf16.msra.mxu0 0
        %706 = vmatprep.subr.bf16.mxu0 0
        %707 = vmatpush2.bf16.msra.mxu0 0
        %708 = vmatprep.subr.bf16.mxu0 0
        %709 = vmatpush2.bf16.msra.mxu0 0
        %710 = vmatprep.subr.bf16.mxu0 0
        %711 = vmatpush2.bf16.msra.mxu0 0
        %712 = vmatprep.subr.bf16.mxu0 0
        %713 = vmatpush2.bf16.msra.mxu0 0
        %714 = vmatprep.mubr.bf16.mxu0 0
        %715 = vmatmul.mubr.bf16.gmra.mxu0 %v610
        %v716 = vpop.f32.mrf.mxu0
        %v717 = vadd.f32 %v632, %v716
        %v718 = vpop.f32.mrf.mxu0
        %v719 = vpop.f32.mrf.mxu0
        %v720 = vpop.f32.mrf.mxu0
        %721 = vdwg.mxu0
        %v722 = vmax.f32 %v717, 0.0
        %v723 = vpack.c.bf16 %v722, %v722
        %v724 = vld [vmem:[%s5] sm:$0xf]
        %v725 = vld [vmem:[%s5 + $0x4] sm:$0xf]
        %v726 = vld [vmem:[%s5 + $0x8] sm:$0xf]
        %v727 = vld [vmem:[%s5 + $0xc] sm:$0xf]
        %v728 = vld [vmem:[#allocation9] sm:$0x1]
        %v730 = vlaneseq
        %v731 = vshrl.u32 %v730, 7
        %v732 = vsub.s32 0, %v731
        %v733 = vrot.slane %v728, %v732
        %v739 = vunpack.c.l.b16 %v724
        %v740 = vunpack.c.l.b16 %v725
        %v741 = vunpack.c.l.b16 %v726
        %v742 = vunpack.c.l.b16 %v727
        %v743 = vpack.c.b16 %v740, %v739
        %v744 = vpack.c.b16 %v742, %v741
        %vm747 = vcmask 261120
        %v749 = vsel %vm747, %v723, 0
        %751 = vmatprep.subr.bf16.mxu0 0
        %752 = vmatpush1.bf16.msra.mxu0 0
        %753 = vmatprep.subr.bf16.mxu0 0
        %754 = vmatpush1.bf16.msra.mxu0 0
        %755 = vmatprep.subr.bf16.mxu0 0
        %756 = vmatpush1.bf16.msra.mxu0 0
        %757 = vmatprep.subr.bf16.mxu0 0
        %758 = vmatpush1.bf16.msra.mxu0 0
        %759 = vmatprep.subr.bf16.mxu0 0
        %760 = vmatpush1.bf16.msra.mxu0 0
        %761 = vmatprep.subr.bf16.mxu0 0
        %762 = vmatpush1.bf16.msra.mxu0 0
        %763 = vmatprep.subr.bf16.mxu0 0
        %764 = vmatpush1.bf16.msra.mxu0 %v744
        %765 = vmatprep.subr.bf16.mxu0 0
        %766 = vmatpush1.bf16.msra.mxu0 %v743
        %767 = vmatprep.subr.bf16.mxu0 0
        %768 = vmatpush2.bf16.msra.mxu0 0
        %769 = vmatprep.subr.bf16.mxu0 0
        %770 = vmatpush2.bf16.msra.mxu0 0
        %771 = vmatprep.subr.bf16.mxu0 0
        %772 = vmatpush2.bf16.msra.mxu0 0
        %773 = vmatprep.subr.bf16.mxu0 0
        %774 = vmatpush2.bf16.msra.mxu0 0
        %775 = vmatprep.subr.bf16.mxu0 0
        %776 = vmatpush2.bf16.msra.mxu0 0
        %777 = vmatprep.subr.bf16.mxu0 0
        %778 = vmatpush2.bf16.msra.mxu0 0
        %779 = vmatprep.subr.bf16.mxu0 0
        %780 = vmatpush2.bf16.msra.mxu0 0
        %781 = vmatprep.subr.bf16.mxu0 0
        %782 = vmatpush2.bf16.msra.mxu0 0
        %783 = vmatprep.mubr.bf16.mxu0 0
        %784 = vmatmul.mubr.bf16.gmra.mxu0 %v749
        %v785 = vpop.f32.mrf.mxu0
        %v786 = vadd.f32 %v733, %v785
        %v787 = vpop.f32.mrf.mxu0
        %v788 = vpop.f32.mrf.mxu0
        %v789 = vpop.f32.mrf.mxu0
        %790 = vdwg.mxu0
        %v791 = vld [vmem:[%s7] sm:$0xf]
        %v792 = vld [vmem:[%s7 + $0x4] sm:$0xf]
        %v793 = vld [vmem:[%s7 + $0x8] sm:$0xf]
        %v794 = vld [vmem:[%s7 + $0xc] sm:$0xf]
        %v795 = vld [vmem:[#allocation10] sm:$0x1]
        %v796 = vld [vmem:[#allocation10 + $0x1] sm:$0x1]
        %v799 = vunpack.c.l.b16 %v791
        %v800 = vunpack.c.l.b16 %v792
        %v801 = vpack.c.b16 %v800, %v799
        %vm803 = vcmask 130048
        %v805 = vsel %vm803, 0, 0
        %807 = vmatprep.subr.bf16.mxu0 0
        %808 = vmatpush1.bf16.msra.mxu0 0
        %809 = vmatprep.subr.bf16.mxu0 0
        %810 = vmatpush1.bf16.msra.mxu0 0
        %811 = vmatprep.subr.bf16.mxu0 0
        %812 = vmatpush1.bf16.msra.mxu0 0
        %813 = vmatprep.subr.bf16.mxu0 0
        %814 = vmatpush1.bf16.msra.mxu0 0
        %815 = vmatprep.subr.bf16.mxu0 0
        %816 = vmatpush1.bf16.msra.mxu0 0
        %817 = vmatprep.subr.bf16.mxu0 0
        %818 = vmatpush1.bf16.msra.mxu0 0
        %819 = vmatprep.subr.bf16.mxu0 0
        %820 = vmatpush1.bf16.msra.mxu0 0
        %821 = vmatprep.subr.bf16.mxu0 0
        %822 = vmatpush1.bf16.msra.mxu0 %v801
        %823 = vmatprep.subr.bf16.mxu0 0
        %824 = vmatpush2.bf16.msra.mxu0 0
        %825 = vmatprep.subr.bf16.mxu0 0
        %826 = vmatpush2.bf16.msra.mxu0 0
        %827 = vmatprep.subr.bf16.mxu0 0
        %828 = vmatpush2.bf16.msra.mxu0 0
        %829 = vmatprep.subr.bf16.mxu0 0
        %830 = vmatpush2.bf16.msra.mxu0 0
        %831 = vmatprep.subr.bf16.mxu0 0
        %832 = vmatpush2.bf16.msra.mxu0 0
        %833 = vmatprep.subr.bf16.mxu0 0
        %834 = vmatpush2.bf16.msra.mxu0 0
        %835 = vmatprep.subr.bf16.mxu0 0
        %836 = vmatpush2.bf16.msra.mxu0 0
        %837 = vmatprep.subr.bf16.mxu0 0
        %838 = vmatpush2.bf16.msra.mxu0 0
        %839 = vmatprep.mubr.bf16.mxu0 0
        %840 = vmatmul.mubr.bf16.gmra.mxu0 %v805
        %v841 = vpop.f32.mrf.mxu0
        %v842 = vadd.f32 %v795, %v841
        %v843 = vpop.f32.mrf.mxu0
        %v844 = vpop.f32.mrf.mxu0
        %v845 = vpop.f32.mrf.mxu0
        %846 = vdwg.mxu0
        %v847 = vadd.f32 %v786, %v842
        %v848 = vxor.u32 %v847, 2147483648
        %v849 = vmul.f32 %v848, 1.442695
        %v850 = vpow.pop %v849
        %v851 = vadd.f32 %v850, 1.0
        %v852 = vrcp.pop %v851
        %v853 = vmul.f32 1.0, %v852
        %855 = vrot.lane.b32.xlu0 %v842, 96
        %v856 = vpop.permute.xlu0 %855
        %v858 = vmul.f32 %v853, %v856
        %860 = vrot.lane.b32.xlu0 %v858, 32
        %v861 = vpop.permute.xlu0 %860
        %v863 = vadd.f32 %v786, %v861
        %v864 = vtanh.pop %v863
        %v865 = vsub.f32 1.0, %v853
        %867 = vrot.lane.b32.xlu0 %v864, 112
        %v868 = vpop.permute.xlu0 %867
        %v870 = vmul.f32 %v865, %v868
        %v871 = vmul.f32 %v853, 0.0
        %v872 = vadd.f32 %v870, %v871
        %v875 = vunpack.c.l.b16 %v793
        %v876 = vunpack.c.l.b16 %v794
        %v877 = vpack.c.b16 %v876, %v875
        %879 = vmatprep.subr.bf16.mxu0 0
        %880 = vmatpush1.bf16.msra.mxu0 0
        %881 = vmatprep.subr.bf16.mxu0 0
        %882 = vmatpush1.bf16.msra.mxu0 0
        %883 = vmatprep.subr.bf16.mxu0 0
        %884 = vmatpush1.bf16.msra.mxu0 0
        %885 = vmatprep.subr.bf16.mxu0 0
        %886 = vmatpush1.bf16.msra.mxu0 0
        %887 = vmatprep.subr.bf16.mxu0 0
        %888 = vmatpush1.bf16.msra.mxu0 0
        %889 = vmatprep.subr.bf16.mxu0 0
        %890 = vmatpush1.bf16.msra.mxu0 0
        %891 = vmatprep.subr.bf16.mxu0 0
        %892 = vmatpush1.bf16.msra.mxu0 0
        %893 = vmatprep.subr.bf16.mxu0 0
        %894 = vmatpush1.bf16.msra.mxu0 %v877
        %895 = vmatprep.subr.bf16.mxu0 0
        %896 = vmatpush2.bf16.msra.mxu0 0
        %897 = vmatprep.subr.bf16.mxu0 0
        %898 = vmatpush2.bf16.msra.mxu0 0
        %899 = vmatprep.subr.bf16.mxu0 0
        %900 = vmatpush2.bf16.msra.mxu0 0
        %901 = vmatprep.subr.bf16.mxu0 0
        %902 = vmatpush2.bf16.msra.mxu0 0
        %903 = vmatprep.subr.bf16.mxu0 0
        %904 = vmatpush2.bf16.msra.mxu0 0
        %905 = vmatprep.subr.bf16.mxu0 0
        %906 = vmatpush2.bf16.msra.mxu0 0
        %907 = vmatprep.subr.bf16.mxu0 0
        %908 = vmatpush2.bf16.msra.mxu0 0
        %909 = vmatprep.subr.bf16.mxu0 0
        %910 = vmatpush2.bf16.msra.mxu0 0
        %911 = vmatprep.mubr.bf16.mxu0 0
        %912 = vmatmul.mubr.bf16.gmra.mxu0 %v805
        %v913 = vpop.f32.mrf.mxu0
        %v914 = vadd.f32 %v796, %v913
        %v915 = vpop.f32.mrf.mxu0
        %v916 = vpop.f32.mrf.mxu0
        %v917 = vpop.f32.mrf.mxu0
        %918 = vdwg.mxu0
        %v920 = vrot.slane %v914, 1
        %921 = vrot.lane.b32.xlu0 %v920, 48
        %v922 = vpop.permute.xlu0 %921
        %v924 = vadd.f32 %v786, %v922
        %v925 = vxor.u32 %v924, 2147483648
        %v926 = vmul.f32 %v925, 1.442695
        %v927 = vpow.pop %v926
        %v928 = vadd.f32 %v927, 1.0
        %v929 = vrcp.pop %v928
        %v930 = vmul.f32 1.0, %v929
        %931 = vrot.lane.b32.xlu0 %v920, 16
        %v932 = vpop.permute.xlu0 %931
        %v934 = vmul.f32 %v930, %v932
        %936 = vrot.lane.b32.xlu0 %v934, 32
        %v937 = vpop.permute.xlu0 %936
        %v939 = vadd.f32 %v786, %v937
        %v940 = vtanh.pop %v939
        %v941 = vsub.f32 1.0, %v930
        %943 = vrot.lane.b32.xlu0 %v940, 112
        %v944 = vpop.permute.xlu0 %943
        %v946 = vmul.f32 %v941, %v944
        %v947 = vmul.f32 %v930, 0.0
        %v948 = vadd.f32 %v946, %v947
        %950 = vrot.lane.b32.xlu0 %v872, 112
        %v951 = vpop.permute.xlu0 %950
        %vm953 = vcmask 122880
        %954 = vst.msk [vmem:[#allocation2] sm:$0x1] %vm953, %v951
        %956 = vrot.lane.b32.xlu0 %v948, 64
        %v957 = vpop.permute.xlu0 %956
        %vm959 = vcmask 130055
        %960 = vst.msk [vmem:[#allocation3] sm:$0x80] %vm959, %v957
        %v961 = vpack.c.bf16 %v872, %v872
        %963 = vrot.lane.b32.xlu0 %v961, 112
        %v964 = vpop.permute.xlu0 %963
        %v966 = vsel %vm803, %v964, 0
        %968 = vmatprep.subr.bf16.mxu0 0
        %969 = vmatpush1.bf16.msra.mxu0 0
        %970 = vmatprep.subr.bf16.mxu0 0
        %971 = vmatpush1.bf16.msra.mxu0 0
        %972 = vmatprep.subr.bf16.mxu0 0
        %973 = vmatpush1.bf16.msra.mxu0 0
        %974 = vmatprep.subr.bf16.mxu0 0
        %975 = vmatpush1.bf16.msra.mxu0 0
        %976 = vmatprep.subr.bf16.mxu0 0
        %977 = vmatpush1.bf16.msra.mxu0 0
        %978 = vmatprep.subr.bf16.mxu0 0
        %979 = vmatpush1.bf16.msra.mxu0 0
        %980 = vmatprep.subr.bf16.mxu0 0
        %981 = vmatpush1.bf16.msra.mxu0 0
        %982 = vmatprep.subr.bf16.mxu0 0
        %983 = vmatpush1.bf16.msra.mxu0 %v801
        %984 = vmatprep.subr.bf16.mxu0 0
        %985 = vmatpush2.bf16.msra.mxu0 0
        %986 = vmatprep.subr.bf16.mxu0 0
        %987 = vmatpush2.bf16.msra.mxu0 0
        %988 = vmatprep.subr.bf16.mxu0 0
        %989 = vmatpush2.bf16.msra.mxu0 0
        %990 = vmatprep.subr.bf16.mxu0 0
        %991 = vmatpush2.bf16.msra.mxu0 0
        %992 = vmatprep.subr.bf16.mxu0 0
        %993 = vmatpush2.bf16.msra.mxu0 0
        %994 = vmatprep.subr.bf16.mxu0 0
        %995 = vmatpush2.bf16.msra.mxu0 0
        %996 = vmatprep.subr.bf16.mxu0 0
        %997 = vmatpush2.bf16.msra.mxu0 0
        %998 = vmatprep.subr.bf16.mxu0 0
        %999 = vmatpush2.bf16.msra.mxu0 0
        %1000 = vmatprep.mubr.bf16.mxu0 0
        %1001 = vmatmul.mubr.bf16.gmra.mxu0 %v966
        %v1002 = vpop.f32.mrf.mxu0
        %v1003 = vadd.f32 %v795, %v1002
        %v1004 = vpop.f32.mrf.mxu0
        %v1005 = vpop.f32.mrf.mxu0
        %v1006 = vpop.f32.mrf.mxu0
        %1007 = vdwg.mxu0
        %v1009 = vrot.slane %v1003, 7
        %v1011 = vadd.f32 %v786, %v1009
        %v1012 = vxor.u32 %v1011, 2147483648
        %v1013 = vmul.f32 %v1012, 1.442695
        %v1014 = vpow.pop %v1013
        %v1015 = vadd.f32 %v1014, 1.0
        %v1016 = vrcp.pop %v1015
        %v1017 = vmul.f32 1.0, %v1016
        %1018 = vrot.lane.b32.xlu0 %v1009, 96
        %v1019 = vpop.permute.xlu0 %1018
        %v1021 = vmul.f32 %v1017, %v1019
        %1023 = vrot.lane.b32.xlu0 %v1021, 32
        %v1024 = vpop.permute.xlu0 %1023
        %v1026 = vadd.f32 %v786, %v1024
        %v1027 = vtanh.pop %v1026
        %v1028 = vsub.f32 1.0, %v1017
        %1030 = vrot.lane.b32.xlu0 %v1027, 112
        %v1031 = vpop.permute.xlu0 %1030
        %v1033 = vmul.f32 %v1028, %v1031
        %v1034 = vrot.slane %v872, 7
        %v1036 = vmul.f32 %v1017, %v1034
        %v1037 = vadd.f32 %v1033, %v1036
        %v1038 = vpack.c.bf16 %v948, %v948
        %v1040 = vshrl.u32 %v1038, 16
        %v1042 = vrot.slane %v1040, 3
        %1043 = vrot.lane.b32.xlu0 %v1042, 64
        %v1044 = vpop.permute.xlu0 %1043
        %v1046 = vsel %vm803, %v1044, 0
        %1048 = vmatprep.subr.bf16.mxu0 0
        %1049 = vmatpush1.bf16.msra.mxu0 0
        %1050 = vmatprep.subr.bf16.mxu0 0
        %1051 = vmatpush1.bf16.msra.mxu0 0
        %1052 = vmatprep.subr.bf16.mxu0 0
        %1053 = vmatpush1.bf16.msra.mxu0 0
        %1054 = vmatprep.subr.bf16.mxu0 0
        %1055 = vmatpush1.bf16.msra.mxu0 0
        %1056 = vmatprep.subr.bf16.mxu0 0
        %1057 = vmatpush1.bf16.msra.mxu0 0
        %1058 = vmatprep.subr.bf16.mxu0 0
        %1059 = vmatpush1.bf16.msra.mxu0 0
        %1060 = vmatprep.subr.bf16.mxu0 0
        %1061 = vmatpush1.bf16.msra.mxu0 0
        %1062 = vmatprep.subr.bf16.mxu0 0
        %1063 = vmatpush1.bf16.msra.mxu0 %v877
        %1064 = vmatprep.subr.bf16.mxu0 0
        %1065 = vmatpush2.bf16.msra.mxu0 0
        %1066 = vmatprep.subr.bf16.mxu0 0
        %1067 = vmatpush2.bf16.msra.mxu0 0
        %1068 = vmatprep.subr.bf16.mxu0 0
        %1069 = vmatpush2.bf16.msra.mxu0 0
        %1070 = vmatprep.subr.bf16.mxu0 0
        %1071 = vmatpush2.bf16.msra.mxu0 0
        %1072 = vmatprep.subr.bf16.mxu0 0
        %1073 = vmatpush2.bf16.msra.mxu0 0
        %1074 = vmatprep.subr.bf16.mxu0 0
        %1075 = vmatpush2.bf16.msra.mxu0 0
        %1076 = vmatprep.subr.bf16.mxu0 0
        %1077 = vmatpush2.bf16.msra.mxu0 0
        %1078 = vmatprep.subr.bf16.mxu0 0
        %1079 = vmatpush2.bf16.msra.mxu0 0
        %1080 = vmatprep.mubr.bf16.mxu0 0
        %1081 = vmatmul.mubr.bf16.gmra.mxu0 %v1046
        %v1082 = vpop.f32.mrf.mxu0
        %v1083 = vadd.f32 %v796, %v1082
        %v1084 = vpop.f32.mrf.mxu0
        %v1085 = vpop.f32.mrf.mxu0
        %v1086 = vpop.f32.mrf.mxu0
        %1087 = vdwg.mxu0
        %v1089 = vrot.slane %v1083, 2
        %1090 = vrot.lane.b32.xlu0 %v1089, 48
        %v1091 = vpop.permute.xlu0 %1090
        %v1093 = vadd.f32 %v786, %v1091
        %v1094 = vxor.u32 %v1093, 2147483648
        %v1095 = vmul.f32 %v1094, 1.442695
        %v1096 = vpow.pop %v1095
        %v1097 = vadd.f32 %v1096, 1.0
        %v1098 = vrcp.pop %v1097
        %v1099 = vmul.f32 1.0, %v1098
        %1100 = vrot.lane.b32.xlu0 %v1089, 16
        %v1101 = vpop.permute.xlu0 %1100
        %v1103 = vmul.f32 %v1099, %v1101
        %1105 = vrot.lane.b32.xlu0 %v1103, 32
        %v1106 = vpop.permute.xlu0 %1105
        %v1108 = vadd.f32 %v786, %v1106
        %v1109 = vtanh.pop %v1108
        %v1110 = vsub.f32 1.0, %v1099
        %1112 = vrot.lane.b32.xlu0 %v1109, 112
        %v1113 = vpop.permute.xlu0 %1112
        %v1115 = vmul.f32 %v1110, %v1113
        %v1116 = vrot.slane %v948, 1
        %v1118 = vmul.f32 %v1099, %v1116
        %v1119 = vadd.f32 %v1115, %v1118
        %1121 = vrot.lane.b32.xlu0 %v1037, 112
        %v1122 = vpop.permute.xlu0 %1121
        %vm1124 = vcmask 123905
        %1125 = vst.msk [vmem:[#allocation2] sm:$0x2] %vm1124, %v1122
        %1127 = vrot.lane.b32.xlu0 %v1119, 64
        %v1128 = vpop.permute.xlu0 %1127
        %vm1130 = vcmask 129030
        %1131 = vst.msk [vmem:[#allocation3] sm:$0x40] %vm1130, %v1128
        %v1132 = vpack.c.bf16 %v1037, %v1037
        %v1134 = vshrl.u32 %v1132, 16
        %1136 = vrot.lane.b32.xlu0 %v1134, 112
        %v1137 = vpop.permute.xlu0 %1136
        %v1139 = vsel %vm803, %v1137, 0
        %1141 = vmatprep.subr.bf16.mxu0 0
        %1142 = vmatpush1.bf16.msra.mxu0 0
        %1143 = vmatprep.subr.bf16.mxu0 0
        %1144 = vmatpush1.bf16.msra.mxu0 0
        %1145 = vmatprep.subr.bf16.mxu0 0
        %1146 = vmatpush1.bf16.msra.mxu0 0
        %1147 = vmatprep.subr.bf16.mxu0 0
        %1148 = vmatpush1.bf16.msra.mxu0 0
        %1149 = vmatprep.subr.bf16.mxu0 0
        %1150 = vmatpush1.bf16.msra.mxu0 0
        %1151 = vmatprep.subr.bf16.mxu0 0
        %1152 = vmatpush1.bf16.msra.mxu0 0
        %1153 = vmatprep.subr.bf16.mxu0 0
        %1154 = vmatpush1.bf16.msra.mxu0 0
        %1155 = vmatprep.subr.bf16.mxu0 0
        %1156 = vmatpush1.bf16.msra.mxu0 %v801
        %1157 = vmatprep.subr.bf16.mxu0 0
        %1158 = vmatpush2.bf16.msra.mxu0 0
        %1159 = vmatprep.subr.bf16.mxu0 0
        %1160 = vmatpush2.bf16.msra.mxu0 0
        %1161 = vmatprep.subr.bf16.mxu0 0
        %1162 = vmatpush2.bf16.msra.mxu0 0
        %1163 = vmatprep.subr.bf16.mxu0 0
        %1164 = vmatpush2.bf16.msra.mxu0 0
        %1165 = vmatprep.subr.bf16.mxu0 0
        %1166 = vmatpush2.bf16.msra.mxu0 0
        %1167 = vmatprep.subr.bf16.mxu0 0
        %1168 = vmatpush2.bf16.msra.mxu0 0
        %1169 = vmatprep.subr.bf16.mxu0 0
        %1170 = vmatpush2.bf16.msra.mxu0 0
        %1171 = vmatprep.subr.bf16.mxu0 0
        %1172 = vmatpush2.bf16.msra.mxu0 0
        %1173 = vmatprep.mubr.bf16.mxu0 0
        %1174 = vmatmul.mubr.bf16.gmra.mxu0 %v1139
        %v1175 = vpop.f32.mrf.mxu0
        %v1176 = vadd.f32 %v795, %v1175
        %v1177 = vpop.f32.mrf.mxu0
        %v1178 = vpop.f32.mrf.mxu0
        %v1179 = vpop.f32.mrf.mxu0
        %1180 = vdwg.mxu0
        %v1182 = vrot.slane %v1176, 6
        %v1184 = vadd.f32 %v786, %v1182
        %v1185 = vxor.u32 %v1184, 2147483648
        %v1186 = vmul.f32 %v1185, 1.442695
        %v1187 = vpow.pop %v1186
        %v1188 = vadd.f32 %v1187, 1.0
        %v1189 = vrcp.pop %v1188
        %v1190 = vmul.f32 1.0, %v1189
        %1191 = vrot.lane.b32.xlu0 %v1182, 96
        %v1192 = vpop.permute.xlu0 %1191
        %v1194 = vmul.f32 %v1190, %v1192
        %1196 = vrot.lane.b32.xlu0 %v1194, 32
        %v1197 = vpop.permute.xlu0 %1196
        %v1199 = vadd.f32 %v786, %v1197
        %v1200 = vtanh.pop %v1199
        %v1201 = vsub.f32 1.0, %v1190
        %1203 = vrot.lane.b32.xlu0 %v1200, 112
        %v1204 = vpop.permute.xlu0 %1203
        %v1206 = vmul.f32 %v1201, %v1204
        %v1207 = vrot.slane %v1037, 7
        %v1209 = vmul.f32 %v1190, %v1207
        %v1210 = vadd.f32 %v1206, %v1209
        %v1211 = vpack.c.bf16 %v1119, %v1119
        %v1213 = vrot.slane %v1211, 3
        %1214 = vrot.lane.b32.xlu0 %v1213, 64
        %v1215 = vpop.permute.xlu0 %1214
        %v1217 = vsel %vm803, %v1215, 0
        %1219 = vmatprep.subr.bf16.mxu0 0
        %1220 = vmatpush1.bf16.msra.mxu0 0
        %1221 = vmatprep.subr.bf16.mxu0 0
        %1222 = vmatpush1.bf16.msra.mxu0 0
        %1223 = vmatprep.subr.bf16.mxu0 0
        %1224 = vmatpush1.bf16.msra.mxu0 0
        %1225 = vmatprep.subr.bf16.mxu0 0
        %1226 = vmatpush1.bf16.msra.mxu0 0
        %1227 = vmatprep.subr.bf16.mxu0 0
        %1228 = vmatpush1.bf16.msra.mxu0 0
        %1229 = vmatprep.subr.bf16.mxu0 0
        %1230 = vmatpush1.bf16.msra.mxu0 0
        %1231 = vmatprep.subr.bf16.mxu0 0
        %1232 = vmatpush1.bf16.msra.mxu0 0
        %1233 = vmatprep.subr.bf16.mxu0 0
        %1234 = vmatpush1.bf16.msra.mxu0 %v877
        %1235 = vmatprep.subr.bf16.mxu0 0
        %1236 = vmatpush2.bf16.msra.mxu0 0
        %1237 = vmatprep.subr.bf16.mxu0 0
        %1238 = vmatpush2.bf16.msra.mxu0 0
        %1239 = vmatprep.subr.bf16.mxu0 0
        %1240 = vmatpush2.bf16.msra.mxu0 0
        %1241 = vmatprep.subr.bf16.mxu0 0
        %1242 = vmatpush2.bf16.msra.mxu0 0
        %1243 = vmatprep.subr.bf16.mxu0 0
        %1244 = vmatpush2.bf16.msra.mxu0 0
        %1245 = vmatprep.subr.bf16.mxu0 0
        %1246 = vmatpush2.bf16.msra.mxu0 0
        %1247 = vmatprep.subr.bf16.mxu0 0
        %1248 = vmatpush2.bf16.msra.mxu0 0
        %1249 = vmatprep.subr.bf16.mxu0 0
        %1250 = vmatpush2.bf16.msra.mxu0 0
        %1251 = vmatprep.mubr.bf16.mxu0 0
        %1252 = vmatmul.mubr.bf16.gmra.mxu0 %v1217
        %v1253 = vpop.f32.mrf.mxu0
        %v1254 = vadd.f32 %v796, %v1253
        %v1255 = vpop.f32.mrf.mxu0
        %v1256 = vpop.f32.mrf.mxu0
        %v1257 = vpop.f32.mrf.mxu0
        %1258 = vdwg.mxu0
        %v1260 = vrot.slane %v1254, 3
        %1261 = vrot.lane.b32.xlu0 %v1260, 48
        %v1262 = vpop.permute.xlu0 %1261
        %v1264 = vadd.f32 %v786, %v1262
        %v1265 = vxor.u32 %v1264, 2147483648
        %v1266 = vmul.f32 %v1265, 1.442695
        %v1267 = vpow.pop %v1266
        %v1268 = vadd.f32 %v1267, 1.0
        %v1269 = vrcp.pop %v1268
        %v1270 = vmul.f32 1.0, %v1269
        %1271 = vrot.lane.b32.xlu0 %v1260, 16
        %v1272 = vpop.permute.xlu0 %1271
        %v1274 = vmul.f32 %v1270, %v1272
        %1276 = vrot.lane.b32.xlu0 %v1274, 32
        %v1277 = vpop.permute.xlu0 %1276
        %v1279 = vadd.f32 %v786, %v1277
        %v1280 = vtanh.pop %v1279
        %v1281 = vsub.f32 1.0, %v1270
        %1283 = vrot.lane.b32.xlu0 %v1280, 112
        %v1284 = vpop.permute.xlu0 %1283
        %v1286 = vmul.f32 %v1281, %v1284
        %v1287 = vrot.slane %v1119, 1
        %v1289 = vmul.f32 %v1270, %v1287
        %v1290 = vadd.f32 %v1286, %v1289
        %1292 = vrot.lane.b32.xlu0 %v1210, 112
        %v1293 = vpop.permute.xlu0 %1292
        %vm1295 = vcmask 124930
        %1296 = vst.msk [vmem:[#allocation2] sm:$0x4] %vm1295, %v1293
        %1298 = vrot.lane.b32.xlu0 %v1290, 64
        %v1299 = vpop.permute.xlu0 %1298
        %vm1301 = vcmask 128005
        %1302 = vst.msk [vmem:[#allocation3] sm:$0x20] %vm1301, %v1299
        %v1303 = vpack.c.bf16 %v1210, %v1210
        %v1305 = vrot.slane %v1303, 1
        %1306 = vrot.lane.b32.xlu0 %v1305, 112
        %v1307 = vpop.permute.xlu0 %1306
        %v1309 = vsel %vm803, %v1307, 0
        %1311 = vmatprep.subr.bf16.mxu0 0
        %1312 = vmatpush1.bf16.msra.mxu0 0
        %1313 = vmatprep.subr.bf16.mxu0 0
        %1314 = vmatpush1.bf16.msra.mxu0 0
        %1315 = vmatprep.subr.bf16.mxu0 0
        %1316 = vmatpush1.bf16.msra.mxu0 0
        %1317 = vmatprep.subr.bf16.mxu0 0
        %1318 = vmatpush1.bf16.msra.mxu0 0
        %1319 = vmatprep.subr.bf16.mxu0 0
        %1320 = vmatpush1.bf16.msra.mxu0 0
        %1321 = vmatprep.subr.bf16.mxu0 0
        %1322 = vmatpush1.bf16.msra.mxu0 0
        %1323 = vmatprep.subr.bf16.mxu0 0
        %1324 = vmatpush1.bf16.msra.mxu0 0
        %1325 = vmatprep.subr.bf16.mxu0 0
        %1326 = vmatpush1.bf16.msra.mxu0 %v801
        %1327 = vmatprep.subr.bf16.mxu0 0
        %1328 = vmatpush2.bf16.msra.mxu0 0
        %1329 = vmatprep.subr.bf16.mxu0 0
        %1330 = vmatpush2.bf16.msra.mxu0 0
        %1331 = vmatprep.subr.bf16.mxu0 0
        %1332 = vmatpush2.bf16.msra.mxu0 0
        %1333 = vmatprep.subr.bf16.mxu0 0
        %1334 = vmatpush2.bf16.msra.mxu0 0
        %1335 = vmatprep.subr.bf16.mxu0 0
        %1336 = vmatpush2.bf16.msra.mxu0 0
        %1337 = vmatprep.subr.bf16.mxu0 0
        %1338 = vmatpush2.bf16.msra.mxu0 0
        %1339 = vmatprep.subr.bf16.mxu0 0
        %1340 = vmatpush2.bf16.msra.mxu0 0
        %1341 = vmatprep.subr.bf16.mxu0 0
        %1342 = vmatpush2.bf16.msra.mxu0 0
        %1343 = vmatprep.mubr.bf16.mxu0 0
        %1344 = vmatmul.mubr.bf16.gmra.mxu0 %v1309
        %v1345 = vpop.f32.mrf.mxu0
        %v1346 = vadd.f32 %v795, %v1345
        %v1347 = vpop.f32.mrf.mxu0
        %v1348 = vpop.f32.mrf.mxu0
        %v1349 = vpop.f32.mrf.mxu0
        %1350 = vdwg.mxu0
        %v1352 = vrot.slane %v1346, 5
        %v1354 = vadd.f32 %v786, %v1352
        %v1355 = vxor.u32 %v1354, 2147483648
        %v1356 = vmul.f32 %v1355, 1.442695
        %v1357 = vpow.pop %v1356
        %v1358 = vadd.f32 %v1357, 1.0
        %v1359 = vrcp.pop %v1358
        %v1360 = vmul.f32 1.0, %v1359
        %1361 = vrot.lane.b32.xlu0 %v1352, 96
        %v1362 = vpop.permute.xlu0 %1361
        %v1364 = vmul.f32 %v1360, %v1362
        %1366 = vrot.lane.b32.xlu0 %v1364, 32
        %v1367 = vpop.permute.xlu0 %1366
        %v1369 = vadd.f32 %v786, %v1367
        %v1370 = vtanh.pop %v1369
        %v1371 = vsub.f32 1.0, %v1360
        %1373 = vrot.lane.b32.xlu0 %v1370, 112
        %v1374 = vpop.permute.xlu0 %1373
        %v1376 = vmul.f32 %v1371, %v1374
        %v1377 = vrot.slane %v1210, 7
        %v1379 = vmul.f32 %v1360, %v1377
        %v1380 = vadd.f32 %v1376, %v1379
        %v1381 = vpack.c.bf16 %v1290, %v1290
        %v1383 = vshrl.u32 %v1381, 16
        %v1385 = vrot.slane %v1383, 2
        %1386 = vrot.lane.b32.xlu0 %v1385, 64
        %v1387 = vpop.permute.xlu0 %1386
        %v1389 = vsel %vm803, %v1387, 0
        %1391 = vmatprep.subr.bf16.mxu0 0
        %1392 = vmatpush1.bf16.msra.mxu0 0
        %1393 = vmatprep.subr.bf16.mxu0 0
        %1394 = vmatpush1.bf16.msra.mxu0 0
        %1395 = vmatprep.subr.bf16.mxu0 0
        %1396 = vmatpush1.bf16.msra.mxu0 0
        %1397 = vmatprep.subr.bf16.mxu0 0
        %1398 = vmatpush1.bf16.msra.mxu0 0
        %1399 = vmatprep.subr.bf16.mxu0 0
        %1400 = vmatpush1.bf16.msra.mxu0 0
        %1401 = vmatprep.subr.bf16.mxu0 0
        %1402 = vmatpush1.bf16.msra.mxu0 0
        %1403 = vmatprep.subr.bf16.mxu0 0
        %1404 = vmatpush1.bf16.msra.mxu0 0
        %1405 = vmatprep.subr.bf16.mxu0 0
        %1406 = vmatpush1.bf16.msra.mxu0 %v877
        %1407 = vmatprep.subr.bf16.mxu0 0
        %1408 = vmatpush2.bf16.msra.mxu0 0
        %1409 = vmatprep.subr.bf16.mxu0 0
        %1410 = vmatpush2.bf16.msra.mxu0 0
        %1411 = vmatprep.subr.bf16.mxu0 0
        %1412 = vmatpush2.bf16.msra.mxu0 0
        %1413 = vmatprep.subr.bf16.mxu0 0
        %1414 = vmatpush2.bf16.msra.mxu0 0
        %1415 = vmatprep.subr.bf16.mxu0 0
        %1416 = vmatpush2.bf16.msra.mxu0 0
        %1417 = vmatprep.subr.bf16.mxu0 0
        %1418 = vmatpush2.bf16.msra.mxu0 0
        %1419 = vmatprep.subr.bf16.mxu0 0
        %1420 = vmatpush2.bf16.msra.mxu0 0
        %1421 = vmatprep.subr.bf16.mxu0 0
        %1422 = vmatpush2.bf16.msra.mxu0 0
        %1423 = vmatprep.mubr.bf16.mxu0 0
        %1424 = vmatmul.mubr.bf16.gmra.mxu0 %v1389
        %v1425 = vpop.f32.mrf.mxu0
        %v1426 = vadd.f32 %v796, %v1425
        %v1427 = vpop.f32.mrf.mxu0
        %v1428 = vpop.f32.mrf.mxu0
        %v1429 = vpop.f32.mrf.mxu0
        %1430 = vdwg.mxu0
        %v1432 = vrot.slane %v1426, 4
        %1433 = vrot.lane.b32.xlu0 %v1432, 48
        %v1434 = vpop.permute.xlu0 %1433
        %v1436 = vadd.f32 %v786, %v1434
        %v1437 = vxor.u32 %v1436, 2147483648
        %v1438 = vmul.f32 %v1437, 1.442695
        %v1439 = vpow.pop %v1438
        %v1440 = vadd.f32 %v1439, 1.0
        %v1441 = vrcp.pop %v1440
        %v1442 = vmul.f32 1.0, %v1441
        %1443 = vrot.lane.b32.xlu0 %v1432, 16
        %v1444 = vpop.permute.xlu0 %1443
        %v1446 = vmul.f32 %v1442, %v1444
        %1448 = vrot.lane.b32.xlu0 %v1446, 32
        %v1449 = vpop.permute.xlu0 %1448
        %v1451 = vadd.f32 %v786, %v1449
        %v1452 = vtanh.pop %v1451
        %v1453 = vsub.f32 1.0, %v1442
        %1455 = vrot.lane.b32.xlu0 %v1452, 112
        %v1456 = vpop.permute.xlu0 %1455
        %v1458 = vmul.f32 %v1453, %v1456
        %v1459 = vrot.slane %v1290, 1
        %v1461 = vmul.f32 %v1442, %v1459
        %v1462 = vadd.f32 %v1458, %v1461
        %1464 = vrot.lane.b32.xlu0 %v1380, 112
        %v1465 = vpop.permute.xlu0 %1464
        %vm1467 = vcmask 125955
        %1468 = vst.msk [vmem:[#allocation2] sm:$0x8] %vm1467, %v1465
        %1470 = vrot.lane.b32.xlu0 %v1462, 64
        %v1471 = vpop.permute.xlu0 %1470
        %vm1473 = vcmask 126980
        %1474 = vst.msk [vmem:[#allocation3] sm:$0x10] %vm1473, %v1471
        %v1475 = vpack.c.bf16 %v1380, %v1380
        %v1477 = vshrl.u32 %v1475, 16
        %v1479 = vrot.slane %v1477, 1
        %1480 = vrot.lane.b32.xlu0 %v1479, 112
        %v1481 = vpop.permute.xlu0 %1480
        %v1483 = vsel %vm803, %v1481, 0
        %1485 = vmatprep.subr.bf16.mxu0 0
        %1486 = vmatpush1.bf16.msra.mxu0 0
        %1487 = vmatprep.subr.bf16.mxu0 0
        %1488 = vmatpush1.bf16.msra.mxu0 0
        %1489 = vmatprep.subr.bf16.mxu0 0
        %1490 = vmatpush1.bf16.msra.mxu0 0
        %1491 = vmatprep.subr.bf16.mxu0 0
        %1492 = vmatpush1.bf16.msra.mxu0 0
        %1493 = vmatprep.subr.bf16.mxu0 0
        %1494 = vmatpush1.bf16.msra.mxu0 0
        %1495 = vmatprep.subr.bf16.mxu0 0
        %1496 = vmatpush1.bf16.msra.mxu0 0
        %1497 = vmatprep.subr.bf16.mxu0 0
        %1498 = vmatpush1.bf16.msra.mxu0 0
        %1499 = vmatprep.subr.bf16.mxu0 0
        %1500 = vmatpush1.bf16.msra.mxu0 %v801
        %1501 = vmatprep.subr.bf16.mxu0 0
        %1502 = vmatpush2.bf16.msra.mxu0 0
        %1503 = vmatprep.subr.bf16.mxu0 0
        %1504 = vmatpush2.bf16.msra.mxu0 0
        %1505 = vmatprep.subr.bf16.mxu0 0
        %1506 = vmatpush2.bf16.msra.mxu0 0
        %1507 = vmatprep.subr.bf16.mxu0 0
        %1508 = vmatpush2.bf16.msra.mxu0 0
        %1509 = vmatprep.subr.bf16.mxu0 0
        %1510 = vmatpush2.bf16.msra.mxu0 0
        %1511 = vmatprep.subr.bf16.mxu0 0
        %1512 = vmatpush2.bf16.msra.mxu0 0
        %1513 = vmatprep.subr.bf16.mxu0 0
        %1514 = vmatpush2.bf16.msra.mxu0 0
        %1515 = vmatprep.subr.bf16.mxu0 0
        %1516 = vmatpush2.bf16.msra.mxu0 0
        %1517 = vmatprep.mubr.bf16.mxu0 0
        %1518 = vmatmul.mubr.bf16.gmra.mxu0 %v1483
        %v1519 = vpop.f32.mrf.mxu0
        %v1520 = vadd.f32 %v795, %v1519
        %v1521 = vpop.f32.mrf.mxu0
        %v1522 = vpop.f32.mrf.mxu0
        %v1523 = vpop.f32.mrf.mxu0
        %1524 = vdwg.mxu0
        %v1526 = vrot.slane %v1520, 4
        %v1528 = vadd.f32 %v786, %v1526
        %v1529 = vxor.u32 %v1528, 2147483648
        %v1530 = vmul.f32 %v1529, 1.442695
        %v1531 = vpow.pop %v1530
        %v1532 = vadd.f32 %v1531, 1.0
        %v1533 = vrcp.pop %v1532
        %v1534 = vmul.f32 1.0, %v1533
        %1535 = vrot.lane.b32.xlu0 %v1526, 96
        %v1536 = vpop.permute.xlu0 %1535
        %v1538 = vmul.f32 %v1534, %v1536
        %1540 = vrot.lane.b32.xlu0 %v1538, 32
        %v1541 = vpop.permute.xlu0 %1540
        %v1543 = vadd.f32 %v786, %v1541
        %v1544 = vtanh.pop %v1543
        %v1545 = vsub.f32 1.0, %v1534
        %1547 = vrot.lane.b32.xlu0 %v1544, 112
        %v1548 = vpop.permute.xlu0 %1547
        %v1550 = vmul.f32 %v1545, %v1548
        %v1551 = vrot.slane %v1380, 7
        %v1553 = vmul.f32 %v1534, %v1551
        %v1554 = vadd.f32 %v1550, %v1553
        %v1555 = vpack.c.bf16 %v1462, %v1462
        %v1557 = vrot.slane %v1555, 2
        %1558 = vrot.lane.b32.xlu0 %v1557, 64
        %v1559 = vpop.permute.xlu0 %1558
        %v1561 = vsel %vm803, %v1559, 0
        %1563 = vmatprep.subr.bf16.mxu0 0
        %1564 = vmatpush1.bf16.msra.mxu0 0
        %1565 = vmatprep.subr.bf16.mxu0 0
        %1566 = vmatpush1.bf16.msra.mxu0 0
        %1567 = vmatprep.subr.bf16.mxu0 0
        %1568 = vmatpush1.bf16.msra.mxu0 0
        %1569 = vmatprep.subr.bf16.mxu0 0
        %1570 = vmatpush1.bf16.msra.mxu0 0
        %1571 = vmatprep.subr.bf16.mxu0 0
        %1572 = vmatpush1.bf16.msra.mxu0 0
        %1573 = vmatprep.subr.bf16.mxu0 0
        %1574 = vmatpush1.bf16.msra.mxu0 0
        %1575 = vmatprep.subr.bf16.mxu0 0
        %1576 = vmatpush1.bf16.msra.mxu0 0
        %1577 = vmatprep.subr.bf16.mxu0 0
        %1578 = vmatpush1.bf16.msra.mxu0 %v877
        %1579 = vmatprep.subr.bf16.mxu0 0
        %1580 = vmatpush2.bf16.msra.mxu0 0
        %1581 = vmatprep.subr.bf16.mxu0 0
        %1582 = vmatpush2.bf16.msra.mxu0 0
        %1583 = vmatprep.subr.bf16.mxu0 0
        %1584 = vmatpush2.bf16.msra.mxu0 0
        %1585 = vmatprep.subr.bf16.mxu0 0
        %1586 = vmatpush2.bf16.msra.mxu0 0
        %1587 = vmatprep.subr.bf16.mxu0 0
        %1588 = vmatpush2.bf16.msra.mxu0 0
        %1589 = vmatprep.subr.bf16.mxu0 0
        %1590 = vmatpush2.bf16.msra.mxu0 0
        %1591 = vmatprep.subr.bf16.mxu0 0
        %1592 = vmatpush2.bf16.msra.mxu0 0
        %1593 = vmatprep.subr.bf16.mxu0 0
        %1594 = vmatpush2.bf16.msra.mxu0 0
        %1595 = vmatprep.mubr.bf16.mxu0 0
        %1596 = vmatmul.mubr.bf16.gmra.mxu0 %v1561
        %v1597 = vpop.f32.mrf.mxu0
        %v1598 = vadd.f32 %v796, %v1597
        %v1599 = vpop.f32.mrf.mxu0
        %v1600 = vpop.f32.mrf.mxu0
        %v1601 = vpop.f32.mrf.mxu0
        %1602 = vdwg.mxu0
        %v1604 = vrot.slane %v1598, 5
        %1605 = vrot.lane.b32.xlu0 %v1604, 48
        %v1606 = vpop.permute.xlu0 %1605
        %v1608 = vadd.f32 %v786, %v1606
        %v1609 = vxor.u32 %v1608, 2147483648
        %v1610 = vmul.f32 %v1609, 1.442695
        %v1611 = vpow.pop %v1610
        %v1612 = vadd.f32 %v1611, 1.0
        %v1613 = vrcp.pop %v1612
        %v1614 = vmul.f32 1.0, %v1613
        %1615 = vrot.lane.b32.xlu0 %v1604, 16
        %v1616 = vpop.permute.xlu0 %1615
        %v1618 = vmul.f32 %v1614, %v1616
        %1620 = vrot.lane.b32.xlu0 %v1618, 32
        %v1621 = vpop.permute.xlu0 %1620
        %v1623 = vadd.f32 %v786, %v1621
        %v1624 = vtanh.pop %v1623
        %v1625 = vsub.f32 1.0, %v1614
        %1627 = vrot.lane.b32.xlu0 %v1624, 112
        %v1628 = vpop.permute.xlu0 %1627
        %v1630 = vmul.f32 %v1625, %v1628
        %v1631 = vrot.slane %v1462, 1
        %v1633 = vmul.f32 %v1614, %v1631
        %v1634 = vadd.f32 %v1630, %v1633
        %1636 = vrot.lane.b32.xlu0 %v1554, 112
        %v1637 = vpop.permute.xlu0 %1636
        %1639 = vst.msk [vmem:[#allocation2] sm:$0x10] %vm1473, %v1637
        %1641 = vrot.lane.b32.xlu0 %v1634, 64
        %v1642 = vpop.permute.xlu0 %1641
        %1644 = vst.msk [vmem:[#allocation3] sm:$0x8] %vm1467, %v1642
        %v1645 = vpack.c.bf16 %v1554, %v1554
        %v1647 = vrot.slane %v1645, 2
        %1648 = vrot.lane.b32.xlu0 %v1647, 112
        %v1649 = vpop.permute.xlu0 %1648
        %v1651 = vsel %vm803, %v1649, 0
        %1653 = vmatprep.subr.bf16.mxu0 0
        %1654 = vmatpush1.bf16.msra.mxu0 0
        %1655 = vmatprep.subr.bf16.mxu0 0
        %1656 = vmatpush1.bf16.msra.mxu0 0
        %1657 = vmatprep.subr.bf16.mxu0 0
        %1658 = vmatpush1.bf16.msra.mxu0 0
        %1659 = vmatprep.subr.bf16.mxu0 0
        %1660 = vmatpush1.bf16.msra.mxu0 0
        %1661 = vmatprep.subr.bf16.mxu0 0
        %1662 = vmatpush1.bf16.msra.mxu0 0
        %1663 = vmatprep.subr.bf16.mxu0 0
        %1664 = vmatpush1.bf16.msra.mxu0 0
        %1665 = vmatprep.subr.bf16.mxu0 0
        %1666 = vmatpush1.bf16.msra.mxu0 0
        %1667 = vmatprep.subr.bf16.mxu0 0
        %1668 = vmatpush1.bf16.msra.mxu0 %v801
        %1669 = vmatprep.subr.bf16.mxu0 0
        %1670 = vmatpush2.bf16.msra.mxu0 0
        %1671 = vmatprep.subr.bf16.mxu0 0
        %1672 = vmatpush2.bf16.msra.mxu0 0
        %1673 = vmatprep.subr.bf16.mxu0 0
        %1674 = vmatpush2.bf16.msra.mxu0 0
        %1675 = vmatprep.subr.bf16.mxu0 0
        %1676 = vmatpush2.bf16.msra.mxu0 0
        %1677 = vmatprep.subr.bf16.mxu0 0
        %1678 = vmatpush2.bf16.msra.mxu0 0
        %1679 = vmatprep.subr.bf16.mxu0 0
        %1680 = vmatpush2.bf16.msra.mxu0 0
        %1681 = vmatprep.subr.bf16.mxu0 0
        %1682 = vmatpush2.bf16.msra.mxu0 0
        %1683 = vmatprep.subr.bf16.mxu0 0
        %1684 = vmatpush2.bf16.msra.mxu0 0
        %1685 = vmatprep.mubr.bf16.mxu0 0
        %1686 = vmatmul.mubr.bf16.gmra.mxu0 %v1651
        %v1687 = vpop.f32.mrf.mxu0
        %v1688 = vadd.f32 %v795, %v1687
        %v1689 = vpop.f32.mrf.mxu0
        %v1690 = vpop.f32.mrf.mxu0
        %v1691 = vpop.f32.mrf.mxu0
        %1692 = vdwg.mxu0
        %v1694 = vrot.slane %v1688, 3
        %v1696 = vadd.f32 %v786, %v1694
        %v1697 = vxor.u32 %v1696, 2147483648
        %v1698 = vmul.f32 %v1697, 1.442695
        %v1699 = vpow.pop %v1698
        %v1700 = vadd.f32 %v1699, 1.0
        %v1701 = vrcp.pop %v1700
        %v1702 = vmul.f32 1.0, %v1701
        %1703 = vrot.lane.b32.xlu0 %v1694, 96
        %v1704 = vpop.permute.xlu0 %1703
        %v1706 = vmul.f32 %v1702, %v1704
        %1708 = vrot.lane.b32.xlu0 %v1706, 32
        %v1709 = vpop.permute.xlu0 %1708
        %v1711 = vadd.f32 %v786, %v1709
        %v1712 = vtanh.pop %v1711
        %v1713 = vsub.f32 1.0, %v1702
        %1715 = vrot.lane.b32.xlu0 %v1712, 112
        %v1716 = vpop.permute.xlu0 %1715
        %v1718 = vmul.f32 %v1713, %v1716
        %v1719 = vrot.slane %v1554, 7
        %v1721 = vmul.f32 %v1702, %v1719
        %v1722 = vadd.f32 %v1718, %v1721
        %v1723 = vpack.c.bf16 %v1634, %v1634
        %v1725 = vshrl.u32 %v1723, 16
        %v1727 = vrot.slane %v1725, 1
        %1728 = vrot.lane.b32.xlu0 %v1727, 64
        %v1729 = vpop.permute.xlu0 %1728
        %v1731 = vsel %vm803, %v1729, 0
        %1733 = vmatprep.subr.bf16.mxu0 0
        %1734 = vmatpush1.bf16.msra.mxu0 0
        %1735 = vmatprep.subr.bf16.mxu0 0
        %1736 = vmatpush1.bf16.msra.mxu0 0
        %1737 = vmatprep.subr.bf16.mxu0 0
        %1738 = vmatpush1.bf16.msra.mxu0 0
        %1739 = vmatprep.subr.bf16.mxu0 0
        %1740 = vmatpush1.bf16.msra.mxu0 0
        %1741 = vmatprep.subr.bf16.mxu0 0
        %1742 = vmatpush1.bf16.msra.mxu0 0
        %1743 = vmatprep.subr.bf16.mxu0 0
        %1744 = vmatpush1.bf16.msra.mxu0 0
        %1745 = vmatprep.subr.bf16.mxu0 0
        %1746 = vmatpush1.bf16.msra.mxu0 0
        %1747 = vmatprep.subr.bf16.mxu0 0
        %1748 = vmatpush1.bf16.msra.mxu0 %v877
        %1749 = vmatprep.subr.bf16.mxu0 0
        %1750 = vmatpush2.bf16.msra.mxu0 0
        %1751 = vmatprep.subr.bf16.mxu0 0
        %1752 = vmatpush2.bf16.msra.mxu0 0
        %1753 = vmatprep.subr.bf16.mxu0 0
        %1754 = vmatpush2.bf16.msra.mxu0 0
        %1755 = vmatprep.subr.bf16.mxu0 0
        %1756 = vmatpush2.bf16.msra.mxu0 0
        %1757 = vmatprep.subr.bf16.mxu0 0
        %1758 = vmatpush2.bf16.msra.mxu0 0
        %1759 = vmatprep.subr.bf16.mxu0 0
        %1760 = vmatpush2.bf16.msra.mxu0 0
        %1761 = vmatprep.subr.bf16.mxu0 0
        %1762 = vmatpush2.bf16.msra.mxu0 0
        %1763 = vmatprep.subr.bf16.mxu0 0
        %1764 = vmatpush2.bf16.msra.mxu0 0
        %1765 = vmatprep.mubr.bf16.mxu0 0
        %1766 = vmatmul.mubr.bf16.gmra.mxu0 %v1731
        %v1767 = vpop.f32.mrf.mxu0
        %v1768 = vadd.f32 %v796, %v1767
        %v1769 = vpop.f32.mrf.mxu0
        %v1770 = vpop.f32.mrf.mxu0
        %v1771 = vpop.f32.mrf.mxu0
        %1772 = vdwg.mxu0
        %v1774 = vrot.slane %v1768, 6
        %1775 = vrot.lane.b32.xlu0 %v1774, 48
        %v1776 = vpop.permute.xlu0 %1775
        %v1778 = vadd.f32 %v786, %v1776
        %v1779 = vxor.u32 %v1778, 2147483648
        %v1780 = vmul.f32 %v1779, 1.442695
        %v1781 = vpow.pop %v1780
        %v1782 = vadd.f32 %v1781, 1.0
        %v1783 = vrcp.pop %v1782
        %v1784 = vmul.f32 1.0, %v1783
        %1785 = vrot.lane.b32.xlu0 %v1774, 16
        %v1786 = vpop.permute.xlu0 %1785
        %v1788 = vmul.f32 %v1784, %v1786
        %1790 = vrot.lane.b32.xlu0 %v1788, 32
        %v1791 = vpop.permute.xlu0 %1790
        %v1793 = vadd.f32 %v786, %v1791
        %v1794 = vtanh.pop %v1793
        %v1795 = vsub.f32 1.0, %v1784
        %1797 = vrot.lane.b32.xlu0 %v1794, 112
        %v1798 = vpop.permute.xlu0 %1797
        %v1800 = vmul.f32 %v1795, %v1798
        %v1801 = vrot.slane %v1634, 1
        %v1803 = vmul.f32 %v1784, %v1801
        %v1804 = vadd.f32 %v1800, %v1803
        %1806 = vrot.lane.b32.xlu0 %v1722, 112
        %v1807 = vpop.permute.xlu0 %1806
        %1809 = vst.msk [vmem:[#allocation2] sm:$0x20] %vm1301, %v1807
        %1811 = vrot.lane.b32.xlu0 %v1804, 64
        %v1812 = vpop.permute.xlu0 %1811
        %1814 = vst.msk [vmem:[#allocation3] sm:$0x4] %vm1295, %v1812
        %v1815 = vpack.c.bf16 %v1722, %v1722
        %v1817 = vshrl.u32 %v1815, 16
        %v1819 = vrot.slane %v1817, 2
        %1820 = vrot.lane.b32.xlu0 %v1819, 112
        %v1821 = vpop.permute.xlu0 %1820
        %v1823 = vsel %vm803, %v1821, 0
        %1825 = vmatprep.subr.bf16.mxu0 0
        %1826 = vmatpush1.bf16.msra.mxu0 0
        %1827 = vmatprep.subr.bf16.mxu0 0
        %1828 = vmatpush1.bf16.msra.mxu0 0
        %1829 = vmatprep.subr.bf16.mxu0 0
        %1830 = vmatpush1.bf16.msra.mxu0 0
        %1831 = vmatprep.subr.bf16.mxu0 0
        %1832 = vmatpush1.bf16.msra.mxu0 0
        %1833 = vmatprep.subr.bf16.mxu0 0
        %1834 = vmatpush1.bf16.msra.mxu0 0
        %1835 = vmatprep.subr.bf16.mxu0 0
        %1836 = vmatpush1.bf16.msra.mxu0 0
        %1837 = vmatprep.subr.bf16.mxu0 0
        %1838 = vmatpush1.bf16.msra.mxu0 0
        %1839 = vmatprep.subr.bf16.mxu0 0
        %1840 = vmatpush1.bf16.msra.mxu0 %v801
        %1841 = vmatprep.subr.bf16.mxu0 0
        %1842 = vmatpush2.bf16.msra.mxu0 0
        %1843 = vmatprep.subr.bf16.mxu0 0
        %1844 = vmatpush2.bf16.msra.mxu0 0
        %1845 = vmatprep.subr.bf16.mxu0 0
        %1846 = vmatpush2.bf16.msra.mxu0 0
        %1847 = vmatprep.subr.bf16.mxu0 0
        %1848 = vmatpush2.bf16.msra.mxu0 0
        %1849 = vmatprep.subr.bf16.mxu0 0
        %1850 = vmatpush2.bf16.msra.mxu0 0
        %1851 = vmatprep.subr.bf16.mxu0 0
        %1852 = vmatpush2.bf16.msra.mxu0 0
        %1853 = vmatprep.subr.bf16.mxu0 0
        %1854 = vmatpush2.bf16.msra.mxu0 0
        %1855 = vmatprep.subr.bf16.mxu0 0
        %1856 = vmatpush2.bf16.msra.mxu0 0
        %1857 = vmatprep.mubr.bf16.mxu0 0
        %1858 = vmatmul.mubr.bf16.gmra.mxu0 %v1823
        %v1859 = vpop.f32.mrf.mxu0
        %v1860 = vadd.f32 %v795, %v1859
        %v1861 = vpop.f32.mrf.mxu0
        %v1862 = vpop.f32.mrf.mxu0
        %v1863 = vpop.f32.mrf.mxu0
        %1864 = vdwg.mxu0
        %v1866 = vrot.slane %v1860, 2
        %v1868 = vadd.f32 %v786, %v1866
        %v1869 = vxor.u32 %v1868, 2147483648
        %v1870 = vmul.f32 %v1869, 1.442695
        %v1871 = vpow.pop %v1870
        %v1872 = vadd.f32 %v1871, 1.0
        %v1873 = vrcp.pop %v1872
        %v1874 = vmul.f32 1.0, %v1873
        %1875 = vrot.lane.b32.xlu0 %v1866, 96
        %v1876 = vpop.permute.xlu0 %1875
        %v1878 = vmul.f32 %v1874, %v1876
        %1880 = vrot.lane.b32.xlu0 %v1878, 32
        %v1881 = vpop.permute.xlu0 %1880
        %v1883 = vadd.f32 %v786, %v1881
        %v1884 = vtanh.pop %v1883
        %v1885 = vsub.f32 1.0, %v1874
        %1887 = vrot.lane.b32.xlu0 %v1884, 112
        %v1888 = vpop.permute.xlu0 %1887
        %v1890 = vmul.f32 %v1885, %v1888
        %v1891 = vrot.slane %v1722, 7
        %v1893 = vmul.f32 %v1874, %v1891
        %v1894 = vadd.f32 %v1890, %v1893
        %v1895 = vpack.c.bf16 %v1804, %v1804
        %v1897 = vrot.slane %v1895, 1
        %1898 = vrot.lane.b32.xlu0 %v1897, 64
        %v1899 = vpop.permute.xlu0 %1898
        %v1901 = vsel %vm803, %v1899, 0
        %1903 = vmatprep.subr.bf16.mxu0 0
        %1904 = vmatpush1.bf16.msra.mxu0 0
        %1905 = vmatprep.subr.bf16.mxu0 0
        %1906 = vmatpush1.bf16.msra.mxu0 0
        %1907 = vmatprep.subr.bf16.mxu0 0
        %1908 = vmatpush1.bf16.msra.mxu0 0
        %1909 = vmatprep.subr.bf16.mxu0 0
        %1910 = vmatpush1.bf16.msra.mxu0 0
        %1911 = vmatprep.subr.bf16.mxu0 0
        %1912 = vmatpush1.bf16.msra.mxu0 0
        %1913 = vmatprep.subr.bf16.mxu0 0
        %1914 = vmatpush1.bf16.msra.mxu0 0
        %1915 = vmatprep.subr.bf16.mxu0 0
        %1916 = vmatpush1.bf16.msra.mxu0 0
        %1917 = vmatprep.subr.bf16.mxu0 0
        %1918 = vmatpush1.bf16.msra.mxu0 %v877
        %1919 = vmatprep.subr.bf16.mxu0 0
        %1920 = vmatpush2.bf16.msra.mxu0 0
        %1921 = vmatprep.subr.bf16.mxu0 0
        %1922 = vmatpush2.bf16.msra.mxu0 0
        %1923 = vmatprep.subr.bf16.mxu0 0
        %1924 = vmatpush2.bf16.msra.mxu0 0
        %1925 = vmatprep.subr.bf16.mxu0 0
        %1926 = vmatpush2.bf16.msra.mxu0 0
        %1927 = vmatprep.subr.bf16.mxu0 0
        %1928 = vmatpush2.bf16.msra.mxu0 0
        %1929 = vmatprep.subr.bf16.mxu0 0
        %1930 = vmatpush2.bf16.msra.mxu0 0
        %1931 = vmatprep.subr.bf16.mxu0 0
        %1932 = vmatpush2.bf16.msra.mxu0 0
        %1933 = vmatprep.subr.bf16.mxu0 0
        %1934 = vmatpush2.bf16.msra.mxu0 0
        %1935 = vmatprep.mubr.bf16.mxu0 0
        %1936 = vmatmul.mubr.bf16.gmra.mxu0 %v1901
        %v1937 = vpop.f32.mrf.mxu0
        %v1938 = vadd.f32 %v796, %v1937
        %v1939 = vpop.f32.mrf.mxu0
        %v1940 = vpop.f32.mrf.mxu0
        %v1941 = vpop.f32.mrf.mxu0
        %1942 = vdwg.mxu0
        %v1944 = vrot.slane %v1938, 7
        %1945 = vrot.lane.b32.xlu0 %v1944, 48
        %v1946 = vpop.permute.xlu0 %1945
        %v1948 = vadd.f32 %v786, %v1946
        %v1949 = vxor.u32 %v1948, 2147483648
        %v1950 = vmul.f32 %v1949, 1.442695
        %v1951 = vpow.pop %v1950
        %v1952 = vadd.f32 %v1951, 1.0
        %v1953 = vrcp.pop %v1952
        %v1954 = vmul.f32 1.0, %v1953
        %1955 = vrot.lane.b32.xlu0 %v1944, 16
        %v1956 = vpop.permute.xlu0 %1955
        %v1958 = vmul.f32 %v1954, %v1956
        %1960 = vrot.lane.b32.xlu0 %v1958, 32
        %v1961 = vpop.permute.xlu0 %1960
        %v1963 = vadd.f32 %v786, %v1961
        %v1964 = vtanh.pop %v1963
        %v1965 = vsub.f32 1.0, %v1954
        %1967 = vrot.lane.b32.xlu0 %v1964, 112
        %v1968 = vpop.permute.xlu0 %1967
        %v1970 = vmul.f32 %v1965, %v1968
        %v1971 = vrot.slane %v1804, 1
        %v1973 = vmul.f32 %v1954, %v1971
        %v1974 = vadd.f32 %v1970, %v1973
        %1976 = vrot.lane.b32.xlu0 %v1894, 112
        %v1977 = vpop.permute.xlu0 %1976
        %1979 = vst.msk [vmem:[#allocation2] sm:$0x40] %vm1130, %v1977
        %1981 = vrot.lane.b32.xlu0 %v1974, 64
        %v1982 = vpop.permute.xlu0 %1981
        %1984 = vst.msk [vmem:[#allocation3] sm:$0x2] %vm1124, %v1982
        %v1985 = vpack.c.bf16 %v1894, %v1894
        %v1987 = vrot.slane %v1985, 3
        %1988 = vrot.lane.b32.xlu0 %v1987, 112
        %v1989 = vpop.permute.xlu0 %1988
        %v1991 = vsel %vm803, %v1989, 0
        %1993 = vmatprep.subr.bf16.mxu0 0
        %1994 = vmatpush1.bf16.msra.mxu0 0
        %1995 = vmatprep.subr.bf16.mxu0 0
        %1996 = vmatpush1.bf16.msra.mxu0 0
        %1997 = vmatprep.subr.bf16.mxu0 0
        %1998 = vmatpush1.bf16.msra.mxu0 0
        %1999 = vmatprep.subr.bf16.mxu0 0
        %2000 = vmatpush1.bf16.msra.mxu0 0
        %2001 = vmatprep.subr.bf16.mxu0 0
        %2002 = vmatpush1.bf16.msra.mxu0 0
        %2003 = vmatprep.subr.bf16.mxu0 0
        %2004 = vmatpush1.bf16.msra.mxu0 0
        %2005 = vmatprep.subr.bf16.mxu0 0
        %2006 = vmatpush1.bf16.msra.mxu0 0
        %2007 = vmatprep.subr.bf16.mxu0 0
        %2008 = vmatpush1.bf16.msra.mxu0 %v801
        %2009 = vmatprep.subr.bf16.mxu0 0
        %2010 = vmatpush2.bf16.msra.mxu0 0
        %2011 = vmatprep.subr.bf16.mxu0 0
        %2012 = vmatpush2.bf16.msra.mxu0 0
        %2013 = vmatprep.subr.bf16.mxu0 0
        %2014 = vmatpush2.bf16.msra.mxu0 0
        %2015 = vmatprep.subr.bf16.mxu0 0
        %2016 = vmatpush2.bf16.msra.mxu0 0
        %2017 = vmatprep.subr.bf16.mxu0 0
        %2018 = vmatpush2.bf16.msra.mxu0 0
        %2019 = vmatprep.subr.bf16.mxu0 0
        %2020 = vmatpush2.bf16.msra.mxu0 0
        %2021 = vmatprep.subr.bf16.mxu0 0
        %2022 = vmatpush2.bf16.msra.mxu0 0
        %2023 = vmatprep.subr.bf16.mxu0 0
        %2024 = vmatpush2.bf16.msra.mxu0 0
        %2025 = vmatprep.mubr.bf16.mxu0 0
        %2026 = vmatmul.mubr.bf16.gmra.mxu0 %v1991
        %v2027 = vpop.f32.mrf.mxu0
        %v2028 = vadd.f32 %v795, %v2027
        %v2029 = vpop.f32.mrf.mxu0
        %v2030 = vpop.f32.mrf.mxu0
        %v2031 = vpop.f32.mrf.mxu0
        %2032 = vdwg.mxu0
        %v2034 = vrot.slane %v2028, 1
        %v2036 = vadd.f32 %v786, %v2034
        %v2037 = vxor.u32 %v2036, 2147483648
        %v2038 = vmul.f32 %v2037, 1.442695
        %v2039 = vpow.pop %v2038
        %v2040 = vadd.f32 %v2039, 1.0
        %v2041 = vrcp.pop %v2040
        %v2042 = vmul.f32 1.0, %v2041
        %2043 = vrot.lane.b32.xlu0 %v2034, 96
        %v2044 = vpop.permute.xlu0 %2043
        %v2046 = vmul.f32 %v2042, %v2044
        %2048 = vrot.lane.b32.xlu0 %v2046, 32
        %v2049 = vpop.permute.xlu0 %2048
        %v2051 = vadd.f32 %v786, %v2049
        %v2052 = vtanh.pop %v2051
        %v2053 = vsub.f32 1.0, %v2042
        %2055 = vrot.lane.b32.xlu0 %v2052, 112
        %v2056 = vpop.permute.xlu0 %2055
        %v2058 = vmul.f32 %v2053, %v2056
        %v2059 = vrot.slane %v1894, 7
        %v2061 = vmul.f32 %v2042, %v2059
        %v2062 = vadd.f32 %v2058, %v2061
        %v2063 = vpack.c.bf16 %v1974, %v1974
        %v2065 = vshrl.u32 %v2063, 16
        %2067 = vrot.lane.b32.xlu0 %v2065, 64
        %v2068 = vpop.permute.xlu0 %2067
        %v2070 = vsel %vm803, %v2068, 0
        %2072 = vmatprep.subr.bf16.mxu0 0
        %2073 = vmatpush1.bf16.msra.mxu0 0
        %2074 = vmatprep.subr.bf16.mxu0 0
        %2075 = vmatpush1.bf16.msra.mxu0 0
        %2076 = vmatprep.subr.bf16.mxu0 0
        %2077 = vmatpush1.bf16.msra.mxu0 0
        %2078 = vmatprep.subr.bf16.mxu0 0
        %2079 = vmatpush1.bf16.msra.mxu0 0
        %2080 = vmatprep.subr.bf16.mxu0 0
        %2081 = vmatpush1.bf16.msra.mxu0 0
        %2082 = vmatprep.subr.bf16.mxu0 0
        %2083 = vmatpush1.bf16.msra.mxu0 0
        %2084 = vmatprep.subr.bf16.mxu0 0
        %2085 = vmatpush1.bf16.msra.mxu0 0
        %2086 = vmatprep.subr.bf16.mxu0 0
        %2087 = vmatpush1.bf16.msra.mxu0 %v877
        %2088 = vmatprep.subr.bf16.mxu0 0
        %2089 = vmatpush2.bf16.msra.mxu0 0
        %2090 = vmatprep.subr.bf16.mxu0 0
        %2091 = vmatpush2.bf16.msra.mxu0 0
        %2092 = vmatprep.subr.bf16.mxu0 0
        %2093 = vmatpush2.bf16.msra.mxu0 0
        %2094 = vmatprep.subr.bf16.mxu0 0
        %2095 = vmatpush2.bf16.msra.mxu0 0
        %2096 = vmatprep.subr.bf16.mxu0 0
        %2097 = vmatpush2.bf16.msra.mxu0 0
        %2098 = vmatprep.subr.bf16.mxu0 0
        %2099 = vmatpush2.bf16.msra.mxu0 0
        %2100 = vmatprep.subr.bf16.mxu0 0
        %2101 = vmatpush2.bf16.msra.mxu0 0
        %2102 = vmatprep.subr.bf16.mxu0 0
        %2103 = vmatpush2.bf16.msra.mxu0 0
        %2104 = vmatprep.mubr.bf16.mxu0 0
        %2105 = vmatmul.mubr.bf16.gmra.mxu0 %v2070
        %v2106 = vpop.f32.mrf.mxu0
        %v2107 = vadd.f32 %v796, %v2106
        %v2108 = vpop.f32.mrf.mxu0
        %v2109 = vpop.f32.mrf.mxu0
        %v2110 = vpop.f32.mrf.mxu0
        %2111 = vdwg.mxu0
        %2113 = vrot.lane.b32.xlu0 %v2107, 48
        %v2114 = vpop.permute.xlu0 %2113
        %v2116 = vadd.f32 %v786, %v2114
        %v2117 = vxor.u32 %v2116, 2147483648
        %v2118 = vmul.f32 %v2117, 1.442695
        %v2119 = vpow.pop %v2118
        %v2120 = vadd.f32 %v2119, 1.0
        %v2121 = vrcp.pop %v2120
        %v2122 = vmul.f32 1.0, %v2121
        %2123 = vrot.lane.b32.xlu0 %v2107, 16
        %v2124 = vpop.permute.xlu0 %2123
        %v2126 = vmul.f32 %v2122, %v2124
        %2128 = vrot.lane.b32.xlu0 %v2126, 32
        %v2129 = vpop.permute.xlu0 %2128
        %v2131 = vadd.f32 %v786, %v2129
        %v2132 = vtanh.pop %v2131
        %v2133 = vsub.f32 1.0, %v2122
        %2135 = vrot.lane.b32.xlu0 %v2132, 112
        %v2136 = vpop.permute.xlu0 %2135
        %v2138 = vmul.f32 %v2133, %v2136
        %v2139 = vrot.slane %v1974, 1
        %v2141 = vmul.f32 %v2122, %v2139
        %v2142 = vadd.f32 %v2138, %v2141
        %2144 = vrot.lane.b32.xlu0 %v2062, 112
        %v2145 = vpop.permute.xlu0 %2144
        %2147 = vst.msk [vmem:[#allocation2] sm:$0x80] %vm959, %v2145
        %2149 = vrot.lane.b32.xlu0 %v2142, 64
        %v2150 = vpop.permute.xlu0 %2149
        %2152 = vst.msk [vmem:[#allocation3] sm:$0x1] %vm953, %v2150
        %v2153 = vld [vmem:[#allocation2] sm:$0xff]
        %v2154 = vld [vmem:[#allocation3] sm:$0xff]
        %2156 = vrot.lane.b32.xlu0 %v2154, 16
        %v2157 = vpop.permute.xlu0 %2156
        %v2159 = vsel %vm803, %v2153, %v2157
        %v2160 = vpack.c.bf16 %v2159, %v2159
        %v2161 = vld [vmem:[%s11] sm:$0x1]
        %v2163 = vlaneseq
        %v2164 = vshrl.u32 %v2163, 7
        %v2165 = vsub.s32 0, %v2164
        %v2166 = vrot.slane %v2161, %v2165
        %v2168 = vmul.f32 %v2159, %v2166
        %v2169 = vld [vmem:[%s10] sm:$0x1]
        %v2171 = vlaneseq
        %v2172 = vshrl.u32 %v2171, 7
        %v2173 = vsub.s32 0, %v2172
        %v2174 = vrot.slane %v2169, %v2173
        %v2176 = vadd.f32 %v2168, %v2174
        %v2177 = vpack.c.bf16 %v2176, %v2176
        %v2178 = vld [vmem:[%s9] sm:$0x1]
        %v2180 = vlaneseq
        %v2181 = vshrl.u32 %v2180, 7
        %v2182 = vsub.s32 0, %v2181
        %v2183 = vrot.slane %v2178, %v2182
        %v2185 = vmul.f32 %v2159, %v2183
        %v2186 = vsel %vm747, %v2185, 0.0
        %2187 = vadd.xlane.f32.xlu0 %v2186
        %v2188 = vpop.xlane.xlu0 %2187
        %v2190 = vsel %vm747, %v2177, 0
        %v2193 = vsel %vm747, %v2160, 0
        %2195 = vmatprep.subr.bf16.mxu0 0
        %2196 = vmatpush1.bf16.xpose.msra.mxu0 0
        %2197 = vmatprep.subr.bf16.mxu0 0
        %2198 = vmatpush1.bf16.xpose.msra.mxu0 0
        %2199 = vmatprep.subr.bf16.mxu0 0
        %2200 = vmatpush1.bf16.xpose.msra.mxu0 0
        %2201 = vmatprep.subr.bf16.mxu0 0
        %2202 = vmatpush1.bf16.xpose.msra.mxu0 0
        %2203 = vmatprep.subr.bf16.mxu0 0
        %2204 = vmatpush1.bf16.xpose.msra.mxu0 0
        %2205 = vmatprep.subr.bf16.mxu0 0
        %2206 = vmatpush1.bf16.xpose.msra.mxu0 0
        %2207 = vmatprep.subr.bf16.mxu0 0
        %2208 = vmatpush1.bf16.xpose.msra.mxu0 0
        %2209 = vmatprep.subr.bf16.mxu0 0
        %2210 = vmatpush1.bf16.xpose.msra.mxu0 %v2193
        %2211 = vmatprep.subr.bf16.mxu0 0
        %2212 = vmatpush2.bf16.xpose.msra.mxu0 0
        %2213 = vmatprep.subr.bf16.mxu0 0
        %2214 = vmatpush2.bf16.xpose.msra.mxu0 0
        %2215 = vmatprep.subr.bf16.mxu0 0
        %2216 = vmatpush2.bf16.xpose.msra.mxu0 0
        %2217 = vmatprep.subr.bf16.mxu0 0
        %2218 = vmatpush2.bf16.xpose.msra.mxu0 0
        %2219 = vmatprep.subr.bf16.mxu0 0
        %2220 = vmatpush2.bf16.xpose.msra.mxu0 0
        %2221 = vmatprep.subr.bf16.mxu0 0
        %2222 = vmatpush2.bf16.xpose.msra.mxu0 0
        %2223 = vmatprep.subr.bf16.mxu0 0
        %2224 = vmatpush2.bf16.xpose.msra.mxu0 0
        %2225 = vmatprep.subr.bf16.mxu0 0
        %2226 = vmatpush2.bf16.xpose.msra.mxu0 0
        %2227 = vmatprep.mubr.bf16.mxu0 0
        %2228 = vmatmul.mubr.bf16.gmra.mxu0 %v2190
        %v2229 = vpop.f32.mrf.mxu0
        %v2230 = vadd.f32 %v2188, %v2229
        %v2231 = vpop.f32.mrf.mxu0
        %v2232 = vpop.f32.mrf.mxu0
        %v2233 = vpop.f32.mrf.mxu0
        %2234 = vdwg.mxu0
        %v2235 = vlaneseq
        %v2236 = vshrl.u32 %v2235, 7
        %v2237 = vlaneseq
        %v2238 = vand.u32 %v2237, 127
        %vm2239 = vcmp.ne.s32.totalorder %v2236, %v2238
        %v2240 = vld [vmem:[%s607] sm:$0xff]
        %vm2241 = vcmp.gt.f32.partialorder %v2240, 0.5
        %v2242 = vld [vmem:[%s532] sm:$0x1]
        %vm2243 = vcmp.gt.f32.partialorder %v2242, 0.5
        %v2244 = vsel %vm2241, 1, 0
        %2245 = vset.pattern.permute.xlu0 0
        %2246 = vperm.xlu0 %2245, %v2244
        %v2247 = vpop.permute.xlu0 %2246
        %vm2248 = vcmp.eq.s32.totalorder %v2247, 1
        %v2249 = vsel %vm2243, 1, 0
        %v2250 = vlaneseq
        %v2251 = vshrl.u32 %v2250, 7
        %v2252 = vsub.s32 0, %v2251
        %v2253 = vrot.slane %v2249, %v2252
        %vm2254 = vcmp.eq.s32.totalorder %v2253, 1
        %vm2255 = vmand %vm2248, %vm2254
        %vm2256 = vmand %vm2255, %vm2239
        %v2257 = vsel %vm2256, %v2230, -1e+30
        %vm2258 = vcmask 64512
        %v2259 = vsel %vm2258, %v2257, -inf
        %2260 = vmax.xlane.f32.xlu0 %v2259
        %v2261 = vpop.xlane.xlu0 %2260
        %v2262 = vsub.f32 %v2257, %v2261
        %v2263 = vmul.f32 %v2262, 1.442695
        %v2264 = vpow.pop %v2263
        %v2265 = vsel %vm2258, %v2264, 0.0
        %2266 = vadd.xlane.f32.xlu0 %v2265
        %v2267 = vpop.xlane.xlu0 %2266
        %v2268 = vrcp.pop %v2267
        %v2269 = vmul.f32 %v2264, %v2268
        %v2270 = vpack.c.bf16 %v2269, %v2269
        %v2272 = vsel %vm2258, %v2270, 0
        %vm2274 = vcmask 1043456
        %v2275 = vsel %vm2274, %v2160, 0
        %2277 = vmatprep.subr.bf16.mxu0 0
        %2278 = vmatpush1.bf16.msra.mxu0 0
        %2279 = vmatprep.subr.bf16.mxu0 0
        %2280 = vmatpush1.bf16.msra.mxu0 0
        %2281 = vmatprep.subr.bf16.mxu0 0
        %2282 = vmatpush1.bf16.msra.mxu0 0
        %2283 = vmatprep.subr.bf16.mxu0 0
        %2284 = vmatpush1.bf16.msra.mxu0 0
        %2285 = vmatprep.subr.bf16.mxu0 0
        %2286 = vmatpush1.bf16.msra.mxu0 0
        %2287 = vmatprep.subr.bf16.mxu0 0
        %2288 = vmatpush1.bf16.msra.mxu0 0
        %2289 = vmatprep.subr.bf16.mxu0 0
        %2290 = vmatpush1.bf16.msra.mxu0 0
        %2291 = vmatprep.subr.bf16.mxu0 0
        %2292 = vmatpush1.bf16.msra.mxu0 %v2275
        %2293 = vmatprep.subr.bf16.mxu0 0
        %2294 = vmatpush2.bf16.msra.mxu0 0
        %2295 = vmatprep.subr.bf16.mxu0 0
        %2296 = vmatpush2.bf16.msra.mxu0 0
        %2297 = vmatprep.subr.bf16.mxu0 0
        %2298 = vmatpush2.bf16.msra.mxu0 0
        %2299 = vmatprep.subr.bf16.mxu0 0
        %2300 = vmatpush2.bf16.msra.mxu0 0
        %2301 = vmatprep.subr.bf16.mxu0 0
        %2302 = vmatpush2.bf16.msra.mxu0 0
        %2303 = vmatprep.subr.bf16.mxu0 0
        %2304 = vmatpush2.bf16.msra.mxu0 0
        %2305 = vmatprep.subr.bf16.mxu0 0
        %2306 = vmatpush2.bf16.msra.mxu0 0
        %2307 = vmatprep.subr.bf16.mxu0 0
        %2308 = vmatpush2.bf16.msra.mxu0 0
        %2309 = vmatprep.mubr.bf16.mxu0 0
        %2310 = vmatmul.mubr.bf16.gmra.mxu0 %v2272
        %v2311 = vpop.f32.mrf.mxu0
        %v2312 = vadd.f32 0.0, %v2311
        %v2313 = vpop.f32.mrf.mxu0
        %v2314 = vpop.f32.mrf.mxu0
        %v2315 = vpop.f32.mrf.mxu0
        %2316 = vdwg.mxu0
        %v2317 = vmul.f32 %v2159, %v2312
        %v2318 = vpack.c.bf16 %v2312, %v2312
        %v2319 = vld [vmem:[%s12] sm:$0xf]
        %v2320 = vld [vmem:[%s12 + $0x4] sm:$0xf]
        %v2321 = vld [vmem:[%s12 + $0x8] sm:$0xf]
        %v2322 = vld [vmem:[%s12 + $0xc] sm:$0xf]
        %v2323 = vld [vmem:[%s13] sm:$0xf]
        %v2324 = vld [vmem:[%s13 + $0x4] sm:$0xf]
        %v2325 = vld [vmem:[%s13 + $0x8] sm:$0xf]
        %v2326 = vld [vmem:[%s13 + $0xc] sm:$0xf]
        %v2331 = vunpack.c.l.b16 %v2323
        %v2332 = vunpack.c.l.b16 %v2324
        %v2333 = vunpack.c.l.b16 %v2325
        %v2334 = vunpack.c.l.b16 %v2326
        %v2335 = vpack.c.b16 %v2332, %v2331
        %v2336 = vpack.c.b16 %v2334, %v2333
        %2339 = vmatprep.subr.bf16.mxu0 0
        %2340 = vmatpush1.bf16.msra.mxu0 0
        %2341 = vmatprep.subr.bf16.mxu0 0
        %2342 = vmatpush1.bf16.msra.mxu0 0
        %2343 = vmatprep.subr.bf16.mxu0 0
        %2344 = vmatpush1.bf16.msra.mxu0 0
        %2345 = vmatprep.subr.bf16.mxu0 0
        %2346 = vmatpush1.bf16.msra.mxu0 0
        %2347 = vmatprep.subr.bf16.mxu0 0
        %2348 = vmatpush1.bf16.msra.mxu0 0
        %2349 = vmatprep.subr.bf16.mxu0 0
        %2350 = vmatpush1.bf16.msra.mxu0 0
        %2351 = vmatprep.subr.bf16.mxu0 0
        %2352 = vmatpush1.bf16.msra.mxu0 %v2336
        %2353 = vmatprep.subr.bf16.mxu0 0
        %2354 = vmatpush1.bf16.msra.mxu0 %v2335
        %2355 = vmatprep.subr.bf16.mxu0 0
        %2356 = vmatpush2.bf16.msra.mxu0 0
        %2357 = vmatprep.subr.bf16.mxu0 0
        %2358 = vmatpush2.bf16.msra.mxu0 0
        %2359 = vmatprep.subr.bf16.mxu0 0
        %2360 = vmatpush2.bf16.msra.mxu0 0
        %2361 = vmatprep.subr.bf16.mxu0 0
        %2362 = vmatpush2.bf16.msra.mxu0 0
        %2363 = vmatprep.subr.bf16.mxu0 0
        %2364 = vmatpush2.bf16.msra.mxu0 0
        %2365 = vmatprep.subr.bf16.mxu0 0
        %2366 = vmatpush2.bf16.msra.mxu0 0
        %2367 = vmatprep.subr.bf16.mxu0 0
        %2368 = vmatpush2.bf16.msra.mxu0 0
        %2369 = vmatprep.subr.bf16.mxu0 0
        %2370 = vmatpush2.bf16.msra.mxu0 0
        %2371 = vmatprep.mubr.bf16.mxu0 0
        %2372 = vmatmul.mubr.bf16.gmra.mxu0 %v2193
        %v2373 = vpop.f32.mrf.mxu0
        %v2374 = vadd.f32 0.0, %v2373
        %v2375 = vpop.f32.mrf.mxu0
        %v2376 = vpop.f32.mrf.mxu0
        %v2377 = vpop.f32.mrf.mxu0
        %2378 = vdwg.mxu0
        %v2383 = vunpack.c.l.b16 %v2319
        %v2384 = vunpack.c.l.b16 %v2320
        %v2385 = vunpack.c.l.b16 %v2321
        %v2386 = vunpack.c.l.b16 %v2322
        %v2387 = vpack.c.b16 %v2384, %v2383
        %v2388 = vpack.c.b16 %v2386, %v2385
        %v2392 = vsel %vm747, %v2318, 0
        %2394 = vmatprep.subr.bf16.mxu0 0
        %2395 = vmatpush1.bf16.msra.mxu0 0
        %2396 = vmatprep.subr.bf16.mxu0 0
        %2397 = vmatpush1.bf16.msra.mxu0 0
        %2398 = vmatprep.subr.bf16.mxu0 0
        %2399 = vmatpush1.bf16.msra.mxu0 0
        %2400 = vmatprep.subr.bf16.mxu0 0
        %2401 = vmatpush1.bf16.msra.mxu0 0
        %2402 = vmatprep.subr.bf16.mxu0 0
        %2403 = vmatpush1.bf16.msra.mxu0 0
        %2404 = vmatprep.subr.bf16.mxu0 0
        %2405 = vmatpush1.bf16.msra.mxu0 0
        %2406 = vmatprep.subr.bf16.mxu0 0
        %2407 = vmatpush1.bf16.msra.mxu0 %v2388
        %2408 = vmatprep.subr.bf16.mxu0 0
        %2409 = vmatpush1.bf16.msra.mxu0 %v2387
        %2410 = vmatprep.subr.bf16.mxu0 0
        %2411 = vmatpush2.bf16.msra.mxu0 0
        %2412 = vmatprep.subr.bf16.mxu0 0
        %2413 = vmatpush2.bf16.msra.mxu0 0
        %2414 = vmatprep.subr.bf16.mxu0 0
        %2415 = vmatpush2.bf16.msra.mxu0 0
        %2416 = vmatprep.subr.bf16.mxu0 0
        %2417 = vmatpush2.bf16.msra.mxu0 0
        %2418 = vmatprep.subr.bf16.mxu0 0
        %2419 = vmatpush2.bf16.msra.mxu0 0
        %2420 = vmatprep.subr.bf16.mxu0 0
        %2421 = vmatpush2.bf16.msra.mxu0 0
        %2422 = vmatprep.subr.bf16.mxu0 0
        %2423 = vmatpush2.bf16.msra.mxu0 0
        %2424 = vmatprep.subr.bf16.mxu0 0
        %2425 = vmatpush2.bf16.msra.mxu0 0
        %2426 = vmatprep.mubr.bf16.mxu0 0
        %2427 = vmatmul.mubr.bf16.gmra.mxu0 %v2392
        %v2428 = vpop.f32.mrf.mxu0
        %v2429 = vadd.f32 %v2374, %v2428
        %v2430 = vpop.f32.mrf.mxu0
        %v2431 = vpop.f32.mrf.mxu0
        %v2432 = vpop.f32.mrf.mxu0
        %2433 = vdwg.mxu0
        %v2434 = vpack.c.bf16 %v2317, %v2317
        %v2435 = vld [vmem:[%s14] sm:$0xf]
        %v2436 = vld [vmem:[%s14 + $0x4] sm:$0xf]
        %v2437 = vld [vmem:[%s14 + $0x8] sm:$0xf]
        %v2438 = vld [vmem:[%s14 + $0xc] sm:$0xf]
        %v2443 = vunpack.c.l.b16 %v2435
        %v2444 = vunpack.c.l.b16 %v2436
        %v2445 = vunpack.c.l.b16 %v2437
        %v2446 = vunpack.c.l.b16 %v2438
        %v2447 = vpack.c.b16 %v2444, %v2443
        %v2448 = vpack.c.b16 %v2446, %v2445
        %v2452 = vsel %vm747, %v2434, 0
        %2454 = vmatprep.subr.bf16.mxu0 0
        %2455 = vmatpush1.bf16.msra.mxu0 0
        %2456 = vmatprep.subr.bf16.mxu0 0
        %2457 = vmatpush1.bf16.msra.mxu0 0
        %2458 = vmatprep.subr.bf16.mxu0 0
        %2459 = vmatpush1.bf16.msra.mxu0 0
        %2460 = vmatprep.subr.bf16.mxu0 0
        %2461 = vmatpush1.bf16.msra.mxu0 0
        %2462 = vmatprep.subr.bf16.mxu0 0
        %2463 = vmatpush1.bf16.msra.mxu0 0
        %2464 = vmatprep.subr.bf16.mxu0 0
        %2465 = vmatpush1.bf16.msra.mxu0 0
        %2466 = vmatprep.subr.bf16.mxu0 0
        %2467 = vmatpush1.bf16.msra.mxu0 %v2448
        %2468 = vmatprep.subr.bf16.mxu0 0
        %2469 = vmatpush1.bf16.msra.mxu0 %v2447
        %2470 = vmatprep.subr.bf16.mxu0 0
        %2471 = vmatpush2.bf16.msra.mxu0 0
        %2472 = vmatprep.subr.bf16.mxu0 0
        %2473 = vmatpush2.bf16.msra.mxu0 0
        %2474 = vmatprep.subr.bf16.mxu0 0
        %2475 = vmatpush2.bf16.msra.mxu0 0
        %2476 = vmatprep.subr.bf16.mxu0 0
        %2477 = vmatpush2.bf16.msra.mxu0 0
        %2478 = vmatprep.subr.bf16.mxu0 0
        %2479 = vmatpush2.bf16.msra.mxu0 0
        %2480 = vmatprep.subr.bf16.mxu0 0
        %2481 = vmatpush2.bf16.msra.mxu0 0
        %2482 = vmatprep.subr.bf16.mxu0 0
        %2483 = vmatpush2.bf16.msra.mxu0 0
        %2484 = vmatprep.subr.bf16.mxu0 0
        %2485 = vmatpush2.bf16.msra.mxu0 0
        %2486 = vmatprep.mubr.bf16.mxu0 0
        %2487 = vmatmul.mubr.bf16.gmra.mxu0 %v2452
        %v2488 = vpop.f32.mrf.mxu0
        %v2489 = vadd.f32 0.0, %v2488
        %v2490 = vpop.f32.mrf.mxu0
        %v2491 = vpop.f32.mrf.mxu0
        %v2492 = vpop.f32.mrf.mxu0
        %2493 = vdwg.mxu0
        %v2494 = vadd.f32 %v2429, %v2489
        %v2495 = vld [vmem:[%s15] sm:$0x1]
        %v2497 = vlaneseq
        %v2498 = vshrl.u32 %v2497, 7
        %v2499 = vsub.s32 0, %v2498
        %v2500 = vrot.slane %v2495, %v2499
        %v2502 = vadd.f32 %v2494, %v2500
        %v2503 = vmax.f32 %v2502, 0.0
        %v2504 = vld [vmem:[%s603] sm:$0xff]
        %v2505 = vadd.f32 %v2504, %v2503
        %2506 = vst [vmem:[%s599] sm:$0xff] %v2505
        %s2507 = sand.u32 %s394, 1
        %s2508 = scalar_lea.sflag [#allocation6], %s2507
        %s2509 = sand.u32 %s394, 1
        %s2510 = smul.addr %s2509, 8
        %s2511 = scalar_lea.vmem [#allocation12], %s2510
        // Predicated region
        $region101: #{tpu_custom_call.1} parent=83 // pred_check
          %p2512 = pneg %p404
        $region102: #{tpu_custom_call.1} parent=83 // pred_check_branch
          %2514 = sbr.rel (%p2512) target = $region104
        $region103: #{tpu_custom_call.1} parent=83 // pred_region
          %s2516 = ssub.s32 128, 128
          %2517 = vsyncadd %s2508, %s2516
          %s2518 = smul.addr %s35, 128
          %s2519 = scalar_lea.hbm %s16, %s2518
          %s2521 = sshll.u32 %s2511, 4
          %s2522 = int_to_ptr.vmem [resolvable:$true] %s2521
          %2524 = dma.vmem_to_hbm [thread:$0]  %s2522, 128, %s2519, %s2508
        $region104: #{tpu_custom_call.1} parent=83 // pred_fallthru
          _
      $region84: #{tpu_custom_call.1} parent=5 // pred_fallthru
        _
      %p2525 = scmp.le.s32.totalorder 2, %s30
      // Predicated region
      $region105: #{tpu_custom_call.1} parent=5 // pred_check
        %p2526 = pneg %p2525
      $region106: #{tpu_custom_call.1} parent=5 // pred_check_branch
        %2528 = sbr.rel (%p2526) target = $region108
      $region107: #{tpu_custom_call.1} parent=5 // pred_region
        %s2529 = ssub.s32 %s30, 2
        // Predicated region
        $region109: #{tpu_custom_call.1} parent=107 // pred_check
          %p2530 = pneg %p410
        $region110: #{tpu_custom_call.1} parent=107 // pred_check_branch
          %2532 = sbr.rel (%p2530) target = $region112
        $region111: #{tpu_custom_call.1} parent=107 // pred_region
          %s2533 = sand.u32 %s395, 1
          %s2534 = scalar_lea.sflag [#allocation6], %s2533
          %s2535 = sand.u32 %s395, 1
          %s2536 = smul.addr %s2535, 8
          %s2537 = scalar_lea.vmem [#allocation12], %s2536
          %2538 = dma.done %s2534, 128
        $region112: #{tpu_custom_call.1} parent=107 // pred_fallthru
          _
      $region108: #{tpu_custom_call.1} parent=5 // pred_fallthru
        _
    $region6: #{tpu_custom_call.1} parent=1 // loop_footer
      %s34 = sadd.s32 1, %s30
    $region7: #{tpu_custom_call.1} parent=1 // loop_footer_branch
      %29 = sbr.rel target = $region3
    $region8: #{tpu_custom_call.1} parent=1 // loop_exit
      _
    %2539 = vsyncpa [#allocation5], 1
    %s2540 = scalar_lea.sflag [#allocation5], 1
    %2541 = vsyncpa %s2540, 1
    %2542 = vsyncpa [#allocation8], 1
    %2543 = vsyncpa [#allocation11], 1
    %2544 = vsyncpa [#allocation6], 1
    %s2545 = scalar_lea.sflag [#allocation6], 1
    %2546 = vsyncpa %s2545, 1

</llo_original>
